<compile_context>
chip_gen: v5e
topology: v5e:2x2
jax: 0.10.0
libtpu: 0.0.40
codegen_flags: <defaults>
</compile_context>

<pallas_src>
import jax
import jax.numpy as jnp
from jax import lax
from jax.experimental import pallas as pl
from jax.experimental.pallas import tpu as pltpu


def _round_up(n, m):
    return (n + m - 1) // m * m


# ----------------------------------------------------------------------------- kernel
def _chess_eval_kernel(xb_ref, x2_ref, w1_ref, b1_ref, w2_ref, b2_ref,
                       wf1_ref, bf1_ref, wf2_ref, bf2_ref, wf3_ref, bf3_ref,
                       o_ref):
    f32 = jnp.float32
    bf16 = jnp.bfloat16

    # conv1 (3x3, pad 1) over the whole 8x8 board, folded into ONE dense matmul.
    # Output columns are ordered (pool-parity g, pooled position qp, cout).
    y1 = jnp.dot(xb_ref[...], w1_ref[...], preferred_element_type=f32)     # (TB, 2048)
    # 2x2 maxpool == max over the four 128-aligned 512-lane parity chunks.
    # Bias + ReLU commute with the max, so apply them on the pooled slab.
    m1 = jnp.maximum(jnp.maximum(y1[:, 0:512], y1[:, 512:1024]),
                     jnp.maximum(y1[:, 1024:1536], y1[:, 1536:2048]))
    p1 = jnp.maximum(m1 + b1_ref[...], 0.0)                                # (TB, 512)

    # conv2 folded the same way (columns ordered (g2, qo, cout)).
    y2 = jnp.dot(p1.astype(bf16), w2_ref[...], preferred_element_type=f32)  # (TB, 1024)
    m2 = jnp.maximum(jnp.maximum(y2[:, 0:256], y2[:, 256:512]),
                     jnp.maximum(y2[:, 512:768], y2[:, 768:1024]))
    p2 = jnp.maximum(m2 + b2_ref[...], 0.0)                                # (TB, 256)

    # fc head: extras are appended on a 128-aligned lane boundary (no rotates)
    # and handled by extra rows of the fused fc1 weight.
    feat = jnp.concatenate([p2.astype(bf16), x2_ref[...]], axis=-1)        # (TB, 264)
    h1 = jnp.dot(feat, wf1_ref[...], preferred_element_type=f32)
    h1 = jnp.maximum(h1 + bf1_ref[...], 0.0)                               # (TB, 256)
    h2 = jnp.dot(h1.astype(bf16), wf2_ref[...], preferred_element_type=f32)
    h2 = jnp.maximum(h2 + bf2_ref[...], 0.0)                               # (TB, 16)
    z = jnp.dot(h2, wf3_ref[...], preferred_element_type=f32) + bf3_ref[...]
    o_ref[...] = 1.0 / (1.0 + jnp.exp(-z))                                 # sigmoid, (TB, 1)


# ----------------------------------------------------------------------- weight folding
def _dense_conv_pool_weight(w, grid, channels_first_rows):
    """Fold a 3x3 / stride-1 / pad-1 conv on a (grid x grid) image into a dense matrix.

    Returns (grid*grid*Cin, 4*(grid//2)**2*Cout) where
      * rows are the flattened input image, ordered (Cin, y, x) if
        channels_first_rows else (y, x, Cin);
      * columns are ordered (pool-parity g=pi*2+pj, pooled position q, Cout),
        so a following 2x2/stride-2 max-pool is a max over four contiguous,
        128-aligned column chunks.
    """
    cout, cin = w.shape[0], w.shape[1]
    pos = jnp.arange(grid)
    tap = jnp.arange(3)
    # sel[p, i, d] = 1  iff  input index i == output index p + d - 1  (zero pad of 1)
    sel = (pos[None, :, None] == pos[:, None, None] + tap[None, None, :] - 1)
    sel = sel.astype(jnp.float32)
    # full[y_out, x_out, cin, y_in, x_in, cout] = w[cout, cin, y_in-y_out+1, x_in-x_out+1]
    full = jnp.einsum("pid,qje,ocde->pqcijo", sel, sel, w.astype(jnp.float32))
    if channels_first_rows:
        full = jnp.transpose(full, (2, 3, 4, 0, 1, 5))     # (cin, y_in, x_in, y, x, cout)
    else:
        full = jnp.transpose(full, (3, 4, 2, 0, 1, 5))     # (y_in, x_in, cin, y, x, cout)
    rows = grid * grid * cin
    half = grid // 2
    m = full.reshape(rows, half, 2, half, 2, cout)          # (row, io, pi, jo, pj, cout)
    m = jnp.transpose(m, (0, 2, 4, 1, 3, 5))                # (row, pi, pj, io, jo, cout)
    return m.reshape(rows, 4 * half * half * cout)


def prepare_params(params):
    """One-time conversion of PyTorch-layout parameters into kernel operands."""
    f32, bf16 = jnp.float32, jnp.bfloat16

    w1 = _dense_conv_pool_weight(params["conv1_w"], 8, True).astype(bf16)    # (384, 2048)
    b1 = jnp.tile(params["conv1_b"].astype(f32), 16).reshape(1, 512)
    w2 = _dense_conv_pool_weight(params["conv2_w"], 4, False).astype(bf16)   # (512, 1024)
    b2 = jnp.tile(params["conv2_b"].astype(f32), 4).reshape(1, 256)

    # fc1 expects [NCHW-flattened 2x2x64 board | 5 extras]; the kernel produces
    # NHWC-flattened board features f = (oi*2+oj)*64 + c, so permute fc1's board
    # rows accordingly, append the 5 extra rows and 3 zero rows (extras padded to 8).
    wfc1_t = params["fc1_w"].T.astype(f32)                                   # (261, 256)
    perm = jnp.asarray([c * 4 + i * 2 + j
                        for i in range(2) for j in range(2) for c in range(64)],
                       dtype=jnp.int32)
    wf1 = jnp.concatenate([wfc1_t[:256][perm], wfc1_t[256:261],
                           jnp.zeros((3, 256), f32)], axis=0).astype(bf16)   # (264, 256)
    bf1 = params["fc1_b"].reshape(1, 256).astype(f32)
    wf2 = params["fc2_w"].T.astype(bf16)                                     # (256, 16)
    bf2 = params["fc2_b"].reshape(1, 16).astype(f32)
    wf3 = params["fc3_w"].T.astype(f32)                                      # (16, 1)
    bf3 = params["fc3_b"].reshape(1, 1).astype(f32)
    return dict(w1=w1, b1=b1, w2=w2, b2=b2, wf1=wf1, bf1=bf1,
                wf2=wf2, bf2=bf2, wf3=wf3, bf3=bf3)


# --------------------------------------------------------------------------- wrapper
@jax.jit
def chess_evaluator_forward(x, x2, prepared):
    """x: (B, 6, 8, 8) NCHW float32 ; x2: (B, 5) ; prepared = prepare_params(...)  -> (B, 1)."""
    B = x.shape[0]
    TB = min(512, _round_up(B, 16))           # batch tile (multiple of 16 for bf16 sublanes)
    B_pad = _round_up(B, TB)

    xb = x.reshape(B, 6 * 8 * 8).astype(jnp.bfloat16)            # NCHW flatten (B, 384)
    x2p = jnp.pad(x2.reshape(B, 5).astype(jnp.bfloat16), ((0, 0), (0, 3)))   # (B, 8)
    if B_pad != B:
        xb = jnp.pad(xb, ((0, B_pad - B), (0, 0)))
        x2p = jnp.pad(x2p, ((0, B_pad - B), (0, 0)))

    p = prepared

    def tile_spec(cols):
        return pl.BlockSpec((TB, cols), lambda i: (i, 0))

    def full_spec(arr):
        shape = arr.shape
        return pl.BlockSpec(shape, lambda i, _n=len(shape): (0,) * _n)

    out = pl.pallas_call(
        _chess_eval_kernel,
        out_shape=jax.ShapeDtypeStruct((B_pad, 1), jnp.float32),
        grid=(B_pad // TB,),
        in_specs=[
            tile_spec(384), tile_spec(8),
            full_spec(p["w1"]), full_spec(p["b1"]),
            full_spec(p["w2"]), full_spec(p["b2"]),
            full_spec(p["wf1"]), full_spec(p["bf1"]),
            full_spec(p["wf2"]), full_spec(p["bf2"]),
            full_spec(p["wf3"]), full_spec(p["bf3"]),
        ],
        out_specs=pl.BlockSpec((TB, 1), lambda i: (i, 0)),
        compiler_params=pltpu.CompilerParams(
            dimension_semantics=("parallel",)),
    )(xb, x2p, p["w1"], p["b1"], p["w2"], p["b2"],
      p["wf1"], p["bf1"], p["wf2"], p["bf2"], p["wf3"], p["bf3"])

    return out[:B]


# --------------------------------------------------------------------- reference & params
def _reference_forward(x, x2, params):
    """Pure-JAX f32 replica of the PyTorch forward (for correctness checking)."""
    y = lax.conv_general_dilated(x, params["conv1_w"], (1, 1), ((1, 1), (1, 1)),
                                 dimension_numbers=("NCHW", "OIHW", "NCHW"))
    y = jax.nn.relu(y + params["conv1_b"][None, :, None, None])
    y = y.reshape(y.shape[0], 32, 4, 2, 4, 2).max(axis=(3, 5))
    y = lax.conv_general_dilated(y, params["conv2_w"], (1, 1), ((1, 1), (1, 1)),
                                 dimension_numbers=("NCHW", "OIHW", "NCHW"))
    y = jax.nn.relu(y + params["conv2_b"][None, :, None, None])
    y = y.reshape(y.shape[0], 64, 2, 2, 2, 2).max(axis=(3, 5))
    flat = y.reshape(y.shape[0], 256)                        # NCHW flatten
    feat = jnp.concatenate([flat, x2.reshape(-1, 5)], axis=1)
    h1 = jax.nn.relu(feat @ params["fc1_w"].T + params["fc1_b"])
    h2 = jax.nn.relu(h1 @ params["fc2_w"].T + params["fc2_b"])
    return jax.nn.sigmoid(h2 @ params["fc3_w"].T + params["fc3_b"])


def init_params(key):
    """Deterministic synthetic parameters with the shapes from ChessEvaluator.__init__."""
    ks = jax.random.split(key, 10)

    def u(k, shape, scale):
        return scale * jax.random.uniform(k, shape, jnp.float32, -1.0, 1.0)

    return {
        "conv1_w": u(ks[0], (32, 6, 3, 3), 0.15),
        "conv1_b": u(ks[1], (32,), 0.10),
        "conv2_w": u(ks[2], (64, 32, 3, 3), 0.08),
        "conv2_b": u(ks[3], (64,), 0.10),
        "fc1_w":   u(ks[4], (256, 261), 0.05),
        "fc1_b":   u(ks[5], (256,), 0.05),
        "fc2_w":   u(ks[6], (16, 256), 0.08),
        "fc2_b":   u(ks[7], (16,), 0.05),
        "fc3_w":   u(ks[8], (1, 16), 0.20),
        "fc3_b":   u(ks[9], (1,), 0.10),
    }


if __name__ == "__main__":
    key = jax.random.PRNGKey(0)
    kx, kx2, kp = jax.random.split(key, 3)
    params = init_params(kp)
    prepared = prepare_params(params)          # one-time weight folding (off the hot path)

    # board planes (B, 6, 8, 8) and 5 extra scalar features per position
    x = jax.random.normal(kx, (2, 6, 8, 8), jnp.float32)
    x2 = jax.random.normal(kx2, (2, 5), jnp.float32)

    out = chess_evaluator_forward(x, x2, prepared)
    out = jax.block_until_ready(out)

    assert out.shape == (2, 1), out.shape
    assert bool(jnp.all(jnp.isfinite(out)))
    assert bool(jnp.all((out >= 0.0) & (out <= 1.0)))        # sigmoid range

    ref = _reference_forward(x, x2, params)
    max_err = float(jnp.max(jnp.abs(out - ref)))
    assert max_err < 5e-2, f"kernel vs reference mismatch: {max_err}"
    print("KERNEL_OK")
</pallas_src>

<mosaic_0001>
module attributes {stable_mosaic.version = 11 : i64} {
  func.func @_chess_eval_kernel(%arg0: i32, %arg1: memref<16x384xbf16, #tpu.memory_space<vmem>>, %arg2: memref<16x8xbf16, #tpu.memory_space<vmem>>, %arg3: memref<384x2048xbf16, #tpu.memory_space<vmem>>, %arg4: memref<1x512xf32, #tpu.memory_space<vmem>>, %arg5: memref<512x1024xbf16, #tpu.memory_space<vmem>>, %arg6: memref<1x256xf32, #tpu.memory_space<vmem>>, %arg7: memref<264x256xbf16, #tpu.memory_space<vmem>>, %arg8: memref<1x256xf32, #tpu.memory_space<vmem>>, %arg9: memref<256x16xbf16, #tpu.memory_space<vmem>>, %arg10: memref<1x16xf32, #tpu.memory_space<vmem>>, %arg11: memref<16x1xf32, #tpu.memory_space<vmem>>, %arg12: memref<1x1xf32, #tpu.memory_space<vmem>>, %arg13: memref<16x1xf32, #tpu.memory_space<vmem>>) attributes {dimension_semantics = [#tpu.dimension_semantics<parallel>], iteration_bounds = array<i64: 1>, scalar_prefetch = 0 : i64, scratch_operands = 0 : i64, tpu.core_type = #tpu.core_type<tc>, window_params = [{transform_indices = @transform_0, window_bounds = array<i64: 16, 384>}, {transform_indices = @transform_1, window_bounds = array<i64: 16, 8>}, {pipeline_mode = #tpu.pipeline_mode<synchronous>, transform_indices = @transform_2, window_bounds = array<i64: 384, 2048>}, {pipeline_mode = #tpu.pipeline_mode<synchronous>, transform_indices = @transform_3, window_bounds = array<i64: 1, 512>}, {pipeline_mode = #tpu.pipeline_mode<synchronous>, transform_indices = @transform_4, window_bounds = array<i64: 512, 1024>}, {pipeline_mode = #tpu.pipeline_mode<synchronous>, transform_indices = @transform_5, window_bounds = array<i64: 1, 256>}, {pipeline_mode = #tpu.pipeline_mode<synchronous>, transform_indices = @transform_6, window_bounds = array<i64: 264, 256>}, {pipeline_mode = #tpu.pipeline_mode<synchronous>, transform_indices = @transform_7, window_bounds = array<i64: 1, 256>}, {pipeline_mode = #tpu.pipeline_mode<synchronous>, transform_indices = @transform_8, window_bounds = array<i64: 256, 16>}, {pipeline_mode = #tpu.pipeline_mode<synchronous>, transform_indices = @transform_9, window_bounds = array<i64: 1, 16>}, {pipeline_mode = #tpu.pipeline_mode<synchronous>, transform_indices = @transform_10, window_bounds = array<i64: 16, 1>}, {pipeline_mode = #tpu.pipeline_mode<synchronous>, transform_indices = @transform_11, window_bounds = array<i64: 1, 1>}, {transform_indices = @transform_12, window_bounds = array<i64: 16, 1>}]} {
    %c0 = arith.constant 0 : index
    %c0_0 = arith.constant 0 : index
    %0 = vector.load %arg1[%c0, %c0_0] : memref<16x384xbf16, #tpu.memory_space<vmem>>, vector<16x384xbf16>
    %c0_1 = arith.constant 0 : index
    %c0_2 = arith.constant 0 : index
    %1 = vector.load %arg3[%c0_1, %c0_2] : memref<384x2048xbf16, #tpu.memory_space<vmem>>, vector<384x2048xbf16>
    %cst = arith.constant dense<0.000000e+00> : vector<16x2048xf32>
    %2 = tpu.matmul %0, %1, %cst {dimension_numbers = #tpu.dot_dimension_numbers<[1], [0], [0], [1], [0, 0, 1, 1], [], []>} : vector<16x384xbf16>, vector<384x2048xbf16>, vector<16x2048xf32> -> vector<16x2048xf32>
    %3 = vector.extract_strided_slice %2 {offsets = [0, 0], sizes = [16, 512], strides = [1, 1]} : vector<16x2048xf32> to vector<16x512xf32>
    %4 = vector.extract_strided_slice %2 {offsets = [0, 512], sizes = [16, 512], strides = [1, 1]} : vector<16x2048xf32> to vector<16x512xf32>
    %5 = arith.maximumf %3, %4 : vector<16x512xf32>
    %6 = vector.extract_strided_slice %2 {offsets = [0, 1024], sizes = [16, 512], strides = [1, 1]} : vector<16x2048xf32> to vector<16x512xf32>
    %7 = vector.extract_strided_slice %2 {offsets = [0, 1536], sizes = [16, 512], strides = [1, 1]} : vector<16x2048xf32> to vector<16x512xf32>
    %8 = arith.maximumf %6, %7 : vector<16x512xf32>
    %9 = arith.maximumf %5, %8 : vector<16x512xf32>
    %c0_3 = arith.constant 0 : index
    %c0_4 = arith.constant 0 : index
    %10 = vector.load %arg4[%c0_3, %c0_4] : memref<1x512xf32, #tpu.memory_space<vmem>>, vector<1x512xf32>
    %11 = vector.broadcast %10 : vector<1x512xf32> to vector<16x512xf32>
    %12 = arith.addf %9, %11 : vector<16x512xf32>
    %cst_5 = arith.constant 0.000000e+00 : f32
    %13 = vector.broadcast %cst_5 : f32 to vector<16x512xf32>
    %14 = arith.maximumf %12, %13 : vector<16x512xf32>
    %15 = arith.truncf %14 : vector<16x512xf32> to vector<16x512xbf16>
    %c0_6 = arith.constant 0 : index
    %c0_7 = arith.constant 0 : index
    %16 = vector.load %arg5[%c0_6, %c0_7] : memref<512x1024xbf16, #tpu.memory_space<vmem>>, vector<512x1024xbf16>
    %cst_8 = arith.constant dense<0.000000e+00> : vector<16x1024xf32>
    %17 = tpu.matmul %15, %16, %cst_8 {dimension_numbers = #tpu.dot_dimension_numbers<[1], [0], [0], [1], [0, 0, 1, 1], [], []>} : vector<16x512xbf16>, vector<512x1024xbf16>, vector<16x1024xf32> -> vector<16x1024xf32>
    %18 = vector.extract_strided_slice %17 {offsets = [0, 0], sizes = [16, 256], strides = [1, 1]} : vector<16x1024xf32> to vector<16x256xf32>
    %19 = vector.extract_strided_slice %17 {offsets = [0, 256], sizes = [16, 256], strides = [1, 1]} : vector<16x1024xf32> to vector<16x256xf32>
    %20 = arith.maximumf %18, %19 : vector<16x256xf32>
    %21 = vector.extract_strided_slice %17 {offsets = [0, 512], sizes = [16, 256], strides = [1, 1]} : vector<16x1024xf32> to vector<16x256xf32>
    %22 = vector.extract_strided_slice %17 {offsets = [0, 768], sizes = [16, 256], strides = [1, 1]} : vector<16x1024xf32> to vector<16x256xf32>
    %23 = arith.maximumf %21, %22 : vector<16x256xf32>
    %24 = arith.maximumf %20, %23 : vector<16x256xf32>
    %c0_9 = arith.constant 0 : index
    %c0_10 = arith.constant 0 : index
    %25 = vector.load %arg6[%c0_9, %c0_10] : memref<1x256xf32, #tpu.memory_space<vmem>>, vector<1x256xf32>
    %26 = vector.broadcast %25 : vector<1x256xf32> to vector<16x256xf32>
    %27 = arith.addf %24, %26 : vector<16x256xf32>
    %cst_11 = arith.constant 0.000000e+00 : f32
    %28 = vector.broadcast %cst_11 : f32 to vector<16x256xf32>
    %29 = arith.maximumf %27, %28 : vector<16x256xf32>
    %30 = arith.truncf %29 : vector<16x256xf32> to vector<16x256xbf16>
    %c0_12 = arith.constant 0 : index
    %c0_13 = arith.constant 0 : index
    %31 = vector.load %arg2[%c0_12, %c0_13] : memref<16x8xbf16, #tpu.memory_space<vmem>>, vector<16x8xbf16>
    %32 = tpu.concatenate %30, %31 in 1 : vector<16x256xbf16>, vector<16x8xbf16> -> vector<16x264xbf16>
    %c0_14 = arith.constant 0 : index
    %c0_15 = arith.constant 0 : index
    %33 = vector.load %arg7[%c0_14, %c0_15] : memref<264x256xbf16, #tpu.memory_space<vmem>>, vector<264x256xbf16>
    %cst_16 = arith.constant dense<0.000000e+00> : vector<16x256xf32>
    %34 = tpu.matmul %32, %33, %cst_16 {dimension_numbers = #tpu.dot_dimension_numbers<[1], [0], [0], [1], [0, 0, 1, 1], [], []>} : vector<16x264xbf16>, vector<264x256xbf16>, vector<16x256xf32> -> vector<16x256xf32>
    %c0_17 = arith.constant 0 : index
    %c0_18 = arith.constant 0 : index
    %35 = vector.load %arg8[%c0_17, %c0_18] : memref<1x256xf32, #tpu.memory_space<vmem>>, vector<1x256xf32>
    %36 = vector.broadcast %35 : vector<1x256xf32> to vector<16x256xf32>
    %37 = arith.addf %34, %36 : vector<16x256xf32>
    %cst_19 = arith.constant 0.000000e+00 : f32
    %38 = vector.broadcast %cst_19 : f32 to vector<16x256xf32>
    %39 = arith.maximumf %37, %38 : vector<16x256xf32>
    %40 = arith.truncf %39 : vector<16x256xf32> to vector<16x256xbf16>
    %c0_20 = arith.constant 0 : index
    %c0_21 = arith.constant 0 : index
    %41 = vector.load %arg9[%c0_20, %c0_21] : memref<256x16xbf16, #tpu.memory_space<vmem>>, vector<256x16xbf16>
    %cst_22 = arith.constant dense<0.000000e+00> : vector<16x16xf32>
    %42 = tpu.matmul %40, %41, %cst_22 {dimension_numbers = #tpu.dot_dimension_numbers<[1], [0], [0], [1], [0, 0, 1, 1], [], []>} : vector<16x256xbf16>, vector<256x16xbf16>, vector<16x16xf32> -> vector<16x16xf32>
    %c0_23 = arith.constant 0 : index
    %c0_24 = arith.constant 0 : index
    %43 = vector.load %arg10[%c0_23, %c0_24] : memref<1x16xf32, #tpu.memory_space<vmem>>, vector<1x16xf32>
    %44 = vector.broadcast %43 : vector<1x16xf32> to vector<16x16xf32>
    %45 = arith.addf %42, %44 : vector<16x16xf32>
    %cst_25 = arith.constant 0.000000e+00 : f32
    %46 = vector.broadcast %cst_25 : f32 to vector<16x16xf32>
    %47 = arith.maximumf %45, %46 : vector<16x16xf32>
    %c0_26 = arith.constant 0 : index
    %c0_27 = arith.constant 0 : index
    %48 = vector.load %arg11[%c0_26, %c0_27] : memref<16x1xf32, #tpu.memory_space<vmem>>, vector<16x1xf32>
    %cst_28 = arith.constant dense<0.000000e+00> : vector<16x1xf32>
    %49 = tpu.matmul %47, %48, %cst_28 {dimension_numbers = #tpu.dot_dimension_numbers<[1], [0], [0], [1], [0, 0, 1, 1], [], []>} : vector<16x16xf32>, vector<16x1xf32>, vector<16x1xf32> -> vector<16x1xf32>
    %c0_29 = arith.constant 0 : index
    %c0_30 = arith.constant 0 : index
    %50 = vector.load %arg12[%c0_29, %c0_30] : memref<1x1xf32, #tpu.memory_space<vmem>>, vector<1x1xf32>
    %51 = vector.broadcast %50 : vector<1x1xf32> to vector<16x1xf32>
    %52 = arith.addf %49, %51 : vector<16x1xf32>
    %cst_31 = arith.constant 0.000000e+00 : f32
    %53 = vector.broadcast %cst_31 : f32 to vector<16x1xf32>
    %54 = arith.subf %53, %52 : vector<16x1xf32>
    %55 = math.exp %54 : vector<16x1xf32>
    %cst_32 = arith.constant 1.000000e+00 : f32
    %56 = vector.broadcast %cst_32 : f32 to vector<16x1xf32>
    %57 = arith.addf %56, %55 : vector<16x1xf32>
    %cst_33 = arith.constant 1.000000e+00 : f32
    %58 = vector.broadcast %cst_33 : f32 to vector<16x1xf32>
    %59 = arith.divf %58, %57 : vector<16x1xf32>
    %c0_34 = arith.constant 0 : index
    %c0_35 = arith.constant 0 : index
    %60 = vector.load %arg13[%c0_34, %c0_35] : memref<16x1xf32, #tpu.memory_space<vmem>>, vector<16x1xf32>
    tpu.vector_store %arg13[%c0_34, %c0_35], %59 {strides = array<i32>} : memref<16x1xf32, #tpu.memory_space<vmem>>, vector<16x1xf32>,
    return
  }
  func.func @transform_0(%arg0: i32) -> (i32, i32) {
    %c0_i32 = arith.constant 0 : i32
    %c0_i32_0 = arith.constant 0 : i32
    return %arg0, %c0_i32 : i32, i32
  }
  func.func @transform_1(%arg0: i32) -> (i32, i32) {
    %c0_i32 = arith.constant 0 : i32
    %c0_i32_0 = arith.constant 0 : i32
    return %arg0, %c0_i32 : i32, i32
  }
  func.func @transform_2(%arg0: i32) -> (i32, i32) {
    %c0_i32 = arith.constant 0 : i32
    %c0_i32_0 = arith.constant 0 : i32
    %c0_i32_1 = arith.constant 0 : i32
    return %c0_i32, %c0_i32_0 : i32, i32
  }
  func.func @transform_3(%arg0: i32) -> (i32, i32) {
    %c0_i32 = arith.constant 0 : i32
    %c0_i32_0 = arith.constant 0 : i32
    %c0_i32_1 = arith.constant 0 : i32
    return %c0_i32, %c0_i32_0 : i32, i32
  }
  func.func @transform_4(%arg0: i32) -> (i32, i32) {
    %c0_i32 = arith.constant 0 : i32
    %c0_i32_0 = arith.constant 0 : i32
    %c0_i32_1 = arith.constant 0 : i32
    return %c0_i32, %c0_i32_0 : i32, i32
  }
  func.func @transform_5(%arg0: i32) -> (i32, i32) {
    %c0_i32 = arith.constant 0 : i32
    %c0_i32_0 = arith.constant 0 : i32
    %c0_i32_1 = arith.constant 0 : i32
    return %c0_i32, %c0_i32_0 : i32, i32
  }
  func.func @transform_6(%arg0: i32) -> (i32, i32) {
    %c0_i32 = arith.constant 0 : i32
    %c0_i32_0 = arith.constant 0 : i32
    %c0_i32_1 = arith.constant 0 : i32
    return %c0_i32, %c0_i32_0 : i32, i32
  }
  func.func @transform_7(%arg0: i32) -> (i32, i32) {
    %c0_i32 = arith.constant 0 : i32
    %c0_i32_0 = arith.constant 0 : i32
    %c0_i32_1 = arith.constant 0 : i32
    return %c0_i32, %c0_i32_0 : i32, i32
  }
  func.func @transform_8(%arg0: i32) -> (i32, i32) {
    %c0_i32 = arith.constant 0 : i32
    %c0_i32_0 = arith.constant 0 : i32
    %c0_i32_1 = arith.constant 0 : i32
    return %c0_i32, %c0_i32_0 : i32, i32
  }
  func.func @transform_9(%arg0: i32) -> (i32, i32) {
    %c0_i32 = arith.constant 0 : i32
    %c0_i32_0 = arith.constant 0 : i32
    %c0_i32_1 = arith.constant 0 : i32
    return %c0_i32, %c0_i32_0 : i32, i32
  }
  func.func @transform_10(%arg0: i32) -> (i32, i32) {
    %c0_i32 = arith.constant 0 : i32
    %c0_i32_0 = arith.constant 0 : i32
    %c0_i32_1 = arith.constant 0 : i32
    return %c0_i32, %c0_i32_0 : i32, i32
  }
  func.func @transform_11(%arg0: i32) -> (i32, i32) {
    %c0_i32 = arith.constant 0 : i32
    %c0_i32_0 = arith.constant 0 : i32
    %c0_i32_1 = arith.constant 0 : i32
    return %c0_i32, %c0_i32_0 : i32, i32
  }
  func.func @transform_12(%arg0: i32) -> (i32, i32) {
    %c0_i32 = arith.constant 0 : i32
    %c0_i32_0 = arith.constant 0 : i32
    return %arg0, %c0_i32 : i32, i32
  }
}

</mosaic_0001>

<llo_original>
// kernel: chess_evaluator_forward.1
$region0: #{chess_evaluator_forward.1}
  #allocation0 [shape = 'u32[]', space=smem, size = 0x4, offset = 0x4, fixed_abs, tag = 'smem constant byte address 0x4 - core index']
  #allocation1 [shape = 'u32[72,128]{1,0:T(1,128)}', space=vmem, size = 0x9000, scoped, tag = 'internal scratch']
  #allocation2 [shape = 'f32[1,1]{1,0:T(1,128)S(1)}', space=vmem, size = 0x200, scoped, tag = 'scoped memory for chess_evaluator_forward.1']
  %s0 = inlined_call_operand.vmem [shape: bf16[16,384], index: 0, kind: input, shape index: {}]
  %s1 = inlined_call_operand.vmem [shape: bf16[16,8], index: 1, kind: input, shape index: {}]
  %s2 = inlined_call_operand.hbm [shape: bf16[384,2048], index: 2, kind: input, shape index: {}]
  %s3 = inlined_call_operand.hbm [shape: f32[1,512], index: 3, kind: input, shape index: {}]
  %s4 = inlined_call_operand.hbm [shape: bf16[512,1024], index: 4, kind: input, shape index: {}]
  %s5 = inlined_call_operand.hbm [shape: f32[1,256], index: 5, kind: input, shape index: {}]
  %s6 = inlined_call_operand.hbm [shape: bf16[264,256], index: 6, kind: input, shape index: {}]
  %s7 = inlined_call_operand.hbm [shape: f32[1,256], index: 7, kind: input, shape index: {}]
  %s8 = inlined_call_operand.vmem [shape: bf16[256,16], index: 8, kind: input, shape index: {}]
  %s9 = inlined_call_operand.hbm [shape: f32[1,16], index: 9, kind: input, shape index: {}]
  %s10 = inlined_call_operand.vmem [shape: f32[16,1], index: 10, kind: input, shape index: {}]
  %s11 = inlined_call_operand.<no memory space> [shape: f32[1,1], index: 11, kind: input, shape index: {}]
  %s12 = inlined_call_operand.vmem [shape: f32[16,1], index: 12, kind: output, shape index: {}]
  %s13 = sld [smem:[#allocation0]]
  $region86: #{chess_evaluator_forward.1} parent=0
    _
  %s15 = ssub.s32 1, %s13
  %s16 = scalar_select 0, %s15, %s13
  %v17 = vstv %s11
  %18 = vst [vmem:[#allocation2] sm:$0x1] %v17
  $region1: #{chess_evaluator_forward.1} parent=0
    #allocation3 [shape = 'u8[1572864]{0}', space=vmem, size = 0x180000, scoped, tag = 'input window, operand 2, single buffered']
    #allocation4 [shape = 's32[1]{0}', space=sflag, size = 0x4, scoped, tag = 'scoped memory for chess_evaluator_forward.1']
    #allocation5 [shape = 'u8[2048]{0}', space=vmem, size = 0x800, scoped, tag = 'input window, operand 3, single buffered']
    #allocation6 [shape = 's32[1]{0}', space=sflag, size = 0x4, scoped, tag = 'scoped memory for chess_evaluator_forward.1']
    #allocation7 [shape = 'u8[1048576]{0}', space=vmem, size = 0x100000, scoped, tag = 'input window, operand 4, single buffered']
    #allocation8 [shape = 'u8[1024]{0}', space=vmem, size = 0x400, scoped, tag = 'input window, operand 5, single buffered']
    #allocation9 [shape = 's32[1]{0}', space=sflag, size = 0x4, scoped, tag = 'scoped memory for chess_evaluator_forward.1']
    #allocation10 [shape = 'u8[135168]{0}', space=vmem, size = 0x21000, scoped, tag = 'input window, operand 6, single buffered']
    #allocation11 [shape = 'u8[1024]{0}', space=vmem, size = 0x400, scoped, tag = 'input window, operand 7, single buffered']
    #allocation12 [shape = 's32[1]{0}', space=sflag, size = 0x4, scoped, tag = 'scoped memory for chess_evaluator_forward.1']
    #allocation13 [shape = 'u8[512]{0}', space=vmem, size = 0x400, scoped, tag = 'input window, operand 9, single buffered']
    %19 = vsyncpa [#allocation4], 0
    %20 = vsyncpa [#allocation6], 0
    %21 = vsyncpa [#allocation9], 0
    %22 = vsyncpa [#allocation12], 0
    // Predicated region
    $region2: #{chess_evaluator_forward.1} parent=1 // pred_check
      _
    $region3: #{chess_evaluator_forward.1} parent=1 // pred_check_branch
      %24 = sbr.rel (0) target = $region5
    $region4: #{chess_evaluator_forward.1} parent=1 // pred_region
      _
    $region5: #{chess_evaluator_forward.1} parent=1 // pred_fallthru
      _
    // Predicated region
    $region6: #{chess_evaluator_forward.1} parent=1 // pred_check
      _
    $region7: #{chess_evaluator_forward.1} parent=1 // pred_check_branch
      %26 = sbr.rel (0) target = $region9
    $region8: #{chess_evaluator_forward.1} parent=1 // pred_region
      _
    $region9: #{chess_evaluator_forward.1} parent=1 // pred_fallthru
      _
    // Predicated region
    $region10: #{chess_evaluator_forward.1} parent=1 // pred_check
      _
    $region11: #{chess_evaluator_forward.1} parent=1 // pred_check_branch
      %28 = sbr.rel (0) target = $region13
    $region12: #{chess_evaluator_forward.1} parent=1 // pred_region
      %30 = vsyncadd [#allocation4], 0
      %s31 = sshll.u32 %s2, 4
      %s32 = int_to_ptr.hbm [resolvable:$true] %s31
      %s33 = sshll.u32 [#allocation3], 4
      %s34 = int_to_ptr.vmem [resolvable:$true] %s33
      %39 = dma.hbm_to_vmem [thread:$0]  %s32, 49152, %s34, [#allocation4], 1024, 1024, 64
    $region13: #{chess_evaluator_forward.1} parent=1 // pred_fallthru
      _
    // Predicated region
    $region14: #{chess_evaluator_forward.1} parent=1 // pred_check
      _
    $region15: #{chess_evaluator_forward.1} parent=1 // pred_check_branch
      %41 = sbr.rel (0) target = $region17
    $region16: #{chess_evaluator_forward.1} parent=1 // pred_region
      %43 = vsyncadd [#allocation6], 0
      %s45 = sshll.u32 %s3, 4
      %s46 = int_to_ptr.hbm [resolvable:$true] %s45
      %s47 = sshll.u32 [#allocation5], 4
      %s48 = int_to_ptr.vmem [resolvable:$true] %s47
      %50 = dma.hbm_to_vmem [thread:$0]  %s46, 64, %s48, [#allocation6]
    $region17: #{chess_evaluator_forward.1} parent=1 // pred_fallthru
      _
    // Predicated region
    $region18: #{chess_evaluator_forward.1} parent=1 // pred_check
      _
    $region19: #{chess_evaluator_forward.1} parent=1 // pred_check_branch
      %52 = sbr.rel (0) target = $region21
    $region20: #{chess_evaluator_forward.1} parent=1 // pred_region
      %54 = vsyncadd [#allocation6], 0
      %s55 = sshll.u32 %s4, 4
      %s56 = int_to_ptr.hbm [resolvable:$true] %s55
      %s57 = sshll.u32 [#allocation7], 4
      %s58 = int_to_ptr.vmem [resolvable:$true] %s57
      %63 = dma.hbm_to_vmem [thread:$0]  %s56, 32768, %s58, [#allocation6], 512, 512, 32
    $region21: #{chess_evaluator_forward.1} parent=1 // pred_fallthru
      _
    // Predicated region
    $region22: #{chess_evaluator_forward.1} parent=1 // pred_check
      _
    $region23: #{chess_evaluator_forward.1} parent=1 // pred_check_branch
      %65 = sbr.rel (0) target = $region25
    $region24: #{chess_evaluator_forward.1} parent=1 // pred_region
      %67 = vsyncadd [#allocation9], 0
      %s69 = sshll.u32 %s5, 4
      %s70 = int_to_ptr.hbm [resolvable:$true] %s69
      %s71 = sshll.u32 [#allocation8], 4
      %s72 = int_to_ptr.vmem [resolvable:$true] %s71
      %74 = dma.hbm_to_vmem [thread:$0]  %s70, 32, %s72, [#allocation9]
    $region25: #{chess_evaluator_forward.1} parent=1 // pred_fallthru
      _
    // Predicated region
    $region26: #{chess_evaluator_forward.1} parent=1 // pred_check
      _
    $region27: #{chess_evaluator_forward.1} parent=1 // pred_check_branch
      %76 = sbr.rel (0) target = $region29
    $region28: #{chess_evaluator_forward.1} parent=1 // pred_region
      %78 = vsyncadd [#allocation9], 0
      %s79 = sshll.u32 %s6, 4
      %s80 = int_to_ptr.hbm [resolvable:$true] %s79
      %s81 = sshll.u32 [#allocation10], 4
      %s82 = int_to_ptr.vmem [resolvable:$true] %s81
      %87 = dma.hbm_to_vmem [thread:$0]  %s80, 4224, %s82, [#allocation9], 128, 128, 8
    $region29: #{chess_evaluator_forward.1} parent=1 // pred_fallthru
      _
    // Predicated region
    $region30: #{chess_evaluator_forward.1} parent=1 // pred_check
      _
    $region31: #{chess_evaluator_forward.1} parent=1 // pred_check_branch
      %89 = sbr.rel (0) target = $region33
    $region32: #{chess_evaluator_forward.1} parent=1 // pred_region
      %91 = vsyncadd [#allocation12], 0
      %s93 = sshll.u32 %s7, 4
      %s94 = int_to_ptr.hbm [resolvable:$true] %s93
      %s95 = sshll.u32 [#allocation11], 4
      %s96 = int_to_ptr.vmem [resolvable:$true] %s95
      %98 = dma.hbm_to_vmem [thread:$0]  %s94, 32, %s96, [#allocation12]
    $region33: #{chess_evaluator_forward.1} parent=1 // pred_fallthru
      _
    // Predicated region
    $region34: #{chess_evaluator_forward.1} parent=1 // pred_check
      _
    $region35: #{chess_evaluator_forward.1} parent=1 // pred_check_branch
      %100 = sbr.rel (0) target = $region37
    $region36: #{chess_evaluator_forward.1} parent=1 // pred_region
      _
    $region37: #{chess_evaluator_forward.1} parent=1 // pred_fallthru
      _
    // Predicated region
    $region38: #{chess_evaluator_forward.1} parent=1 // pred_check
      _
    $region39: #{chess_evaluator_forward.1} parent=1 // pred_check_branch
      %102 = sbr.rel (0) target = $region41
    $region40: #{chess_evaluator_forward.1} parent=1 // pred_region
      %104 = vsyncadd [#allocation12], 0
      %s106 = sshll.u32 %s9, 4
      %s107 = int_to_ptr.hbm [resolvable:$true] %s106
      %s108 = sshll.u32 [#allocation13], 4
      %s109 = int_to_ptr.vmem [resolvable:$true] %s108
      %111 = dma.hbm_to_vmem [thread:$0]  %s107, 16, %s109, [#allocation12]
    $region41: #{chess_evaluator_forward.1} parent=1 // pred_fallthru
      _
    // Predicated region
    $region42: #{chess_evaluator_forward.1} parent=1 // pred_check
      _
    $region43: #{chess_evaluator_forward.1} parent=1 // pred_check_branch
      %113 = sbr.rel (0) target = $region45
    $region44: #{chess_evaluator_forward.1} parent=1 // pred_region
      _
    $region45: #{chess_evaluator_forward.1} parent=1 // pred_fallthru
      _
    // Predicated region
    $region46: #{chess_evaluator_forward.1} parent=1 // pred_check
      _
    $region47: #{chess_evaluator_forward.1} parent=1 // pred_check_branch
      %115 = sbr.rel (0) target = $region49
    $region48: #{chess_evaluator_forward.1} parent=1 // pred_region
      _
    $region49: #{chess_evaluator_forward.1} parent=1 // pred_fallthru
      _
    // Predicated region
    $region50: #{chess_evaluator_forward.1} parent=1 // pred_check
      _
    $region51: #{chess_evaluator_forward.1} parent=1 // pred_check_branch
      %117 = sbr.rel (0) target = $region53
    $region52: #{chess_evaluator_forward.1} parent=1 // pred_region
      %119 = dma.done [#allocation4], 49152
    $region53: #{chess_evaluator_forward.1} parent=1 // pred_fallthru
      _
    // Predicated region
    $region54: #{chess_evaluator_forward.1} parent=1 // pred_check
      _
    $region55: #{chess_evaluator_forward.1} parent=1 // pred_check_branch
      %121 = sbr.rel (0) target = $region57
    $region56: #{chess_evaluator_forward.1} parent=1 // pred_region
      %123 = dma.done [#allocation6], 64
    $region57: #{chess_evaluator_forward.1} parent=1 // pred_fallthru
      _
    // Predicated region
    $region58: #{chess_evaluator_forward.1} parent=1 // pred_check
      _
    $region59: #{chess_evaluator_forward.1} parent=1 // pred_check_branch
      %125 = sbr.rel (0) target = $region61
    $region60: #{chess_evaluator_forward.1} parent=1 // pred_region
      %127 = dma.done [#allocation6], 32768
    $region61: #{chess_evaluator_forward.1} parent=1 // pred_fallthru
      _
    // Predicated region
    $region62: #{chess_evaluator_forward.1} parent=1 // pred_check
      _
    $region63: #{chess_evaluator_forward.1} parent=1 // pred_check_branch
      %129 = sbr.rel (0) target = $region65
    $region64: #{chess_evaluator_forward.1} parent=1 // pred_region
      %131 = dma.done [#allocation9], 32
    $region65: #{chess_evaluator_forward.1} parent=1 // pred_fallthru
      _
    // Predicated region
    $region66: #{chess_evaluator_forward.1} parent=1 // pred_check
      _
    $region67: #{chess_evaluator_forward.1} parent=1 // pred_check_branch
      %133 = sbr.rel (0) target = $region69
    $region68: #{chess_evaluator_forward.1} parent=1 // pred_region
      %135 = dma.done [#allocation9], 4224
    $region69: #{chess_evaluator_forward.1} parent=1 // pred_fallthru
      _
    // Predicated region
    $region70: #{chess_evaluator_forward.1} parent=1 // pred_check
      _
    $region71: #{chess_evaluator_forward.1} parent=1 // pred_check_branch
      %137 = sbr.rel (0) target = $region73
    $region72: #{chess_evaluator_forward.1} parent=1 // pred_region
      %139 = dma.done [#allocation12], 32
    $region73: #{chess_evaluator_forward.1} parent=1 // pred_fallthru
      _
    // Predicated region
    $region74: #{chess_evaluator_forward.1} parent=1 // pred_check
      _
    $region75: #{chess_evaluator_forward.1} parent=1 // pred_check_branch
      %141 = sbr.rel (0) target = $region77
    $region76: #{chess_evaluator_forward.1} parent=1 // pred_region
      %143 = dma.done [#allocation12], 16
    $region77: #{chess_evaluator_forward.1} parent=1 // pred_fallthru
      _
    %v145 = vld [vmem:[%s0] sm:$0xff]
    %v146 = vld [vmem:[%s0 + $0x8] sm:$0xf]
    %v147 = vld [vmem:[%s0 + $0xc] sm:$0xff]
    %v148 = vld [vmem:[%s0 + $0x14] sm:$0xf]
    %v149 = vld [vmem:[#allocation3] sm:$0xff]
    %v150 = vld [vmem:[#allocation3 + $0x8] sm:$0xff]
    %v151 = vld [vmem:[#allocation3 + $0x10] sm:$0xff]
    %v152 = vld [vmem:[#allocation3 + $0x18] sm:$0xff]
    %v153 = vld [vmem:[#allocation3 + $0x20] sm:$0xff]
    %v154 = vld [vmem:[#allocation3 + $0x28] sm:$0xff]
    %v155 = vld [vmem:[#allocation3 + $0x30] sm:$0xff]
    %v156 = vld [vmem:[#allocation3 + $0x38] sm:$0xff]
    %v157 = vld [vmem:[#allocation3 + $0x40] sm:$0xff]
    %v158 = vld [vmem:[#allocation3 + $0x48] sm:$0xff]
    %v159 = vld [vmem:[#allocation3 + $0x50] sm:$0xff]
    %v160 = vld [vmem:[#allocation3 + $0x58] sm:$0xff]
    %v161 = vld [vmem:[#allocation3 + $0x60] sm:$0xff]
    %v162 = vld [vmem:[#allocation3 + $0x68] sm:$0xff]
    %v163 = vld [vmem:[#allocation3 + $0x70] sm:$0xff]
    %v164 = vld [vmem:[#allocation3 + $0x78] sm:$0xff]
    %v165 = vld [vmem:[#allocation3 + $0x80] sm:$0xff]
    %v166 = vld [vmem:[#allocation3 + $0x88] sm:$0xff]
    %v167 = vld [vmem:[#allocation3 + $0x90] sm:$0xff]
    %v168 = vld [vmem:[#allocation3 + $0x98] sm:$0xff]
    %v169 = vld [vmem:[#allocation3 + $0xa0] sm:$0xff]
    %v170 = vld [vmem:[#allocation3 + $0xa8] sm:$0xff]
    %v171 = vld [vmem:[#allocation3 + $0xb0] sm:$0xff]
    %v172 = vld [vmem:[#allocation3 + $0xb8] sm:$0xff]
    %v173 = vld [vmem:[#allocation3 + $0xc0] sm:$0xff]
    %v174 = vld [vmem:[#allocation3 + $0xc8] sm:$0xff]
    %v175 = vld [vmem:[#allocation3 + $0xd0] sm:$0xff]
    %v176 = vld [vmem:[#allocation3 + $0xd8] sm:$0xff]
    %v177 = vld [vmem:[#allocation3 + $0xe0] sm:$0xff]
    %v178 = vld [vmem:[#allocation3 + $0xe8] sm:$0xff]
    %v179 = vld [vmem:[#allocation3 + $0xf0] sm:$0xff]
    %v180 = vld [vmem:[#allocation3 + $0xf8] sm:$0xff]
    %v181 = vld [vmem:[#allocation3 + $0x100] sm:$0xff]
    %v182 = vld [vmem:[#allocation3 + $0x108] sm:$0xff]
    %v183 = vld [vmem:[#allocation3 + $0x110] sm:$0xff]
    %v184 = vld [vmem:[#allocation3 + $0x118] sm:$0xff]
    %v185 = vld [vmem:[#allocation3 + $0x120] sm:$0xff]
    %v186 = vld [vmem:[#allocation3 + $0x128] sm:$0xff]
    %v187 = vld [vmem:[#allocation3 + $0x130] sm:$0xff]
    %v188 = vld [vmem:[#allocation3 + $0x138] sm:$0xff]
    %v189 = vld [vmem:[#allocation3 + $0x140] sm:$0xff]
    %v190 = vld [vmem:[#allocation3 + $0x148] sm:$0xff]
    %v191 = vld [vmem:[#allocation3 + $0x150] sm:$0xff]
    %v192 = vld [vmem:[#allocation3 + $0x158] sm:$0xff]
    %v193 = vld [vmem:[#allocation3 + $0x160] sm:$0xff]
    %v194 = vld [vmem:[#allocation3 + $0x168] sm:$0xff]
    %v195 = vld [vmem:[#allocation3 + $0x170] sm:$0xff]
    %v196 = vld [vmem:[#allocation3 + $0x178] sm:$0xff]
    %v197 = vld [vmem:[#allocation3 + $0x180] sm:$0xff]
    %v198 = vld [vmem:[#allocation3 + $0x188] sm:$0xff]
    %v199 = vld [vmem:[#allocation3 + $0x190] sm:$0xff]
    %v200 = vld [vmem:[#allocation3 + $0x198] sm:$0xff]
    %v201 = vld [vmem:[#allocation3 + $0x1a0] sm:$0xff]
    %v202 = vld [vmem:[#allocation3 + $0x1a8] sm:$0xff]
    %v203 = vld [vmem:[#allocation3 + $0x1b0] sm:$0xff]
    %v204 = vld [vmem:[#allocation3 + $0x1b8] sm:$0xff]
    %v205 = vld [vmem:[#allocation3 + $0x1c0] sm:$0xff]
    %v206 = vld [vmem:[#allocation3 + $0x1c8] sm:$0xff]
    %v207 = vld [vmem:[#allocation3 + $0x1d0] sm:$0xff]
    %v208 = vld [vmem:[#allocation3 + $0x1d8] sm:$0xff]
    %v209 = vld [vmem:[#allocation3 + $0x1e0] sm:$0xff]
    %v210 = vld [vmem:[#allocation3 + $0x1e8] sm:$0xff]
    %v211 = vld [vmem:[#allocation3 + $0x1f0] sm:$0xff]
    %v212 = vld [vmem:[#allocation3 + $0x1f8] sm:$0xff]
    %v213 = vld [vmem:[#allocation3 + $0x200] sm:$0xff]
    %v214 = vld [vmem:[#allocation3 + $0x208] sm:$0xff]
    %v215 = vld [vmem:[#allocation3 + $0x210] sm:$0xff]
    %v216 = vld [vmem:[#allocation3 + $0x218] sm:$0xff]
    %v217 = vld [vmem:[#allocation3 + $0x220] sm:$0xff]
    %v218 = vld [vmem:[#allocation3 + $0x228] sm:$0xff]
    %v219 = vld [vmem:[#allocation3 + $0x230] sm:$0xff]
    %v220 = vld [vmem:[#allocation3 + $0x238] sm:$0xff]
    %v221 = vld [vmem:[#allocation3 + $0x240] sm:$0xff]
    %v222 = vld [vmem:[#allocation3 + $0x248] sm:$0xff]
    %v223 = vld [vmem:[#allocation3 + $0x250] sm:$0xff]
    %v224 = vld [vmem:[#allocation3 + $0x258] sm:$0xff]
    %v225 = vld [vmem:[#allocation3 + $0x260] sm:$0xff]
    %v226 = vld [vmem:[#allocation3 + $0x268] sm:$0xff]
    %v227 = vld [vmem:[#allocation3 + $0x270] sm:$0xff]
    %v228 = vld [vmem:[#allocation3 + $0x278] sm:$0xff]
    %v229 = vld [vmem:[#allocation3 + $0x280] sm:$0xff]
    %v230 = vld [vmem:[#allocation3 + $0x288] sm:$0xff]
    %v231 = vld [vmem:[#allocation3 + $0x290] sm:$0xff]
    %v232 = vld [vmem:[#allocation3 + $0x298] sm:$0xff]
    %v233 = vld [vmem:[#allocation3 + $0x2a0] sm:$0xff]
    %v234 = vld [vmem:[#allocation3 + $0x2a8] sm:$0xff]
    %v235 = vld [vmem:[#allocation3 + $0x2b0] sm:$0xff]
    %v236 = vld [vmem:[#allocation3 + $0x2b8] sm:$0xff]
    %v237 = vld [vmem:[#allocation3 + $0x2c0] sm:$0xff]
    %v238 = vld [vmem:[#allocation3 + $0x2c8] sm:$0xff]
    %v239 = vld [vmem:[#allocation3 + $0x2d0] sm:$0xff]
    %v240 = vld [vmem:[#allocation3 + $0x2d8] sm:$0xff]
    %v241 = vld [vmem:[#allocation3 + $0x2e0] sm:$0xff]
    %v242 = vld [vmem:[#allocation3 + $0x2e8] sm:$0xff]
    %v243 = vld [vmem:[#allocation3 + $0x2f0] sm:$0xff]
    %v244 = vld [vmem:[#allocation3 + $0x2f8] sm:$0xff]
    %v245 = vld [vmem:[#allocation3 + $0x300] sm:$0xff]
    %v246 = vld [vmem:[#allocation3 + $0x308] sm:$0xff]
    %v247 = vld [vmem:[#allocation3 + $0x310] sm:$0xff]
    %v248 = vld [vmem:[#allocation3 + $0x318] sm:$0xff]
    %v249 = vld [vmem:[#allocation3 + $0x320] sm:$0xff]
    %v250 = vld [vmem:[#allocation3 + $0x328] sm:$0xff]
    %v251 = vld [vmem:[#allocation3 + $0x330] sm:$0xff]
    %v252 = vld [vmem:[#allocation3 + $0x338] sm:$0xff]
    %v253 = vld [vmem:[#allocation3 + $0x340] sm:$0xff]
    %v254 = vld [vmem:[#allocation3 + $0x348] sm:$0xff]
    %v255 = vld [vmem:[#allocation3 + $0x350] sm:$0xff]
    %v256 = vld [vmem:[#allocation3 + $0x358] sm:$0xff]
    %v257 = vld [vmem:[#allocation3 + $0x360] sm:$0xff]
    %v258 = vld [vmem:[#allocation3 + $0x368] sm:$0xff]
    %v259 = vld [vmem:[#allocation3 + $0x370] sm:$0xff]
    %v260 = vld [vmem:[#allocation3 + $0x378] sm:$0xff]
    %v261 = vld [vmem:[#allocation3 + $0x380] sm:$0xff]
    %v262 = vld [vmem:[#allocation3 + $0x388] sm:$0xff]
    %v263 = vld [vmem:[#allocation3 + $0x390] sm:$0xff]
    %v264 = vld [vmem:[#allocation3 + $0x398] sm:$0xff]
    %v265 = vld [vmem:[#allocation3 + $0x3a0] sm:$0xff]
    %v266 = vld [vmem:[#allocation3 + $0x3a8] sm:$0xff]
    %v267 = vld [vmem:[#allocation3 + $0x3b0] sm:$0xff]
    %v268 = vld [vmem:[#allocation3 + $0x3b8] sm:$0xff]
    %v269 = vld [vmem:[#allocation3 + $0x3c0] sm:$0xff]
    %v270 = vld [vmem:[#allocation3 + $0x3c8] sm:$0xff]
    %v271 = vld [vmem:[#allocation3 + $0x3d0] sm:$0xff]
    %v272 = vld [vmem:[#allocation3 + $0x3d8] sm:$0xff]
    %v273 = vld [vmem:[#allocation3 + $0x3e0] sm:$0xff]
    %v274 = vld [vmem:[#allocation3 + $0x3e8] sm:$0xff]
    %v275 = vld [vmem:[#allocation3 + $0x3f0] sm:$0xff]
    %v276 = vld [vmem:[#allocation3 + $0x3f8] sm:$0xff]
    %v277 = vld [vmem:[#allocation3 + $0x400] sm:$0xff]
    %v278 = vld [vmem:[#allocation3 + $0x408] sm:$0xff]
    %v279 = vld [vmem:[#allocation3 + $0x410] sm:$0xff]
    %v280 = vld [vmem:[#allocation3 + $0x418] sm:$0xff]
    %v281 = vld [vmem:[#allocation3 + $0x420] sm:$0xff]
    %v282 = vld [vmem:[#allocation3 + $0x428] sm:$0xff]
    %v283 = vld [vmem:[#allocation3 + $0x430] sm:$0xff]
    %v284 = vld [vmem:[#allocation3 + $0x438] sm:$0xff]
    %v285 = vld [vmem:[#allocation3 + $0x440] sm:$0xff]
    %v286 = vld [vmem:[#allocation3 + $0x448] sm:$0xff]
    %v287 = vld [vmem:[#allocation3 + $0x450] sm:$0xff]
    %v288 = vld [vmem:[#allocation3 + $0x458] sm:$0xff]
    %v289 = vld [vmem:[#allocation3 + $0x460] sm:$0xff]
    %v290 = vld [vmem:[#allocation3 + $0x468] sm:$0xff]
    %v291 = vld [vmem:[#allocation3 + $0x470] sm:$0xff]
    %v292 = vld [vmem:[#allocation3 + $0x478] sm:$0xff]
    %v293 = vld [vmem:[#allocation3 + $0x480] sm:$0xff]
    %v294 = vld [vmem:[#allocation3 + $0x488] sm:$0xff]
    %v295 = vld [vmem:[#allocation3 + $0x490] sm:$0xff]
    %v296 = vld [vmem:[#allocation3 + $0x498] sm:$0xff]
    %v297 = vld [vmem:[#allocation3 + $0x4a0] sm:$0xff]
    %v298 = vld [vmem:[#allocation3 + $0x4a8] sm:$0xff]
    %v299 = vld [vmem:[#allocation3 + $0x4b0] sm:$0xff]
    %v300 = vld [vmem:[#allocation3 + $0x4b8] sm:$0xff]
    %v301 = vld [vmem:[#allocation3 + $0x4c0] sm:$0xff]
    %v302 = vld [vmem:[#allocation3 + $0x4c8] sm:$0xff]
    %v303 = vld [vmem:[#allocation3 + $0x4d0] sm:$0xff]
    %v304 = vld [vmem:[#allocation3 + $0x4d8] sm:$0xff]
    %v305 = vld [vmem:[#allocation3 + $0x4e0] sm:$0xff]
    %v306 = vld [vmem:[#allocation3 + $0x4e8] sm:$0xff]
    %v307 = vld [vmem:[#allocation3 + $0x4f0] sm:$0xff]
    %v308 = vld [vmem:[#allocation3 + $0x4f8] sm:$0xff]
    %v309 = vld [vmem:[#allocation3 + $0x500] sm:$0xff]
    %v310 = vld [vmem:[#allocation3 + $0x508] sm:$0xff]
    %v311 = vld [vmem:[#allocation3 + $0x510] sm:$0xff]
    %v312 = vld [vmem:[#allocation3 + $0x518] sm:$0xff]
    %v313 = vld [vmem:[#allocation3 + $0x520] sm:$0xff]
    %v314 = vld [vmem:[#allocation3 + $0x528] sm:$0xff]
    %v315 = vld [vmem:[#allocation3 + $0x530] sm:$0xff]
    %v316 = vld [vmem:[#allocation3 + $0x538] sm:$0xff]
    %v317 = vld [vmem:[#allocation3 + $0x540] sm:$0xff]
    %v318 = vld [vmem:[#allocation3 + $0x548] sm:$0xff]
    %v319 = vld [vmem:[#allocation3 + $0x550] sm:$0xff]
    %v320 = vld [vmem:[#allocation3 + $0x558] sm:$0xff]
    %v321 = vld [vmem:[#allocation3 + $0x560] sm:$0xff]
    %v322 = vld [vmem:[#allocation3 + $0x568] sm:$0xff]
    %v323 = vld [vmem:[#allocation3 + $0x570] sm:$0xff]
    %v324 = vld [vmem:[#allocation3 + $0x578] sm:$0xff]
    %v325 = vld [vmem:[#allocation3 + $0x580] sm:$0xff]
    %v326 = vld [vmem:[#allocation3 + $0x588] sm:$0xff]
    %v327 = vld [vmem:[#allocation3 + $0x590] sm:$0xff]
    %v328 = vld [vmem:[#allocation3 + $0x598] sm:$0xff]
    %v329 = vld [vmem:[#allocation3 + $0x5a0] sm:$0xff]
    %v330 = vld [vmem:[#allocation3 + $0x5a8] sm:$0xff]
    %v331 = vld [vmem:[#allocation3 + $0x5b0] sm:$0xff]
    %v332 = vld [vmem:[#allocation3 + $0x5b8] sm:$0xff]
    %v333 = vld [vmem:[#allocation3 + $0x5c0] sm:$0xff]
    %v334 = vld [vmem:[#allocation3 + $0x5c8] sm:$0xff]
    %v335 = vld [vmem:[#allocation3 + $0x5d0] sm:$0xff]
    %v336 = vld [vmem:[#allocation3 + $0x5d8] sm:$0xff]
    %v337 = vld [vmem:[#allocation3 + $0x5e0] sm:$0xff]
    %v338 = vld [vmem:[#allocation3 + $0x5e8] sm:$0xff]
    %v339 = vld [vmem:[#allocation3 + $0x5f0] sm:$0xff]
    %v340 = vld [vmem:[#allocation3 + $0x5f8] sm:$0xff]
    %v341 = vld [vmem:[#allocation3 + $0x600] sm:$0xff]
    %v342 = vld [vmem:[#allocation3 + $0x608] sm:$0xff]
    %v343 = vld [vmem:[#allocation3 + $0x610] sm:$0xff]
    %v344 = vld [vmem:[#allocation3 + $0x618] sm:$0xff]
    %v345 = vld [vmem:[#allocation3 + $0x620] sm:$0xff]
    %v346 = vld [vmem:[#allocation3 + $0x628] sm:$0xff]
    %v347 = vld [vmem:[#allocation3 + $0x630] sm:$0xff]
    %v348 = vld [vmem:[#allocation3 + $0x638] sm:$0xff]
    %v349 = vld [vmem:[#allocation3 + $0x640] sm:$0xff]
    %v350 = vld [vmem:[#allocation3 + $0x648] sm:$0xff]
    %v351 = vld [vmem:[#allocation3 + $0x650] sm:$0xff]
    %v352 = vld [vmem:[#allocation3 + $0x658] sm:$0xff]
    %v353 = vld [vmem:[#allocation3 + $0x660] sm:$0xff]
    %v354 = vld [vmem:[#allocation3 + $0x668] sm:$0xff]
    %v355 = vld [vmem:[#allocation3 + $0x670] sm:$0xff]
    %v356 = vld [vmem:[#allocation3 + $0x678] sm:$0xff]
    %v357 = vld [vmem:[#allocation3 + $0x680] sm:$0xff]
    %v358 = vld [vmem:[#allocation3 + $0x688] sm:$0xff]
    %v359 = vld [vmem:[#allocation3 + $0x690] sm:$0xff]
    %v360 = vld [vmem:[#allocation3 + $0x698] sm:$0xff]
    %v361 = vld [vmem:[#allocation3 + $0x6a0] sm:$0xff]
    %v362 = vld [vmem:[#allocation3 + $0x6a8] sm:$0xff]
    %v363 = vld [vmem:[#allocation3 + $0x6b0] sm:$0xff]
    %v364 = vld [vmem:[#allocation3 + $0x6b8] sm:$0xff]
    %v365 = vld [vmem:[#allocation3 + $0x6c0] sm:$0xff]
    %v366 = vld [vmem:[#allocation3 + $0x6c8] sm:$0xff]
    %v367 = vld [vmem:[#allocation3 + $0x6d0] sm:$0xff]
    %v368 = vld [vmem:[#allocation3 + $0x6d8] sm:$0xff]
    %v369 = vld [vmem:[#allocation3 + $0x6e0] sm:$0xff]
    %v370 = vld [vmem:[#allocation3 + $0x6e8] sm:$0xff]
    %v371 = vld [vmem:[#allocation3 + $0x6f0] sm:$0xff]
    %v372 = vld [vmem:[#allocation3 + $0x6f8] sm:$0xff]
    %v373 = vld [vmem:[#allocation3 + $0x700] sm:$0xff]
    %v374 = vld [vmem:[#allocation3 + $0x708] sm:$0xff]
    %v375 = vld [vmem:[#allocation3 + $0x710] sm:$0xff]
    %v376 = vld [vmem:[#allocation3 + $0x718] sm:$0xff]
    %v377 = vld [vmem:[#allocation3 + $0x720] sm:$0xff]
    %v378 = vld [vmem:[#allocation3 + $0x728] sm:$0xff]
    %v379 = vld [vmem:[#allocation3 + $0x730] sm:$0xff]
    %v380 = vld [vmem:[#allocation3 + $0x738] sm:$0xff]
    %v381 = vld [vmem:[#allocation3 + $0x740] sm:$0xff]
    %v382 = vld [vmem:[#allocation3 + $0x748] sm:$0xff]
    %v383 = vld [vmem:[#allocation3 + $0x750] sm:$0xff]
    %v384 = vld [vmem:[#allocation3 + $0x758] sm:$0xff]
    %v385 = vld [vmem:[#allocation3 + $0x760] sm:$0xff]
    %v386 = vld [vmem:[#allocation3 + $0x768] sm:$0xff]
    %v387 = vld [vmem:[#allocation3 + $0x770] sm:$0xff]
    %v388 = vld [vmem:[#allocation3 + $0x778] sm:$0xff]
    %v389 = vld [vmem:[#allocation3 + $0x780] sm:$0xff]
    %v390 = vld [vmem:[#allocation3 + $0x788] sm:$0xff]
    %v391 = vld [vmem:[#allocation3 + $0x790] sm:$0xff]
    %v392 = vld [vmem:[#allocation3 + $0x798] sm:$0xff]
    %v393 = vld [vmem:[#allocation3 + $0x7a0] sm:$0xff]
    %v394 = vld [vmem:[#allocation3 + $0x7a8] sm:$0xff]
    %v395 = vld [vmem:[#allocation3 + $0x7b0] sm:$0xff]
    %v396 = vld [vmem:[#allocation3 + $0x7b8] sm:$0xff]
    %v397 = vld [vmem:[#allocation3 + $0x7c0] sm:$0xff]
    %v398 = vld [vmem:[#allocation3 + $0x7c8] sm:$0xff]
    %v399 = vld [vmem:[#allocation3 + $0x7d0] sm:$0xff]
    %v400 = vld [vmem:[#allocation3 + $0x7d8] sm:$0xff]
    %v401 = vld [vmem:[#allocation3 + $0x7e0] sm:$0xff]
    %v402 = vld [vmem:[#allocation3 + $0x7e8] sm:$0xff]
    %v403 = vld [vmem:[#allocation3 + $0x7f0] sm:$0xff]
    %v404 = vld [vmem:[#allocation3 + $0x7f8] sm:$0xff]
    %v405 = vld [vmem:[#allocation3 + $0x800] sm:$0xff]
    %v406 = vld [vmem:[#allocation3 + $0x808] sm:$0xff]
    %v407 = vld [vmem:[#allocation3 + $0x810] sm:$0xff]
    %v408 = vld [vmem:[#allocation3 + $0x818] sm:$0xff]
    %v409 = vld [vmem:[#allocation3 + $0x820] sm:$0xff]
    %v410 = vld [vmem:[#allocation3 + $0x828] sm:$0xff]
    %v411 = vld [vmem:[#allocation3 + $0x830] sm:$0xff]
    %v412 = vld [vmem:[#allocation3 + $0x838] sm:$0xff]
    %v413 = vld [vmem:[#allocation3 + $0x840] sm:$0xff]
    %v414 = vld [vmem:[#allocation3 + $0x848] sm:$0xff]
    %v415 = vld [vmem:[#allocation3 + $0x850] sm:$0xff]
    %v416 = vld [vmem:[#allocation3 + $0x858] sm:$0xff]
    %v417 = vld [vmem:[#allocation3 + $0x860] sm:$0xff]
    %v418 = vld [vmem:[#allocation3 + $0x868] sm:$0xff]
    %v419 = vld [vmem:[#allocation3 + $0x870] sm:$0xff]
    %v420 = vld [vmem:[#allocation3 + $0x878] sm:$0xff]
    %v421 = vld [vmem:[#allocation3 + $0x880] sm:$0xff]
    %v422 = vld [vmem:[#allocation3 + $0x888] sm:$0xff]
    %v423 = vld [vmem:[#allocation3 + $0x890] sm:$0xff]
    %v424 = vld [vmem:[#allocation3 + $0x898] sm:$0xff]
    %v425 = vld [vmem:[#allocation3 + $0x8a0] sm:$0xff]
    %v426 = vld [vmem:[#allocation3 + $0x8a8] sm:$0xff]
    %v427 = vld [vmem:[#allocation3 + $0x8b0] sm:$0xff]
    %v428 = vld [vmem:[#allocation3 + $0x8b8] sm:$0xff]
    %v429 = vld [vmem:[#allocation3 + $0x8c0] sm:$0xff]
    %v430 = vld [vmem:[#allocation3 + $0x8c8] sm:$0xff]
    %v431 = vld [vmem:[#allocation3 + $0x8d0] sm:$0xff]
    %v432 = vld [vmem:[#allocation3 + $0x8d8] sm:$0xff]
    %v433 = vld [vmem:[#allocation3 + $0x8e0] sm:$0xff]
    %v434 = vld [vmem:[#allocation3 + $0x8e8] sm:$0xff]
    %v435 = vld [vmem:[#allocation3 + $0x8f0] sm:$0xff]
    %v436 = vld [vmem:[#allocation3 + $0x8f8] sm:$0xff]
    %v437 = vld [vmem:[#allocation3 + $0x900] sm:$0xff]
    %v438 = vld [vmem:[#allocation3 + $0x908] sm:$0xff]
    %v439 = vld [vmem:[#allocation3 + $0x910] sm:$0xff]
    %v440 = vld [vmem:[#allocation3 + $0x918] sm:$0xff]
    %v441 = vld [vmem:[#allocation3 + $0x920] sm:$0xff]
    %v442 = vld [vmem:[#allocation3 + $0x928] sm:$0xff]
    %v443 = vld [vmem:[#allocation3 + $0x930] sm:$0xff]
    %v444 = vld [vmem:[#allocation3 + $0x938] sm:$0xff]
    %v445 = vld [vmem:[#allocation3 + $0x940] sm:$0xff]
    %v446 = vld [vmem:[#allocation3 + $0x948] sm:$0xff]
    %v447 = vld [vmem:[#allocation3 + $0x950] sm:$0xff]
    %v448 = vld [vmem:[#allocation3 + $0x958] sm:$0xff]
    %v449 = vld [vmem:[#allocation3 + $0x960] sm:$0xff]
    %v450 = vld [vmem:[#allocation3 + $0x968] sm:$0xff]
    %v451 = vld [vmem:[#allocation3 + $0x970] sm:$0xff]
    %v452 = vld [vmem:[#allocation3 + $0x978] sm:$0xff]
    %v453 = vld [vmem:[#allocation3 + $0x980] sm:$0xff]
    %v454 = vld [vmem:[#allocation3 + $0x988] sm:$0xff]
    %v455 = vld [vmem:[#allocation3 + $0x990] sm:$0xff]
    %v456 = vld [vmem:[#allocation3 + $0x998] sm:$0xff]
    %v457 = vld [vmem:[#allocation3 + $0x9a0] sm:$0xff]
    %v458 = vld [vmem:[#allocation3 + $0x9a8] sm:$0xff]
    %v459 = vld [vmem:[#allocation3 + $0x9b0] sm:$0xff]
    %v460 = vld [vmem:[#allocation3 + $0x9b8] sm:$0xff]
    %v461 = vld [vmem:[#allocation3 + $0x9c0] sm:$0xff]
    %v462 = vld [vmem:[#allocation3 + $0x9c8] sm:$0xff]
    %v463 = vld [vmem:[#allocation3 + $0x9d0] sm:$0xff]
    %v464 = vld [vmem:[#allocation3 + $0x9d8] sm:$0xff]
    %v465 = vld [vmem:[#allocation3 + $0x9e0] sm:$0xff]
    %v466 = vld [vmem:[#allocation3 + $0x9e8] sm:$0xff]
    %v467 = vld [vmem:[#allocation3 + $0x9f0] sm:$0xff]
    %v468 = vld [vmem:[#allocation3 + $0x9f8] sm:$0xff]
    %v469 = vld [vmem:[#allocation3 + $0xa00] sm:$0xff]
    %v470 = vld [vmem:[#allocation3 + $0xa08] sm:$0xff]
    %v471 = vld [vmem:[#allocation3 + $0xa10] sm:$0xff]
    %v472 = vld [vmem:[#allocation3 + $0xa18] sm:$0xff]
    %v473 = vld [vmem:[#allocation3 + $0xa20] sm:$0xff]
    %v474 = vld [vmem:[#allocation3 + $0xa28] sm:$0xff]
    %v475 = vld [vmem:[#allocation3 + $0xa30] sm:$0xff]
    %v476 = vld [vmem:[#allocation3 + $0xa38] sm:$0xff]
    %v477 = vld [vmem:[#allocation3 + $0xa40] sm:$0xff]
    %v478 = vld [vmem:[#allocation3 + $0xa48] sm:$0xff]
    %v479 = vld [vmem:[#allocation3 + $0xa50] sm:$0xff]
    %v480 = vld [vmem:[#allocation3 + $0xa58] sm:$0xff]
    %v481 = vld [vmem:[#allocation3 + $0xa60] sm:$0xff]
    %v482 = vld [vmem:[#allocation3 + $0xa68] sm:$0xff]
    %v483 = vld [vmem:[#allocation3 + $0xa70] sm:$0xff]
    %v484 = vld [vmem:[#allocation3 + $0xa78] sm:$0xff]
    %v485 = vld [vmem:[#allocation3 + $0xa80] sm:$0xff]
    %v486 = vld [vmem:[#allocation3 + $0xa88] sm:$0xff]
    %v487 = vld [vmem:[#allocation3 + $0xa90] sm:$0xff]
    %v488 = vld [vmem:[#allocation3 + $0xa98] sm:$0xff]
    %v489 = vld [vmem:[#allocation3 + $0xaa0] sm:$0xff]
    %v490 = vld [vmem:[#allocation3 + $0xaa8] sm:$0xff]
    %v491 = vld [vmem:[#allocation3 + $0xab0] sm:$0xff]
    %v492 = vld [vmem:[#allocation3 + $0xab8] sm:$0xff]
    %v493 = vld [vmem:[#allocation3 + $0xac0] sm:$0xff]
    %v494 = vld [vmem:[#allocation3 + $0xac8] sm:$0xff]
    %v495 = vld [vmem:[#allocation3 + $0xad0] sm:$0xff]
    %v496 = vld [vmem:[#allocation3 + $0xad8] sm:$0xff]
    %v497 = vld [vmem:[#allocation3 + $0xae0] sm:$0xff]
    %v498 = vld [vmem:[#allocation3 + $0xae8] sm:$0xff]
    %v499 = vld [vmem:[#allocation3 + $0xaf0] sm:$0xff]
    %v500 = vld [vmem:[#allocation3 + $0xaf8] sm:$0xff]
    %v501 = vld [vmem:[#allocation3 + $0xb00] sm:$0xff]
    %v502 = vld [vmem:[#allocation3 + $0xb08] sm:$0xff]
    %v503 = vld [vmem:[#allocation3 + $0xb10] sm:$0xff]
    %v504 = vld [vmem:[#allocation3 + $0xb18] sm:$0xff]
    %v505 = vld [vmem:[#allocation3 + $0xb20] sm:$0xff]
    %v506 = vld [vmem:[#allocation3 + $0xb28] sm:$0xff]
    %v507 = vld [vmem:[#allocation3 + $0xb30] sm:$0xff]
    %v508 = vld [vmem:[#allocation3 + $0xb38] sm:$0xff]
    %v509 = vld [vmem:[#allocation3 + $0xb40] sm:$0xff]
    %v510 = vld [vmem:[#allocation3 + $0xb48] sm:$0xff]
    %v511 = vld [vmem:[#allocation3 + $0xb50] sm:$0xff]
    %v512 = vld [vmem:[#allocation3 + $0xb58] sm:$0xff]
    %v513 = vld [vmem:[#allocation3 + $0xb60] sm:$0xff]
    %v514 = vld [vmem:[#allocation3 + $0xb68] sm:$0xff]
    %v515 = vld [vmem:[#allocation3 + $0xb70] sm:$0xff]
    %v516 = vld [vmem:[#allocation3 + $0xb78] sm:$0xff]
    %v517 = vld [vmem:[#allocation3 + $0xb80] sm:$0xff]
    %v518 = vld [vmem:[#allocation3 + $0xb88] sm:$0xff]
    %v519 = vld [vmem:[#allocation3 + $0xb90] sm:$0xff]
    %v520 = vld [vmem:[#allocation3 + $0xb98] sm:$0xff]
    %v521 = vld [vmem:[#allocation3 + $0xba0] sm:$0xff]
    %v522 = vld [vmem:[#allocation3 + $0xba8] sm:$0xff]
    %v523 = vld [vmem:[#allocation3 + $0xbb0] sm:$0xff]
    %v524 = vld [vmem:[#allocation3 + $0xbb8] sm:$0xff]
    %v525 = vld [vmem:[#allocation3 + $0xbc0] sm:$0xff]
    %v526 = vld [vmem:[#allocation3 + $0xbc8] sm:$0xff]
    %v527 = vld [vmem:[#allocation3 + $0xbd0] sm:$0xff]
    %v528 = vld [vmem:[#allocation3 + $0xbd8] sm:$0xff]
    %v529 = vld [vmem:[#allocation3 + $0xbe0] sm:$0xff]
    %v530 = vld [vmem:[#allocation3 + $0xbe8] sm:$0xff]
    %v531 = vld [vmem:[#allocation3 + $0xbf0] sm:$0xff]
    %v532 = vld [vmem:[#allocation3 + $0xbf8] sm:$0xff]
    %v537 = vunpack.c.l.b16 %v145
    %v538 = vunpack.c.h.b16 %v145
    %v539 = vunpack.c.l.b16 %v146
    %v540 = vunpack.c.l.b16 %v147
    %v541 = vunpack.c.h.b16 %v147
    %v542 = vunpack.c.l.b16 %v148
    %v543 = vpack.c.b16 %v540, %v537
    %v544 = vpack.c.b16 %v541, %v538
    %v545 = vpack.c.b16 %v542, %v539
    %v933 = vunpack.c.l.b16 %v149
    %v934 = vunpack.c.h.b16 %v149
    %v935 = vunpack.c.l.b16 %v150
    %v936 = vunpack.c.h.b16 %v150
    %v937 = vunpack.c.l.b16 %v151
    %v938 = vunpack.c.h.b16 %v151
    %v939 = vunpack.c.l.b16 %v152
    %v940 = vunpack.c.h.b16 %v152
    %v941 = vunpack.c.l.b16 %v153
    %v942 = vunpack.c.h.b16 %v153
    %v943 = vunpack.c.l.b16 %v154
    %v944 = vunpack.c.h.b16 %v154
    %v945 = vunpack.c.l.b16 %v155
    %v946 = vunpack.c.h.b16 %v155
    %v947 = vunpack.c.l.b16 %v156
    %v948 = vunpack.c.h.b16 %v156
    %v949 = vunpack.c.l.b16 %v157
    %v950 = vunpack.c.h.b16 %v157
    %v951 = vunpack.c.l.b16 %v158
    %v952 = vunpack.c.h.b16 %v158
    %v953 = vunpack.c.l.b16 %v159
    %v954 = vunpack.c.h.b16 %v159
    %v955 = vunpack.c.l.b16 %v160
    %v956 = vunpack.c.h.b16 %v160
    %v957 = vunpack.c.l.b16 %v161
    %v958 = vunpack.c.h.b16 %v161
    %v959 = vunpack.c.l.b16 %v162
    %v960 = vunpack.c.h.b16 %v162
    %v961 = vunpack.c.l.b16 %v163
    %v962 = vunpack.c.h.b16 %v163
    %v963 = vunpack.c.l.b16 %v164
    %v964 = vunpack.c.h.b16 %v164
    %v965 = vunpack.c.l.b16 %v165
    %v966 = vunpack.c.h.b16 %v165
    %v967 = vunpack.c.l.b16 %v166
    %v968 = vunpack.c.h.b16 %v166
    %v969 = vunpack.c.l.b16 %v167
    %v970 = vunpack.c.h.b16 %v167
    %v971 = vunpack.c.l.b16 %v168
    %v972 = vunpack.c.h.b16 %v168
    %v973 = vunpack.c.l.b16 %v169
    %v974 = vunpack.c.h.b16 %v169
    %v975 = vunpack.c.l.b16 %v170
    %v976 = vunpack.c.h.b16 %v170
    %v977 = vunpack.c.l.b16 %v171
    %v978 = vunpack.c.h.b16 %v171
    %v979 = vunpack.c.l.b16 %v172
    %v980 = vunpack.c.h.b16 %v172
    %v981 = vunpack.c.l.b16 %v173
    %v982 = vunpack.c.h.b16 %v173
    %v983 = vunpack.c.l.b16 %v174
    %v984 = vunpack.c.h.b16 %v174
    %v985 = vunpack.c.l.b16 %v175
    %v986 = vunpack.c.h.b16 %v175
    %v987 = vunpack.c.l.b16 %v176
    %v988 = vunpack.c.h.b16 %v176
    %v989 = vunpack.c.l.b16 %v177
    %v990 = vunpack.c.h.b16 %v177
    %v991 = vunpack.c.l.b16 %v178
    %v992 = vunpack.c.h.b16 %v178
    %v993 = vunpack.c.l.b16 %v179
    %v994 = vunpack.c.h.b16 %v179
    %v995 = vunpack.c.l.b16 %v180
    %v996 = vunpack.c.h.b16 %v180
    %v997 = vunpack.c.l.b16 %v181
    %v998 = vunpack.c.h.b16 %v181
    %v999 = vunpack.c.l.b16 %v182
    %v1000 = vunpack.c.h.b16 %v182
    %v1001 = vunpack.c.l.b16 %v183
    %v1002 = vunpack.c.h.b16 %v183
    %v1003 = vunpack.c.l.b16 %v184
    %v1004 = vunpack.c.h.b16 %v184
    %v1005 = vunpack.c.l.b16 %v185
    %v1006 = vunpack.c.h.b16 %v185
    %v1007 = vunpack.c.l.b16 %v186
    %v1008 = vunpack.c.h.b16 %v186
    %v1009 = vunpack.c.l.b16 %v187
    %v1010 = vunpack.c.h.b16 %v187
    %v1011 = vunpack.c.l.b16 %v188
    %v1012 = vunpack.c.h.b16 %v188
    %v1013 = vunpack.c.l.b16 %v189
    %v1014 = vunpack.c.h.b16 %v189
    %v1015 = vunpack.c.l.b16 %v190
    %v1016 = vunpack.c.h.b16 %v190
    %v1017 = vunpack.c.l.b16 %v191
    %v1018 = vunpack.c.h.b16 %v191
    %v1019 = vunpack.c.l.b16 %v192
    %v1020 = vunpack.c.h.b16 %v192
    %v1021 = vunpack.c.l.b16 %v193
    %v1022 = vunpack.c.h.b16 %v193
    %v1023 = vunpack.c.l.b16 %v194
    %v1024 = vunpack.c.h.b16 %v194
    %v1025 = vunpack.c.l.b16 %v195
    %v1026 = vunpack.c.h.b16 %v195
    %v1027 = vunpack.c.l.b16 %v196
    %v1028 = vunpack.c.h.b16 %v196
    %v1029 = vunpack.c.l.b16 %v197
    %v1030 = vunpack.c.h.b16 %v197
    %v1031 = vunpack.c.l.b16 %v198
    %v1032 = vunpack.c.h.b16 %v198
    %v1033 = vunpack.c.l.b16 %v199
    %v1034 = vunpack.c.h.b16 %v199
    %v1035 = vunpack.c.l.b16 %v200
    %v1036 = vunpack.c.h.b16 %v200
    %v1037 = vunpack.c.l.b16 %v201
    %v1038 = vunpack.c.h.b16 %v201
    %v1039 = vunpack.c.l.b16 %v202
    %v1040 = vunpack.c.h.b16 %v202
    %v1041 = vunpack.c.l.b16 %v203
    %v1042 = vunpack.c.h.b16 %v203
    %v1043 = vunpack.c.l.b16 %v204
    %v1044 = vunpack.c.h.b16 %v204
    %v1045 = vunpack.c.l.b16 %v205
    %v1046 = vunpack.c.h.b16 %v205
    %v1047 = vunpack.c.l.b16 %v206
    %v1048 = vunpack.c.h.b16 %v206
    %v1049 = vunpack.c.l.b16 %v207
    %v1050 = vunpack.c.h.b16 %v207
    %v1051 = vunpack.c.l.b16 %v208
    %v1052 = vunpack.c.h.b16 %v208
    %v1053 = vunpack.c.l.b16 %v209
    %v1054 = vunpack.c.h.b16 %v209
    %v1055 = vunpack.c.l.b16 %v210
    %v1056 = vunpack.c.h.b16 %v210
    %v1057 = vunpack.c.l.b16 %v211
    %v1058 = vunpack.c.h.b16 %v211
    %v1059 = vunpack.c.l.b16 %v212
    %v1060 = vunpack.c.h.b16 %v212
    %v1061 = vunpack.c.l.b16 %v213
    %v1062 = vunpack.c.h.b16 %v213
    %v1063 = vunpack.c.l.b16 %v214
    %v1064 = vunpack.c.h.b16 %v214
    %v1065 = vunpack.c.l.b16 %v215
    %v1066 = vunpack.c.h.b16 %v215
    %v1067 = vunpack.c.l.b16 %v216
    %v1068 = vunpack.c.h.b16 %v216
    %v1069 = vunpack.c.l.b16 %v217
    %v1070 = vunpack.c.h.b16 %v217
    %v1071 = vunpack.c.l.b16 %v218
    %v1072 = vunpack.c.h.b16 %v218
    %v1073 = vunpack.c.l.b16 %v219
    %v1074 = vunpack.c.h.b16 %v219
    %v1075 = vunpack.c.l.b16 %v220
    %v1076 = vunpack.c.h.b16 %v220
    %v1077 = vunpack.c.l.b16 %v221
    %v1078 = vunpack.c.h.b16 %v221
    %v1079 = vunpack.c.l.b16 %v222
    %v1080 = vunpack.c.h.b16 %v222
    %v1081 = vunpack.c.l.b16 %v223
    %v1082 = vunpack.c.h.b16 %v223
    %v1083 = vunpack.c.l.b16 %v224
    %v1084 = vunpack.c.h.b16 %v224
    %v1085 = vunpack.c.l.b16 %v225
    %v1086 = vunpack.c.h.b16 %v225
    %v1087 = vunpack.c.l.b16 %v226
    %v1088 = vunpack.c.h.b16 %v226
    %v1089 = vunpack.c.l.b16 %v227
    %v1090 = vunpack.c.h.b16 %v227
    %v1091 = vunpack.c.l.b16 %v228
    %v1092 = vunpack.c.h.b16 %v228
    %v1093 = vunpack.c.l.b16 %v229
    %v1094 = vunpack.c.h.b16 %v229
    %v1095 = vunpack.c.l.b16 %v230
    %v1096 = vunpack.c.h.b16 %v230
    %v1097 = vunpack.c.l.b16 %v231
    %v1098 = vunpack.c.h.b16 %v231
    %v1099 = vunpack.c.l.b16 %v232
    %v1100 = vunpack.c.h.b16 %v232
    %v1101 = vunpack.c.l.b16 %v233
    %v1102 = vunpack.c.h.b16 %v233
    %v1103 = vunpack.c.l.b16 %v234
    %v1104 = vunpack.c.h.b16 %v234
    %v1105 = vunpack.c.l.b16 %v235
    %v1106 = vunpack.c.h.b16 %v235
    %v1107 = vunpack.c.l.b16 %v236
    %v1108 = vunpack.c.h.b16 %v236
    %v1109 = vunpack.c.l.b16 %v237
    %v1110 = vunpack.c.h.b16 %v237
    %v1111 = vunpack.c.l.b16 %v238
    %v1112 = vunpack.c.h.b16 %v238
    %v1113 = vunpack.c.l.b16 %v239
    %v1114 = vunpack.c.h.b16 %v239
    %v1115 = vunpack.c.l.b16 %v240
    %v1116 = vunpack.c.h.b16 %v240
    %v1117 = vunpack.c.l.b16 %v241
    %v1118 = vunpack.c.h.b16 %v241
    %v1119 = vunpack.c.l.b16 %v242
    %v1120 = vunpack.c.h.b16 %v242
    %v1121 = vunpack.c.l.b16 %v243
    %v1122 = vunpack.c.h.b16 %v243
    %v1123 = vunpack.c.l.b16 %v244
    %v1124 = vunpack.c.h.b16 %v244
    %v1125 = vunpack.c.l.b16 %v245
    %v1126 = vunpack.c.h.b16 %v245
    %v1127 = vunpack.c.l.b16 %v246
    %v1128 = vunpack.c.h.b16 %v246
    %v1129 = vunpack.c.l.b16 %v247
    %v1130 = vunpack.c.h.b16 %v247
    %v1131 = vunpack.c.l.b16 %v248
    %v1132 = vunpack.c.h.b16 %v248
    %v1133 = vunpack.c.l.b16 %v249
    %v1134 = vunpack.c.h.b16 %v249
    %v1135 = vunpack.c.l.b16 %v250
    %v1136 = vunpack.c.h.b16 %v250
    %v1137 = vunpack.c.l.b16 %v251
    %v1138 = vunpack.c.h.b16 %v251
    %v1139 = vunpack.c.l.b16 %v252
    %v1140 = vunpack.c.h.b16 %v252
    %v1141 = vunpack.c.l.b16 %v253
    %v1142 = vunpack.c.h.b16 %v253
    %v1143 = vunpack.c.l.b16 %v254
    %v1144 = vunpack.c.h.b16 %v254
    %v1145 = vunpack.c.l.b16 %v255
    %v1146 = vunpack.c.h.b16 %v255
    %v1147 = vunpack.c.l.b16 %v256
    %v1148 = vunpack.c.h.b16 %v256
    %v1149 = vunpack.c.l.b16 %v257
    %v1150 = vunpack.c.h.b16 %v257
    %v1151 = vunpack.c.l.b16 %v258
    %v1152 = vunpack.c.h.b16 %v258
    %v1153 = vunpack.c.l.b16 %v259
    %v1154 = vunpack.c.h.b16 %v259
    %v1155 = vunpack.c.l.b16 %v260
    %v1156 = vunpack.c.h.b16 %v260
    %v1157 = vunpack.c.l.b16 %v261
    %v1158 = vunpack.c.h.b16 %v261
    %v1159 = vunpack.c.l.b16 %v262
    %v1160 = vunpack.c.h.b16 %v262
    %v1161 = vunpack.c.l.b16 %v263
    %v1162 = vunpack.c.h.b16 %v263
    %v1163 = vunpack.c.l.b16 %v264
    %v1164 = vunpack.c.h.b16 %v264
    %v1165 = vunpack.c.l.b16 %v265
    %v1166 = vunpack.c.h.b16 %v265
    %v1167 = vunpack.c.l.b16 %v266
    %v1168 = vunpack.c.h.b16 %v266
    %v1169 = vunpack.c.l.b16 %v267
    %v1170 = vunpack.c.h.b16 %v267
    %v1171 = vunpack.c.l.b16 %v268
    %v1172 = vunpack.c.h.b16 %v268
    %v1173 = vunpack.c.l.b16 %v269
    %v1174 = vunpack.c.h.b16 %v269
    %v1175 = vunpack.c.l.b16 %v270
    %v1176 = vunpack.c.h.b16 %v270
    %v1177 = vunpack.c.l.b16 %v271
    %v1178 = vunpack.c.h.b16 %v271
    %v1179 = vunpack.c.l.b16 %v272
    %v1180 = vunpack.c.h.b16 %v272
    %v1181 = vunpack.c.l.b16 %v273
    %v1182 = vunpack.c.h.b16 %v273
    %v1183 = vunpack.c.l.b16 %v274
    %v1184 = vunpack.c.h.b16 %v274
    %v1185 = vunpack.c.l.b16 %v275
    %v1186 = vunpack.c.h.b16 %v275
    %v1187 = vunpack.c.l.b16 %v276
    %v1188 = vunpack.c.h.b16 %v276
    %v1189 = vunpack.c.l.b16 %v277
    %v1190 = vunpack.c.h.b16 %v277
    %v1191 = vunpack.c.l.b16 %v278
    %v1192 = vunpack.c.h.b16 %v278
    %v1193 = vunpack.c.l.b16 %v279
    %v1194 = vunpack.c.h.b16 %v279
    %v1195 = vunpack.c.l.b16 %v280
    %v1196 = vunpack.c.h.b16 %v280
    %v1197 = vunpack.c.l.b16 %v281
    %v1198 = vunpack.c.h.b16 %v281
    %v1199 = vunpack.c.l.b16 %v282
    %v1200 = vunpack.c.h.b16 %v282
    %v1201 = vunpack.c.l.b16 %v283
    %v1202 = vunpack.c.h.b16 %v283
    %v1203 = vunpack.c.l.b16 %v284
    %v1204 = vunpack.c.h.b16 %v284
    %v1205 = vunpack.c.l.b16 %v285
    %v1206 = vunpack.c.h.b16 %v285
    %v1207 = vunpack.c.l.b16 %v286
    %v1208 = vunpack.c.h.b16 %v286
    %v1209 = vunpack.c.l.b16 %v287
    %v1210 = vunpack.c.h.b16 %v287
    %v1211 = vunpack.c.l.b16 %v288
    %v1212 = vunpack.c.h.b16 %v288
    %v1213 = vunpack.c.l.b16 %v289
    %v1214 = vunpack.c.h.b16 %v289
    %v1215 = vunpack.c.l.b16 %v290
    %v1216 = vunpack.c.h.b16 %v290
    %v1217 = vunpack.c.l.b16 %v291
    %v1218 = vunpack.c.h.b16 %v291
    %v1219 = vunpack.c.l.b16 %v292
    %v1220 = vunpack.c.h.b16 %v292
    %v1221 = vunpack.c.l.b16 %v293
    %v1222 = vunpack.c.h.b16 %v293
    %v1223 = vunpack.c.l.b16 %v294
    %v1224 = vunpack.c.h.b16 %v294
    %v1225 = vunpack.c.l.b16 %v295
    %v1226 = vunpack.c.h.b16 %v295
    %v1227 = vunpack.c.l.b16 %v296
    %v1228 = vunpack.c.h.b16 %v296
    %v1229 = vunpack.c.l.b16 %v297
    %v1230 = vunpack.c.h.b16 %v297
    %v1231 = vunpack.c.l.b16 %v298
    %v1232 = vunpack.c.h.b16 %v298
    %v1233 = vunpack.c.l.b16 %v299
    %v1234 = vunpack.c.h.b16 %v299
    %v1235 = vunpack.c.l.b16 %v300
    %v1236 = vunpack.c.h.b16 %v300
    %v1237 = vunpack.c.l.b16 %v301
    %v1238 = vunpack.c.h.b16 %v301
    %v1239 = vunpack.c.l.b16 %v302
    %v1240 = vunpack.c.h.b16 %v302
    %v1241 = vunpack.c.l.b16 %v303
    %v1242 = vunpack.c.h.b16 %v303
    %v1243 = vunpack.c.l.b16 %v304
    %v1244 = vunpack.c.h.b16 %v304
    %v1245 = vunpack.c.l.b16 %v305
    %v1246 = vunpack.c.h.b16 %v305
    %v1247 = vunpack.c.l.b16 %v306
    %v1248 = vunpack.c.h.b16 %v306
    %v1249 = vunpack.c.l.b16 %v307
    %v1250 = vunpack.c.h.b16 %v307
    %v1251 = vunpack.c.l.b16 %v308
    %v1252 = vunpack.c.h.b16 %v308
    %v1253 = vunpack.c.l.b16 %v309
    %v1254 = vunpack.c.h.b16 %v309
    %v1255 = vunpack.c.l.b16 %v310
    %v1256 = vunpack.c.h.b16 %v310
    %v1257 = vunpack.c.l.b16 %v311
    %v1258 = vunpack.c.h.b16 %v311
    %v1259 = vunpack.c.l.b16 %v312
    %v1260 = vunpack.c.h.b16 %v312
    %v1261 = vunpack.c.l.b16 %v313
    %v1262 = vunpack.c.h.b16 %v313
    %v1263 = vunpack.c.l.b16 %v314
    %v1264 = vunpack.c.h.b16 %v314
    %v1265 = vunpack.c.l.b16 %v315
    %v1266 = vunpack.c.h.b16 %v315
    %v1267 = vunpack.c.l.b16 %v316
    %v1268 = vunpack.c.h.b16 %v316
    %v1269 = vunpack.c.l.b16 %v317
    %v1270 = vunpack.c.h.b16 %v317
    %v1271 = vunpack.c.l.b16 %v318
    %v1272 = vunpack.c.h.b16 %v318
    %v1273 = vunpack.c.l.b16 %v319
    %v1274 = vunpack.c.h.b16 %v319
    %v1275 = vunpack.c.l.b16 %v320
    %v1276 = vunpack.c.h.b16 %v320
    %v1277 = vunpack.c.l.b16 %v321
    %v1278 = vunpack.c.h.b16 %v321
    %v1279 = vunpack.c.l.b16 %v322
    %v1280 = vunpack.c.h.b16 %v322
    %v1281 = vunpack.c.l.b16 %v323
    %v1282 = vunpack.c.h.b16 %v323
    %v1283 = vunpack.c.l.b16 %v324
    %v1284 = vunpack.c.h.b16 %v324
    %v1285 = vunpack.c.l.b16 %v325
    %v1286 = vunpack.c.h.b16 %v325
    %v1287 = vunpack.c.l.b16 %v326
    %v1288 = vunpack.c.h.b16 %v326
    %v1289 = vunpack.c.l.b16 %v327
    %v1290 = vunpack.c.h.b16 %v327
    %v1291 = vunpack.c.l.b16 %v328
    %v1292 = vunpack.c.h.b16 %v328
    %v1293 = vunpack.c.l.b16 %v329
    %v1294 = vunpack.c.h.b16 %v329
    %v1295 = vunpack.c.l.b16 %v330
    %v1296 = vunpack.c.h.b16 %v330
    %v1297 = vunpack.c.l.b16 %v331
    %v1298 = vunpack.c.h.b16 %v331
    %v1299 = vunpack.c.l.b16 %v332
    %v1300 = vunpack.c.h.b16 %v332
    %v1301 = vunpack.c.l.b16 %v333
    %v1302 = vunpack.c.h.b16 %v333
    %v1303 = vunpack.c.l.b16 %v334
    %v1304 = vunpack.c.h.b16 %v334
    %v1305 = vunpack.c.l.b16 %v335
    %v1306 = vunpack.c.h.b16 %v335
    %v1307 = vunpack.c.l.b16 %v336
    %v1308 = vunpack.c.h.b16 %v336
    %v1309 = vunpack.c.l.b16 %v337
    %v1310 = vunpack.c.h.b16 %v337
    %v1311 = vunpack.c.l.b16 %v338
    %v1312 = vunpack.c.h.b16 %v338
    %v1313 = vunpack.c.l.b16 %v339
    %v1314 = vunpack.c.h.b16 %v339
    %v1315 = vunpack.c.l.b16 %v340
    %v1316 = vunpack.c.h.b16 %v340
    %v1317 = vunpack.c.l.b16 %v341
    %v1318 = vunpack.c.h.b16 %v341
    %v1319 = vunpack.c.l.b16 %v342
    %v1320 = vunpack.c.h.b16 %v342
    %v1321 = vunpack.c.l.b16 %v343
    %v1322 = vunpack.c.h.b16 %v343
    %v1323 = vunpack.c.l.b16 %v344
    %v1324 = vunpack.c.h.b16 %v344
    %v1325 = vunpack.c.l.b16 %v345
    %v1326 = vunpack.c.h.b16 %v345
    %v1327 = vunpack.c.l.b16 %v346
    %v1328 = vunpack.c.h.b16 %v346
    %v1329 = vunpack.c.l.b16 %v347
    %v1330 = vunpack.c.h.b16 %v347
    %v1331 = vunpack.c.l.b16 %v348
    %v1332 = vunpack.c.h.b16 %v348
    %v1333 = vunpack.c.l.b16 %v349
    %v1334 = vunpack.c.h.b16 %v349
    %v1335 = vunpack.c.l.b16 %v350
    %v1336 = vunpack.c.h.b16 %v350
    %v1337 = vunpack.c.l.b16 %v351
    %v1338 = vunpack.c.h.b16 %v351
    %v1339 = vunpack.c.l.b16 %v352
    %v1340 = vunpack.c.h.b16 %v352
    %v1341 = vunpack.c.l.b16 %v353
    %v1342 = vunpack.c.h.b16 %v353
    %v1343 = vunpack.c.l.b16 %v354
    %v1344 = vunpack.c.h.b16 %v354
    %v1345 = vunpack.c.l.b16 %v355
    %v1346 = vunpack.c.h.b16 %v355
    %v1347 = vunpack.c.l.b16 %v356
    %v1348 = vunpack.c.h.b16 %v356
    %v1349 = vunpack.c.l.b16 %v357
    %v1350 = vunpack.c.h.b16 %v357
    %v1351 = vunpack.c.l.b16 %v358
    %v1352 = vunpack.c.h.b16 %v358
    %v1353 = vunpack.c.l.b16 %v359
    %v1354 = vunpack.c.h.b16 %v359
    %v1355 = vunpack.c.l.b16 %v360
    %v1356 = vunpack.c.h.b16 %v360
    %v1357 = vunpack.c.l.b16 %v361
    %v1358 = vunpack.c.h.b16 %v361
    %v1359 = vunpack.c.l.b16 %v362
    %v1360 = vunpack.c.h.b16 %v362
    %v1361 = vunpack.c.l.b16 %v363
    %v1362 = vunpack.c.h.b16 %v363
    %v1363 = vunpack.c.l.b16 %v364
    %v1364 = vunpack.c.h.b16 %v364
    %v1365 = vunpack.c.l.b16 %v365
    %v1366 = vunpack.c.h.b16 %v365
    %v1367 = vunpack.c.l.b16 %v366
    %v1368 = vunpack.c.h.b16 %v366
    %v1369 = vunpack.c.l.b16 %v367
    %v1370 = vunpack.c.h.b16 %v367
    %v1371 = vunpack.c.l.b16 %v368
    %v1372 = vunpack.c.h.b16 %v368
    %v1373 = vunpack.c.l.b16 %v369
    %v1374 = vunpack.c.h.b16 %v369
    %v1375 = vunpack.c.l.b16 %v370
    %v1376 = vunpack.c.h.b16 %v370
    %v1377 = vunpack.c.l.b16 %v371
    %v1378 = vunpack.c.h.b16 %v371
    %v1379 = vunpack.c.l.b16 %v372
    %v1380 = vunpack.c.h.b16 %v372
    %v1381 = vunpack.c.l.b16 %v373
    %v1382 = vunpack.c.h.b16 %v373
    %v1383 = vunpack.c.l.b16 %v374
    %v1384 = vunpack.c.h.b16 %v374
    %v1385 = vunpack.c.l.b16 %v375
    %v1386 = vunpack.c.h.b16 %v375
    %v1387 = vunpack.c.l.b16 %v376
    %v1388 = vunpack.c.h.b16 %v376
    %v1389 = vunpack.c.l.b16 %v377
    %v1390 = vunpack.c.h.b16 %v377
    %v1391 = vunpack.c.l.b16 %v378
    %v1392 = vunpack.c.h.b16 %v378
    %v1393 = vunpack.c.l.b16 %v379
    %v1394 = vunpack.c.h.b16 %v379
    %v1395 = vunpack.c.l.b16 %v380
    %v1396 = vunpack.c.h.b16 %v380
    %v1397 = vunpack.c.l.b16 %v381
    %v1398 = vunpack.c.h.b16 %v381
    %v1399 = vunpack.c.l.b16 %v382
    %v1400 = vunpack.c.h.b16 %v382
    %v1401 = vunpack.c.l.b16 %v383
    %v1402 = vunpack.c.h.b16 %v383
    %v1403 = vunpack.c.l.b16 %v384
    %v1404 = vunpack.c.h.b16 %v384
    %v1405 = vunpack.c.l.b16 %v385
    %v1406 = vunpack.c.h.b16 %v385
    %v1407 = vunpack.c.l.b16 %v386
    %v1408 = vunpack.c.h.b16 %v386
    %v1409 = vunpack.c.l.b16 %v387
    %v1410 = vunpack.c.h.b16 %v387
    %v1411 = vunpack.c.l.b16 %v388
    %v1412 = vunpack.c.h.b16 %v388
    %v1413 = vunpack.c.l.b16 %v389
    %v1414 = vunpack.c.h.b16 %v389
    %v1415 = vunpack.c.l.b16 %v390
    %v1416 = vunpack.c.h.b16 %v390
    %v1417 = vunpack.c.l.b16 %v391
    %v1418 = vunpack.c.h.b16 %v391
    %v1419 = vunpack.c.l.b16 %v392
    %v1420 = vunpack.c.h.b16 %v392
    %v1421 = vunpack.c.l.b16 %v393
    %v1422 = vunpack.c.h.b16 %v393
    %v1423 = vunpack.c.l.b16 %v394
    %v1424 = vunpack.c.h.b16 %v394
    %v1425 = vunpack.c.l.b16 %v395
    %v1426 = vunpack.c.h.b16 %v395
    %v1427 = vunpack.c.l.b16 %v396
    %v1428 = vunpack.c.h.b16 %v396
    %v1429 = vunpack.c.l.b16 %v397
    %v1430 = vunpack.c.h.b16 %v397
    %v1431 = vunpack.c.l.b16 %v398
    %v1432 = vunpack.c.h.b16 %v398
    %v1433 = vunpack.c.l.b16 %v399
    %v1434 = vunpack.c.h.b16 %v399
    %v1435 = vunpack.c.l.b16 %v400
    %v1436 = vunpack.c.h.b16 %v400
    %v1437 = vunpack.c.l.b16 %v401
    %v1438 = vunpack.c.h.b16 %v401
    %v1439 = vunpack.c.l.b16 %v402
    %v1440 = vunpack.c.h.b16 %v402
    %v1441 = vunpack.c.l.b16 %v403
    %v1442 = vunpack.c.h.b16 %v403
    %v1443 = vunpack.c.l.b16 %v404
    %v1444 = vunpack.c.h.b16 %v404
    %v1445 = vunpack.c.l.b16 %v405
    %v1446 = vunpack.c.h.b16 %v405
    %v1447 = vunpack.c.l.b16 %v406
    %v1448 = vunpack.c.h.b16 %v406
    %v1449 = vunpack.c.l.b16 %v407
    %v1450 = vunpack.c.h.b16 %v407
    %v1451 = vunpack.c.l.b16 %v408
    %v1452 = vunpack.c.h.b16 %v408
    %v1453 = vunpack.c.l.b16 %v409
    %v1454 = vunpack.c.h.b16 %v409
    %v1455 = vunpack.c.l.b16 %v410
    %v1456 = vunpack.c.h.b16 %v410
    %v1457 = vunpack.c.l.b16 %v411
    %v1458 = vunpack.c.h.b16 %v411
    %v1459 = vunpack.c.l.b16 %v412
    %v1460 = vunpack.c.h.b16 %v412
    %v1461 = vunpack.c.l.b16 %v413
    %v1462 = vunpack.c.h.b16 %v413
    %v1463 = vunpack.c.l.b16 %v414
    %v1464 = vunpack.c.h.b16 %v414
    %v1465 = vunpack.c.l.b16 %v415
    %v1466 = vunpack.c.h.b16 %v415
    %v1467 = vunpack.c.l.b16 %v416
    %v1468 = vunpack.c.h.b16 %v416
    %v1469 = vunpack.c.l.b16 %v417
    %v1470 = vunpack.c.h.b16 %v417
    %v1471 = vunpack.c.l.b16 %v418
    %v1472 = vunpack.c.h.b16 %v418
    %v1473 = vunpack.c.l.b16 %v419
    %v1474 = vunpack.c.h.b16 %v419
    %v1475 = vunpack.c.l.b16 %v420
    %v1476 = vunpack.c.h.b16 %v420
    %v1477 = vunpack.c.l.b16 %v421
    %v1478 = vunpack.c.h.b16 %v421
    %v1479 = vunpack.c.l.b16 %v422
    %v1480 = vunpack.c.h.b16 %v422
    %v1481 = vunpack.c.l.b16 %v423
    %v1482 = vunpack.c.h.b16 %v423
    %v1483 = vunpack.c.l.b16 %v424
    %v1484 = vunpack.c.h.b16 %v424
    %v1485 = vunpack.c.l.b16 %v425
    %v1486 = vunpack.c.h.b16 %v425
    %v1487 = vunpack.c.l.b16 %v426
    %v1488 = vunpack.c.h.b16 %v426
    %v1489 = vunpack.c.l.b16 %v427
    %v1490 = vunpack.c.h.b16 %v427
    %v1491 = vunpack.c.l.b16 %v428
    %v1492 = vunpack.c.h.b16 %v428
    %v1493 = vunpack.c.l.b16 %v429
    %v1494 = vunpack.c.h.b16 %v429
    %v1495 = vunpack.c.l.b16 %v430
    %v1496 = vunpack.c.h.b16 %v430
    %v1497 = vunpack.c.l.b16 %v431
    %v1498 = vunpack.c.h.b16 %v431
    %v1499 = vunpack.c.l.b16 %v432
    %v1500 = vunpack.c.h.b16 %v432
    %v1501 = vunpack.c.l.b16 %v433
    %v1502 = vunpack.c.h.b16 %v433
    %v1503 = vunpack.c.l.b16 %v434
    %v1504 = vunpack.c.h.b16 %v434
    %v1505 = vunpack.c.l.b16 %v435
    %v1506 = vunpack.c.h.b16 %v435
    %v1507 = vunpack.c.l.b16 %v436
    %v1508 = vunpack.c.h.b16 %v436
    %v1509 = vunpack.c.l.b16 %v437
    %v1510 = vunpack.c.h.b16 %v437
    %v1511 = vunpack.c.l.b16 %v438
    %v1512 = vunpack.c.h.b16 %v438
    %v1513 = vunpack.c.l.b16 %v439
    %v1514 = vunpack.c.h.b16 %v439
    %v1515 = vunpack.c.l.b16 %v440
    %v1516 = vunpack.c.h.b16 %v440
    %v1517 = vunpack.c.l.b16 %v441
    %v1518 = vunpack.c.h.b16 %v441
    %v1519 = vunpack.c.l.b16 %v442
    %v1520 = vunpack.c.h.b16 %v442
    %v1521 = vunpack.c.l.b16 %v443
    %v1522 = vunpack.c.h.b16 %v443
    %v1523 = vunpack.c.l.b16 %v444
    %v1524 = vunpack.c.h.b16 %v444
    %v1525 = vunpack.c.l.b16 %v445
    %v1526 = vunpack.c.h.b16 %v445
    %v1527 = vunpack.c.l.b16 %v446
    %v1528 = vunpack.c.h.b16 %v446
    %v1529 = vunpack.c.l.b16 %v447
    %v1530 = vunpack.c.h.b16 %v447
    %v1531 = vunpack.c.l.b16 %v448
    %v1532 = vunpack.c.h.b16 %v448
    %v1533 = vunpack.c.l.b16 %v449
    %v1534 = vunpack.c.h.b16 %v449
    %v1535 = vunpack.c.l.b16 %v450
    %v1536 = vunpack.c.h.b16 %v450
    %v1537 = vunpack.c.l.b16 %v451
    %v1538 = vunpack.c.h.b16 %v451
    %v1539 = vunpack.c.l.b16 %v452
    %v1540 = vunpack.c.h.b16 %v452
    %v1541 = vunpack.c.l.b16 %v453
    %v1542 = vunpack.c.h.b16 %v453
    %v1543 = vunpack.c.l.b16 %v454
    %v1544 = vunpack.c.h.b16 %v454
    %v1545 = vunpack.c.l.b16 %v455
    %v1546 = vunpack.c.h.b16 %v455
    %v1547 = vunpack.c.l.b16 %v456
    %v1548 = vunpack.c.h.b16 %v456
    %v1549 = vunpack.c.l.b16 %v457
    %v1550 = vunpack.c.h.b16 %v457
    %v1551 = vunpack.c.l.b16 %v458
    %v1552 = vunpack.c.h.b16 %v458
    %v1553 = vunpack.c.l.b16 %v459
    %v1554 = vunpack.c.h.b16 %v459
    %v1555 = vunpack.c.l.b16 %v460
    %v1556 = vunpack.c.h.b16 %v460
    %v1557 = vunpack.c.l.b16 %v461
    %v1558 = vunpack.c.h.b16 %v461
    %v1559 = vunpack.c.l.b16 %v462
    %v1560 = vunpack.c.h.b16 %v462
    %v1561 = vunpack.c.l.b16 %v463
    %v1562 = vunpack.c.h.b16 %v463
    %v1563 = vunpack.c.l.b16 %v464
    %v1564 = vunpack.c.h.b16 %v464
    %v1565 = vunpack.c.l.b16 %v465
    %v1566 = vunpack.c.h.b16 %v465
    %v1567 = vunpack.c.l.b16 %v466
    %v1568 = vunpack.c.h.b16 %v466
    %v1569 = vunpack.c.l.b16 %v467
    %v1570 = vunpack.c.h.b16 %v467
    %v1571 = vunpack.c.l.b16 %v468
    %v1572 = vunpack.c.h.b16 %v468
    %v1573 = vunpack.c.l.b16 %v469
    %v1574 = vunpack.c.h.b16 %v469
    %v1575 = vunpack.c.l.b16 %v470
    %v1576 = vunpack.c.h.b16 %v470
    %v1577 = vunpack.c.l.b16 %v471
    %v1578 = vunpack.c.h.b16 %v471
    %v1579 = vunpack.c.l.b16 %v472
    %v1580 = vunpack.c.h.b16 %v472
    %v1581 = vunpack.c.l.b16 %v473
    %v1582 = vunpack.c.h.b16 %v473
    %v1583 = vunpack.c.l.b16 %v474
    %v1584 = vunpack.c.h.b16 %v474
    %v1585 = vunpack.c.l.b16 %v475
    %v1586 = vunpack.c.h.b16 %v475
    %v1587 = vunpack.c.l.b16 %v476
    %v1588 = vunpack.c.h.b16 %v476
    %v1589 = vunpack.c.l.b16 %v477
    %v1590 = vunpack.c.h.b16 %v477
    %v1591 = vunpack.c.l.b16 %v478
    %v1592 = vunpack.c.h.b16 %v478
    %v1593 = vunpack.c.l.b16 %v479
    %v1594 = vunpack.c.h.b16 %v479
    %v1595 = vunpack.c.l.b16 %v480
    %v1596 = vunpack.c.h.b16 %v480
    %v1597 = vunpack.c.l.b16 %v481
    %v1598 = vunpack.c.h.b16 %v481
    %v1599 = vunpack.c.l.b16 %v482
    %v1600 = vunpack.c.h.b16 %v482
    %v1601 = vunpack.c.l.b16 %v483
    %v1602 = vunpack.c.h.b16 %v483
    %v1603 = vunpack.c.l.b16 %v484
    %v1604 = vunpack.c.h.b16 %v484
    %v1605 = vunpack.c.l.b16 %v485
    %v1606 = vunpack.c.h.b16 %v485
    %v1607 = vunpack.c.l.b16 %v486
    %v1608 = vunpack.c.h.b16 %v486
    %v1609 = vunpack.c.l.b16 %v487
    %v1610 = vunpack.c.h.b16 %v487
    %v1611 = vunpack.c.l.b16 %v488
    %v1612 = vunpack.c.h.b16 %v488
    %v1613 = vunpack.c.l.b16 %v489
    %v1614 = vunpack.c.h.b16 %v489
    %v1615 = vunpack.c.l.b16 %v490
    %v1616 = vunpack.c.h.b16 %v490
    %v1617 = vunpack.c.l.b16 %v491
    %v1618 = vunpack.c.h.b16 %v491
    %v1619 = vunpack.c.l.b16 %v492
    %v1620 = vunpack.c.h.b16 %v492
    %v1621 = vunpack.c.l.b16 %v493
    %v1622 = vunpack.c.h.b16 %v493
    %v1623 = vunpack.c.l.b16 %v494
    %v1624 = vunpack.c.h.b16 %v494
    %v1625 = vunpack.c.l.b16 %v495
    %v1626 = vunpack.c.h.b16 %v495
    %v1627 = vunpack.c.l.b16 %v496
    %v1628 = vunpack.c.h.b16 %v496
    %v1629 = vunpack.c.l.b16 %v497
    %v1630 = vunpack.c.h.b16 %v497
    %v1631 = vunpack.c.l.b16 %v498
    %v1632 = vunpack.c.h.b16 %v498
    %v1633 = vunpack.c.l.b16 %v499
    %v1634 = vunpack.c.h.b16 %v499
    %v1635 = vunpack.c.l.b16 %v500
    %v1636 = vunpack.c.h.b16 %v500
    %v1637 = vunpack.c.l.b16 %v501
    %v1638 = vunpack.c.h.b16 %v501
    %v1639 = vunpack.c.l.b16 %v502
    %v1640 = vunpack.c.h.b16 %v502
    %v1641 = vunpack.c.l.b16 %v503
    %v1642 = vunpack.c.h.b16 %v503
    %v1643 = vunpack.c.l.b16 %v504
    %v1644 = vunpack.c.h.b16 %v504
    %v1645 = vunpack.c.l.b16 %v505
    %v1646 = vunpack.c.h.b16 %v505
    %v1647 = vunpack.c.l.b16 %v506
    %v1648 = vunpack.c.h.b16 %v506
    %v1649 = vunpack.c.l.b16 %v507
    %v1650 = vunpack.c.h.b16 %v507
    %v1651 = vunpack.c.l.b16 %v508
    %v1652 = vunpack.c.h.b16 %v508
    %v1653 = vunpack.c.l.b16 %v509
    %v1654 = vunpack.c.h.b16 %v509
    %v1655 = vunpack.c.l.b16 %v510
    %v1656 = vunpack.c.h.b16 %v510
    %v1657 = vunpack.c.l.b16 %v511
    %v1658 = vunpack.c.h.b16 %v511
    %v1659 = vunpack.c.l.b16 %v512
    %v1660 = vunpack.c.h.b16 %v512
    %v1661 = vunpack.c.l.b16 %v513
    %v1662 = vunpack.c.h.b16 %v513
    %v1663 = vunpack.c.l.b16 %v514
    %v1664 = vunpack.c.h.b16 %v514
    %v1665 = vunpack.c.l.b16 %v515
    %v1666 = vunpack.c.h.b16 %v515
    %v1667 = vunpack.c.l.b16 %v516
    %v1668 = vunpack.c.h.b16 %v516
    %v1669 = vunpack.c.l.b16 %v517
    %v1670 = vunpack.c.h.b16 %v517
    %v1671 = vunpack.c.l.b16 %v518
    %v1672 = vunpack.c.h.b16 %v518
    %v1673 = vunpack.c.l.b16 %v519
    %v1674 = vunpack.c.h.b16 %v519
    %v1675 = vunpack.c.l.b16 %v520
    %v1676 = vunpack.c.h.b16 %v520
    %v1677 = vunpack.c.l.b16 %v521
    %v1678 = vunpack.c.h.b16 %v521
    %v1679 = vunpack.c.l.b16 %v522
    %v1680 = vunpack.c.h.b16 %v522
    %v1681 = vunpack.c.l.b16 %v523
    %v1682 = vunpack.c.h.b16 %v523
    %v1683 = vunpack.c.l.b16 %v524
    %v1684 = vunpack.c.h.b16 %v524
    %v1685 = vunpack.c.l.b16 %v525
    %v1686 = vunpack.c.h.b16 %v525
    %v1687 = vunpack.c.l.b16 %v526
    %v1688 = vunpack.c.h.b16 %v526
    %v1689 = vunpack.c.l.b16 %v527
    %v1690 = vunpack.c.h.b16 %v527
    %v1691 = vunpack.c.l.b16 %v528
    %v1692 = vunpack.c.h.b16 %v528
    %v1693 = vunpack.c.l.b16 %v529
    %v1694 = vunpack.c.h.b16 %v529
    %v1695 = vunpack.c.l.b16 %v530
    %v1696 = vunpack.c.h.b16 %v530
    %v1697 = vunpack.c.l.b16 %v531
    %v1698 = vunpack.c.h.b16 %v531
    %v1699 = vunpack.c.l.b16 %v532
    %v1700 = vunpack.c.h.b16 %v532
    %v1701 = vpack.c.b16 %v949, %v933
    %v1702 = vpack.c.b16 %v950, %v934
    %v1703 = vpack.c.b16 %v951, %v935
    %v1704 = vpack.c.b16 %v952, %v936
    %v1705 = vpack.c.b16 %v953, %v937
    %v1706 = vpack.c.b16 %v954, %v938
    %v1707 = vpack.c.b16 %v955, %v939
    %v1708 = vpack.c.b16 %v956, %v940
    %v1709 = vpack.c.b16 %v957, %v941
    %v1710 = vpack.c.b16 %v958, %v942
    %v1711 = vpack.c.b16 %v959, %v943
    %v1712 = vpack.c.b16 %v960, %v944
    %v1713 = vpack.c.b16 %v961, %v945
    %v1714 = vpack.c.b16 %v962, %v946
    %v1715 = vpack.c.b16 %v963, %v947
    %v1716 = vpack.c.b16 %v964, %v948
    %v1717 = vpack.c.b16 %v981, %v965
    %v1718 = vpack.c.b16 %v982, %v966
    %v1719 = vpack.c.b16 %v983, %v967
    %v1720 = vpack.c.b16 %v984, %v968
    %v1721 = vpack.c.b16 %v985, %v969
    %v1722 = vpack.c.b16 %v986, %v970
    %v1723 = vpack.c.b16 %v987, %v971
    %v1724 = vpack.c.b16 %v988, %v972
    %v1725 = vpack.c.b16 %v989, %v973
    %v1726 = vpack.c.b16 %v990, %v974
    %v1727 = vpack.c.b16 %v991, %v975
    %v1728 = vpack.c.b16 %v992, %v976
    %v1729 = vpack.c.b16 %v993, %v977
    %v1730 = vpack.c.b16 %v994, %v978
    %v1731 = vpack.c.b16 %v995, %v979
    %v1732 = vpack.c.b16 %v996, %v980
    %v1733 = vpack.c.b16 %v1013, %v997
    %v1734 = vpack.c.b16 %v1014, %v998
    %v1735 = vpack.c.b16 %v1015, %v999
    %v1736 = vpack.c.b16 %v1016, %v1000
    %v1737 = vpack.c.b16 %v1017, %v1001
    %v1738 = vpack.c.b16 %v1018, %v1002
    %v1739 = vpack.c.b16 %v1019, %v1003
    %v1740 = vpack.c.b16 %v1020, %v1004
    %v1741 = vpack.c.b16 %v1021, %v1005
    %v1742 = vpack.c.b16 %v1022, %v1006
    %v1743 = vpack.c.b16 %v1023, %v1007
    %v1744 = vpack.c.b16 %v1024, %v1008
    %v1745 = vpack.c.b16 %v1025, %v1009
    %v1746 = vpack.c.b16 %v1026, %v1010
    %v1747 = vpack.c.b16 %v1027, %v1011
    %v1748 = vpack.c.b16 %v1028, %v1012
    %v1749 = vpack.c.b16 %v1045, %v1029
    %v1750 = vpack.c.b16 %v1046, %v1030
    %v1751 = vpack.c.b16 %v1047, %v1031
    %v1752 = vpack.c.b16 %v1048, %v1032
    %v1753 = vpack.c.b16 %v1049, %v1033
    %v1754 = vpack.c.b16 %v1050, %v1034
    %v1755 = vpack.c.b16 %v1051, %v1035
    %v1756 = vpack.c.b16 %v1052, %v1036
    %v1757 = vpack.c.b16 %v1053, %v1037
    %v1758 = vpack.c.b16 %v1054, %v1038
    %v1759 = vpack.c.b16 %v1055, %v1039
    %v1760 = vpack.c.b16 %v1056, %v1040
    %v1761 = vpack.c.b16 %v1057, %v1041
    %v1762 = vpack.c.b16 %v1058, %v1042
    %v1763 = vpack.c.b16 %v1059, %v1043
    %v1764 = vpack.c.b16 %v1060, %v1044
    %v1765 = vpack.c.b16 %v1077, %v1061
    %v1766 = vpack.c.b16 %v1078, %v1062
    %v1767 = vpack.c.b16 %v1079, %v1063
    %v1768 = vpack.c.b16 %v1080, %v1064
    %v1769 = vpack.c.b16 %v1081, %v1065
    %v1770 = vpack.c.b16 %v1082, %v1066
    %v1771 = vpack.c.b16 %v1083, %v1067
    %v1772 = vpack.c.b16 %v1084, %v1068
    %v1773 = vpack.c.b16 %v1085, %v1069
    %v1774 = vpack.c.b16 %v1086, %v1070
    %v1775 = vpack.c.b16 %v1087, %v1071
    %v1776 = vpack.c.b16 %v1088, %v1072
    %v1777 = vpack.c.b16 %v1089, %v1073
    %v1778 = vpack.c.b16 %v1090, %v1074
    %v1779 = vpack.c.b16 %v1091, %v1075
    %v1780 = vpack.c.b16 %v1092, %v1076
    %v1781 = vpack.c.b16 %v1109, %v1093
    %v1782 = vpack.c.b16 %v1110, %v1094
    %v1783 = vpack.c.b16 %v1111, %v1095
    %v1784 = vpack.c.b16 %v1112, %v1096
    %v1785 = vpack.c.b16 %v1113, %v1097
    %v1786 = vpack.c.b16 %v1114, %v1098
    %v1787 = vpack.c.b16 %v1115, %v1099
    %v1788 = vpack.c.b16 %v1116, %v1100
    %v1789 = vpack.c.b16 %v1117, %v1101
    %v1790 = vpack.c.b16 %v1118, %v1102
    %v1791 = vpack.c.b16 %v1119, %v1103
    %v1792 = vpack.c.b16 %v1120, %v1104
    %v1793 = vpack.c.b16 %v1121, %v1105
    %v1794 = vpack.c.b16 %v1122, %v1106
    %v1795 = vpack.c.b16 %v1123, %v1107
    %v1796 = vpack.c.b16 %v1124, %v1108
    %v1797 = vpack.c.b16 %v1141, %v1125
    %v1798 = vpack.c.b16 %v1142, %v1126
    %v1799 = vpack.c.b16 %v1143, %v1127
    %v1800 = vpack.c.b16 %v1144, %v1128
    %v1801 = vpack.c.b16 %v1145, %v1129
    %v1802 = vpack.c.b16 %v1146, %v1130
    %v1803 = vpack.c.b16 %v1147, %v1131
    %v1804 = vpack.c.b16 %v1148, %v1132
    %v1805 = vpack.c.b16 %v1149, %v1133
    %v1806 = vpack.c.b16 %v1150, %v1134
    %v1807 = vpack.c.b16 %v1151, %v1135
    %v1808 = vpack.c.b16 %v1152, %v1136
    %v1809 = vpack.c.b16 %v1153, %v1137
    %v1810 = vpack.c.b16 %v1154, %v1138
    %v1811 = vpack.c.b16 %v1155, %v1139
    %v1812 = vpack.c.b16 %v1156, %v1140
    %v1813 = vpack.c.b16 %v1173, %v1157
    %v1814 = vpack.c.b16 %v1174, %v1158
    %v1815 = vpack.c.b16 %v1175, %v1159
    %v1816 = vpack.c.b16 %v1176, %v1160
    %v1817 = vpack.c.b16 %v1177, %v1161
    %v1818 = vpack.c.b16 %v1178, %v1162
    %v1819 = vpack.c.b16 %v1179, %v1163
    %v1820 = vpack.c.b16 %v1180, %v1164
    %v1821 = vpack.c.b16 %v1181, %v1165
    %v1822 = vpack.c.b16 %v1182, %v1166
    %v1823 = vpack.c.b16 %v1183, %v1167
    %v1824 = vpack.c.b16 %v1184, %v1168
    %v1825 = vpack.c.b16 %v1185, %v1169
    %v1826 = vpack.c.b16 %v1186, %v1170
    %v1827 = vpack.c.b16 %v1187, %v1171
    %v1828 = vpack.c.b16 %v1188, %v1172
    %v1829 = vpack.c.b16 %v1205, %v1189
    %v1830 = vpack.c.b16 %v1206, %v1190
    %v1831 = vpack.c.b16 %v1207, %v1191
    %v1832 = vpack.c.b16 %v1208, %v1192
    %v1833 = vpack.c.b16 %v1209, %v1193
    %v1834 = vpack.c.b16 %v1210, %v1194
    %v1835 = vpack.c.b16 %v1211, %v1195
    %v1836 = vpack.c.b16 %v1212, %v1196
    %v1837 = vpack.c.b16 %v1213, %v1197
    %v1838 = vpack.c.b16 %v1214, %v1198
    %v1839 = vpack.c.b16 %v1215, %v1199
    %v1840 = vpack.c.b16 %v1216, %v1200
    %v1841 = vpack.c.b16 %v1217, %v1201
    %v1842 = vpack.c.b16 %v1218, %v1202
    %v1843 = vpack.c.b16 %v1219, %v1203
    %v1844 = vpack.c.b16 %v1220, %v1204
    %v1845 = vpack.c.b16 %v1237, %v1221
    %v1846 = vpack.c.b16 %v1238, %v1222
    %v1847 = vpack.c.b16 %v1239, %v1223
    %v1848 = vpack.c.b16 %v1240, %v1224
    %v1849 = vpack.c.b16 %v1241, %v1225
    %v1850 = vpack.c.b16 %v1242, %v1226
    %v1851 = vpack.c.b16 %v1243, %v1227
    %v1852 = vpack.c.b16 %v1244, %v1228
    %v1853 = vpack.c.b16 %v1245, %v1229
    %v1854 = vpack.c.b16 %v1246, %v1230
    %v1855 = vpack.c.b16 %v1247, %v1231
    %v1856 = vpack.c.b16 %v1248, %v1232
    %v1857 = vpack.c.b16 %v1249, %v1233
    %v1858 = vpack.c.b16 %v1250, %v1234
    %v1859 = vpack.c.b16 %v1251, %v1235
    %v1860 = vpack.c.b16 %v1252, %v1236
    %v1861 = vpack.c.b16 %v1269, %v1253
    %v1862 = vpack.c.b16 %v1270, %v1254
    %v1863 = vpack.c.b16 %v1271, %v1255
    %v1864 = vpack.c.b16 %v1272, %v1256
    %v1865 = vpack.c.b16 %v1273, %v1257
    %v1866 = vpack.c.b16 %v1274, %v1258
    %v1867 = vpack.c.b16 %v1275, %v1259
    %v1868 = vpack.c.b16 %v1276, %v1260
    %v1869 = vpack.c.b16 %v1277, %v1261
    %v1870 = vpack.c.b16 %v1278, %v1262
    %v1871 = vpack.c.b16 %v1279, %v1263
    %v1872 = vpack.c.b16 %v1280, %v1264
    %v1873 = vpack.c.b16 %v1281, %v1265
    %v1874 = vpack.c.b16 %v1282, %v1266
    %v1875 = vpack.c.b16 %v1283, %v1267
    %v1876 = vpack.c.b16 %v1284, %v1268
    %v1877 = vpack.c.b16 %v1301, %v1285
    %v1878 = vpack.c.b16 %v1302, %v1286
    %v1879 = vpack.c.b16 %v1303, %v1287
    %v1880 = vpack.c.b16 %v1304, %v1288
    %v1881 = vpack.c.b16 %v1305, %v1289
    %v1882 = vpack.c.b16 %v1306, %v1290
    %v1883 = vpack.c.b16 %v1307, %v1291
    %v1884 = vpack.c.b16 %v1308, %v1292
    %v1885 = vpack.c.b16 %v1309, %v1293
    %v1886 = vpack.c.b16 %v1310, %v1294
    %v1887 = vpack.c.b16 %v1311, %v1295
    %v1888 = vpack.c.b16 %v1312, %v1296
    %v1889 = vpack.c.b16 %v1313, %v1297
    %v1890 = vpack.c.b16 %v1314, %v1298
    %v1891 = vpack.c.b16 %v1315, %v1299
    %v1892 = vpack.c.b16 %v1316, %v1300
    %v1893 = vpack.c.b16 %v1333, %v1317
    %v1894 = vpack.c.b16 %v1334, %v1318
    %v1895 = vpack.c.b16 %v1335, %v1319
    %v1896 = vpack.c.b16 %v1336, %v1320
    %v1897 = vpack.c.b16 %v1337, %v1321
    %v1898 = vpack.c.b16 %v1338, %v1322
    %v1899 = vpack.c.b16 %v1339, %v1323
    %v1900 = vpack.c.b16 %v1340, %v1324
    %v1901 = vpack.c.b16 %v1341, %v1325
    %v1902 = vpack.c.b16 %v1342, %v1326
    %v1903 = vpack.c.b16 %v1343, %v1327
    %v1904 = vpack.c.b16 %v1344, %v1328
    %v1905 = vpack.c.b16 %v1345, %v1329
    %v1906 = vpack.c.b16 %v1346, %v1330
    %v1907 = vpack.c.b16 %v1347, %v1331
    %v1908 = vpack.c.b16 %v1348, %v1332
    %v1909 = vpack.c.b16 %v1365, %v1349
    %v1910 = vpack.c.b16 %v1366, %v1350
    %v1911 = vpack.c.b16 %v1367, %v1351
    %v1912 = vpack.c.b16 %v1368, %v1352
    %v1913 = vpack.c.b16 %v1369, %v1353
    %v1914 = vpack.c.b16 %v1370, %v1354
    %v1915 = vpack.c.b16 %v1371, %v1355
    %v1916 = vpack.c.b16 %v1372, %v1356
    %v1917 = vpack.c.b16 %v1373, %v1357
    %v1918 = vpack.c.b16 %v1374, %v1358
    %v1919 = vpack.c.b16 %v1375, %v1359
    %v1920 = vpack.c.b16 %v1376, %v1360
    %v1921 = vpack.c.b16 %v1377, %v1361
    %v1922 = vpack.c.b16 %v1378, %v1362
    %v1923 = vpack.c.b16 %v1379, %v1363
    %v1924 = vpack.c.b16 %v1380, %v1364
    %v1925 = vpack.c.b16 %v1397, %v1381
    %v1926 = vpack.c.b16 %v1398, %v1382
    %v1927 = vpack.c.b16 %v1399, %v1383
    %v1928 = vpack.c.b16 %v1400, %v1384
    %v1929 = vpack.c.b16 %v1401, %v1385
    %v1930 = vpack.c.b16 %v1402, %v1386
    %v1931 = vpack.c.b16 %v1403, %v1387
    %v1932 = vpack.c.b16 %v1404, %v1388
    %v1933 = vpack.c.b16 %v1405, %v1389
    %v1934 = vpack.c.b16 %v1406, %v1390
    %v1935 = vpack.c.b16 %v1407, %v1391
    %v1936 = vpack.c.b16 %v1408, %v1392
    %v1937 = vpack.c.b16 %v1409, %v1393
    %v1938 = vpack.c.b16 %v1410, %v1394
    %v1939 = vpack.c.b16 %v1411, %v1395
    %v1940 = vpack.c.b16 %v1412, %v1396
    %v1941 = vpack.c.b16 %v1429, %v1413
    %v1942 = vpack.c.b16 %v1430, %v1414
    %v1943 = vpack.c.b16 %v1431, %v1415
    %v1944 = vpack.c.b16 %v1432, %v1416
    %v1945 = vpack.c.b16 %v1433, %v1417
    %v1946 = vpack.c.b16 %v1434, %v1418
    %v1947 = vpack.c.b16 %v1435, %v1419
    %v1948 = vpack.c.b16 %v1436, %v1420
    %v1949 = vpack.c.b16 %v1437, %v1421
    %v1950 = vpack.c.b16 %v1438, %v1422
    %v1951 = vpack.c.b16 %v1439, %v1423
    %v1952 = vpack.c.b16 %v1440, %v1424
    %v1953 = vpack.c.b16 %v1441, %v1425
    %v1954 = vpack.c.b16 %v1442, %v1426
    %v1955 = vpack.c.b16 %v1443, %v1427
    %v1956 = vpack.c.b16 %v1444, %v1428
    %v1957 = vpack.c.b16 %v1461, %v1445
    %v1958 = vpack.c.b16 %v1462, %v1446
    %v1959 = vpack.c.b16 %v1463, %v1447
    %v1960 = vpack.c.b16 %v1464, %v1448
    %v1961 = vpack.c.b16 %v1465, %v1449
    %v1962 = vpack.c.b16 %v1466, %v1450
    %v1963 = vpack.c.b16 %v1467, %v1451
    %v1964 = vpack.c.b16 %v1468, %v1452
    %v1965 = vpack.c.b16 %v1469, %v1453
    %v1966 = vpack.c.b16 %v1470, %v1454
    %v1967 = vpack.c.b16 %v1471, %v1455
    %v1968 = vpack.c.b16 %v1472, %v1456
    %v1969 = vpack.c.b16 %v1473, %v1457
    %v1970 = vpack.c.b16 %v1474, %v1458
    %v1971 = vpack.c.b16 %v1475, %v1459
    %v1972 = vpack.c.b16 %v1476, %v1460
    %v1973 = vpack.c.b16 %v1493, %v1477
    %v1974 = vpack.c.b16 %v1494, %v1478
    %v1975 = vpack.c.b16 %v1495, %v1479
    %v1976 = vpack.c.b16 %v1496, %v1480
    %v1977 = vpack.c.b16 %v1497, %v1481
    %v1978 = vpack.c.b16 %v1498, %v1482
    %v1979 = vpack.c.b16 %v1499, %v1483
    %v1980 = vpack.c.b16 %v1500, %v1484
    %v1981 = vpack.c.b16 %v1501, %v1485
    %v1982 = vpack.c.b16 %v1502, %v1486
    %v1983 = vpack.c.b16 %v1503, %v1487
    %v1984 = vpack.c.b16 %v1504, %v1488
    %v1985 = vpack.c.b16 %v1505, %v1489
    %v1986 = vpack.c.b16 %v1506, %v1490
    %v1987 = vpack.c.b16 %v1507, %v1491
    %v1988 = vpack.c.b16 %v1508, %v1492
    %v1989 = vpack.c.b16 %v1525, %v1509
    %v1990 = vpack.c.b16 %v1526, %v1510
    %v1991 = vpack.c.b16 %v1527, %v1511
    %v1992 = vpack.c.b16 %v1528, %v1512
    %v1993 = vpack.c.b16 %v1529, %v1513
    %v1994 = vpack.c.b16 %v1530, %v1514
    %v1995 = vpack.c.b16 %v1531, %v1515
    %v1996 = vpack.c.b16 %v1532, %v1516
    %v1997 = vpack.c.b16 %v1533, %v1517
    %v1998 = vpack.c.b16 %v1534, %v1518
    %v1999 = vpack.c.b16 %v1535, %v1519
    %v2000 = vpack.c.b16 %v1536, %v1520
    %v2001 = vpack.c.b16 %v1537, %v1521
    %v2002 = vpack.c.b16 %v1538, %v1522
    %v2003 = vpack.c.b16 %v1539, %v1523
    %v2004 = vpack.c.b16 %v1540, %v1524
    %v2005 = vpack.c.b16 %v1557, %v1541
    %v2006 = vpack.c.b16 %v1558, %v1542
    %v2007 = vpack.c.b16 %v1559, %v1543
    %v2008 = vpack.c.b16 %v1560, %v1544
    %v2009 = vpack.c.b16 %v1561, %v1545
    %v2010 = vpack.c.b16 %v1562, %v1546
    %v2011 = vpack.c.b16 %v1563, %v1547
    %v2012 = vpack.c.b16 %v1564, %v1548
    %v2013 = vpack.c.b16 %v1565, %v1549
    %v2014 = vpack.c.b16 %v1566, %v1550
    %v2015 = vpack.c.b16 %v1567, %v1551
    %v2016 = vpack.c.b16 %v1568, %v1552
    %v2017 = vpack.c.b16 %v1569, %v1553
    %v2018 = vpack.c.b16 %v1570, %v1554
    %v2019 = vpack.c.b16 %v1571, %v1555
    %v2020 = vpack.c.b16 %v1572, %v1556
    %v2021 = vpack.c.b16 %v1589, %v1573
    %v2022 = vpack.c.b16 %v1590, %v1574
    %v2023 = vpack.c.b16 %v1591, %v1575
    %v2024 = vpack.c.b16 %v1592, %v1576
    %v2025 = vpack.c.b16 %v1593, %v1577
    %v2026 = vpack.c.b16 %v1594, %v1578
    %v2027 = vpack.c.b16 %v1595, %v1579
    %v2028 = vpack.c.b16 %v1596, %v1580
    %v2029 = vpack.c.b16 %v1597, %v1581
    %v2030 = vpack.c.b16 %v1598, %v1582
    %v2031 = vpack.c.b16 %v1599, %v1583
    %v2032 = vpack.c.b16 %v1600, %v1584
    %v2033 = vpack.c.b16 %v1601, %v1585
    %v2034 = vpack.c.b16 %v1602, %v1586
    %v2035 = vpack.c.b16 %v1603, %v1587
    %v2036 = vpack.c.b16 %v1604, %v1588
    %v2037 = vpack.c.b16 %v1621, %v1605
    %v2038 = vpack.c.b16 %v1622, %v1606
    %v2039 = vpack.c.b16 %v1623, %v1607
    %v2040 = vpack.c.b16 %v1624, %v1608
    %v2041 = vpack.c.b16 %v1625, %v1609
    %v2042 = vpack.c.b16 %v1626, %v1610
    %v2043 = vpack.c.b16 %v1627, %v1611
    %v2044 = vpack.c.b16 %v1628, %v1612
    %v2045 = vpack.c.b16 %v1629, %v1613
    %v2046 = vpack.c.b16 %v1630, %v1614
    %v2047 = vpack.c.b16 %v1631, %v1615
    %v2048 = vpack.c.b16 %v1632, %v1616
    %v2049 = vpack.c.b16 %v1633, %v1617
    %v2050 = vpack.c.b16 %v1634, %v1618
    %v2051 = vpack.c.b16 %v1635, %v1619
    %v2052 = vpack.c.b16 %v1636, %v1620
    %v2053 = vpack.c.b16 %v1653, %v1637
    %v2054 = vpack.c.b16 %v1654, %v1638
    %v2055 = vpack.c.b16 %v1655, %v1639
    %v2056 = vpack.c.b16 %v1656, %v1640
    %v2057 = vpack.c.b16 %v1657, %v1641
    %v2058 = vpack.c.b16 %v1658, %v1642
    %v2059 = vpack.c.b16 %v1659, %v1643
    %v2060 = vpack.c.b16 %v1660, %v1644
    %v2061 = vpack.c.b16 %v1661, %v1645
    %v2062 = vpack.c.b16 %v1662, %v1646
    %v2063 = vpack.c.b16 %v1663, %v1647
    %v2064 = vpack.c.b16 %v1664, %v1648
    %v2065 = vpack.c.b16 %v1665, %v1649
    %v2066 = vpack.c.b16 %v1666, %v1650
    %v2067 = vpack.c.b16 %v1667, %v1651
    %v2068 = vpack.c.b16 %v1668, %v1652
    %v2069 = vpack.c.b16 %v1685, %v1669
    %v2070 = vpack.c.b16 %v1686, %v1670
    %v2071 = vpack.c.b16 %v1687, %v1671
    %v2072 = vpack.c.b16 %v1688, %v1672
    %v2073 = vpack.c.b16 %v1689, %v1673
    %v2074 = vpack.c.b16 %v1690, %v1674
    %v2075 = vpack.c.b16 %v1691, %v1675
    %v2076 = vpack.c.b16 %v1692, %v1676
    %v2077 = vpack.c.b16 %v1693, %v1677
    %v2078 = vpack.c.b16 %v1694, %v1678
    %v2079 = vpack.c.b16 %v1695, %v1679
    %v2080 = vpack.c.b16 %v1696, %v1680
    %v2081 = vpack.c.b16 %v1697, %v1681
    %v2082 = vpack.c.b16 %v1698, %v1682
    %v2083 = vpack.c.b16 %v1699, %v1683
    %v2084 = vpack.c.b16 %v1700, %v1684
    %2469 = vmatpush.bf16.msra.mxu0 %v1813
    %2470 = vmatpush.bf16.msra.mxu0 %v1797
    %2471 = vmatpush.bf16.msra.mxu0 %v1781
    %2472 = vmatpush.bf16.msra.mxu0 %v1765
    %2473 = vmatpush.bf16.msra.mxu0 %v1749
    %2474 = vmatpush.bf16.msra.mxu0 %v1733
    %2475 = vmatpush.bf16.msra.mxu0 %v1717
    %2476 = vmatpush.bf16.msra.mxu0 %v1701
    %2477 = vmatmul.bf16.gmra.mxu0 %v543
    %v2478 = vpop.f32.mrf.mxu0
    %v2479 = vadd.f32 0.0, %v2478
    %v2480 = vpop.f32.mrf.mxu0
    %v2481 = vadd.f32 0.0, %v2480
    %2482 = vdwg.mxu0
    %2483 = vmatpush.bf16.msra.mxu0 %v1941
    %2484 = vmatpush.bf16.msra.mxu0 %v1925
    %2485 = vmatpush.bf16.msra.mxu0 %v1909
    %2486 = vmatpush.bf16.msra.mxu0 %v1893
    %2487 = vmatpush.bf16.msra.mxu0 %v1877
    %2488 = vmatpush.bf16.msra.mxu0 %v1861
    %2489 = vmatpush.bf16.msra.mxu0 %v1845
    %2490 = vmatpush.bf16.msra.mxu0 %v1829
    %2491 = vmatmul.bf16.gmra.mxu0 %v544
    %v2492 = vpop.f32.mrf.mxu0
    %v2493 = vadd.f32 %v2479, %v2492
    %v2494 = vpop.f32.mrf.mxu0
    %v2495 = vadd.f32 %v2481, %v2494
    %2496 = vdwg.mxu0
    %2497 = vmatpush.bf16.msra.mxu0 %v2069
    %2498 = vmatpush.bf16.msra.mxu0 %v2053
    %2499 = vmatpush.bf16.msra.mxu0 %v2037
    %2500 = vmatpush.bf16.msra.mxu0 %v2021
    %2501 = vmatpush.bf16.msra.mxu0 %v2005
    %2502 = vmatpush.bf16.msra.mxu0 %v1989
    %2503 = vmatpush.bf16.msra.mxu0 %v1973
    %2504 = vmatpush.bf16.msra.mxu0 %v1957
    %2505 = vmatmul.bf16.gmra.mxu0 %v545
    %v2506 = vpop.f32.mrf.mxu0
    %v2507 = vadd.f32 %v2493, %v2506
    %v2508 = vpop.f32.mrf.mxu0
    %v2509 = vadd.f32 %v2495, %v2508
    %2510 = vdwg.mxu0
    %2511 = vmatpush.bf16.msra.mxu0 %v1814
    %2512 = vmatpush.bf16.msra.mxu0 %v1798
    %2513 = vmatpush.bf16.msra.mxu0 %v1782
    %2514 = vmatpush.bf16.msra.mxu0 %v1766
    %2515 = vmatpush.bf16.msra.mxu0 %v1750
    %2516 = vmatpush.bf16.msra.mxu0 %v1734
    %2517 = vmatpush.bf16.msra.mxu0 %v1718
    %2518 = vmatpush.bf16.msra.mxu0 %v1702
    %2519 = vmatmul.bf16.gmra.mxu0 %v543
    %v2520 = vpop.f32.mrf.mxu0
    %v2521 = vadd.f32 0.0, %v2520
    %v2522 = vpop.f32.mrf.mxu0
    %v2523 = vadd.f32 0.0, %v2522
    %2524 = vdwg.mxu0
    %2525 = vmatpush.bf16.msra.mxu0 %v1942
    %2526 = vmatpush.bf16.msra.mxu0 %v1926
    %2527 = vmatpush.bf16.msra.mxu0 %v1910
    %2528 = vmatpush.bf16.msra.mxu0 %v1894
    %2529 = vmatpush.bf16.msra.mxu0 %v1878
    %2530 = vmatpush.bf16.msra.mxu0 %v1862
    %2531 = vmatpush.bf16.msra.mxu0 %v1846
    %2532 = vmatpush.bf16.msra.mxu0 %v1830
    %2533 = vmatmul.bf16.gmra.mxu0 %v544
    %v2534 = vpop.f32.mrf.mxu0
    %v2535 = vadd.f32 %v2521, %v2534
    %v2536 = vpop.f32.mrf.mxu0
    %v2537 = vadd.f32 %v2523, %v2536
    %2538 = vdwg.mxu0
    %2539 = vmatpush.bf16.msra.mxu0 %v2070
    %2540 = vmatpush.bf16.msra.mxu0 %v2054
    %2541 = vmatpush.bf16.msra.mxu0 %v2038
    %2542 = vmatpush.bf16.msra.mxu0 %v2022
    %2543 = vmatpush.bf16.msra.mxu0 %v2006
    %2544 = vmatpush.bf16.msra.mxu0 %v1990
    %2545 = vmatpush.bf16.msra.mxu0 %v1974
    %2546 = vmatpush.bf16.msra.mxu0 %v1958
    %2547 = vmatmul.bf16.gmra.mxu0 %v545
    %v2548 = vpop.f32.mrf.mxu0
    %v2549 = vadd.f32 %v2535, %v2548
    %v2550 = vpop.f32.mrf.mxu0
    %v2551 = vadd.f32 %v2537, %v2550
    %2552 = vdwg.mxu0
    %2553 = vmatpush.bf16.msra.mxu0 %v1815
    %2554 = vmatpush.bf16.msra.mxu0 %v1799
    %2555 = vmatpush.bf16.msra.mxu0 %v1783
    %2556 = vmatpush.bf16.msra.mxu0 %v1767
    %2557 = vmatpush.bf16.msra.mxu0 %v1751
    %2558 = vmatpush.bf16.msra.mxu0 %v1735
    %2559 = vmatpush.bf16.msra.mxu0 %v1719
    %2560 = vmatpush.bf16.msra.mxu0 %v1703
    %2561 = vmatmul.bf16.gmra.mxu0 %v543
    %v2562 = vpop.f32.mrf.mxu0
    %v2563 = vadd.f32 0.0, %v2562
    %v2564 = vpop.f32.mrf.mxu0
    %v2565 = vadd.f32 0.0, %v2564
    %2566 = vdwg.mxu0
    %2567 = vmatpush.bf16.msra.mxu0 %v1943
    %2568 = vmatpush.bf16.msra.mxu0 %v1927
    %2569 = vmatpush.bf16.msra.mxu0 %v1911
    %2570 = vmatpush.bf16.msra.mxu0 %v1895
    %2571 = vmatpush.bf16.msra.mxu0 %v1879
    %2572 = vmatpush.bf16.msra.mxu0 %v1863
    %2573 = vmatpush.bf16.msra.mxu0 %v1847
    %2574 = vmatpush.bf16.msra.mxu0 %v1831
    %2575 = vmatmul.bf16.gmra.mxu0 %v544
    %v2576 = vpop.f32.mrf.mxu0
    %v2577 = vadd.f32 %v2563, %v2576
    %v2578 = vpop.f32.mrf.mxu0
    %v2579 = vadd.f32 %v2565, %v2578
    %2580 = vdwg.mxu0
    %2581 = vmatpush.bf16.msra.mxu0 %v2071
    %2582 = vmatpush.bf16.msra.mxu0 %v2055
    %2583 = vmatpush.bf16.msra.mxu0 %v2039
    %2584 = vmatpush.bf16.msra.mxu0 %v2023
    %2585 = vmatpush.bf16.msra.mxu0 %v2007
    %2586 = vmatpush.bf16.msra.mxu0 %v1991
    %2587 = vmatpush.bf16.msra.mxu0 %v1975
    %2588 = vmatpush.bf16.msra.mxu0 %v1959
    %2589 = vmatmul.bf16.gmra.mxu0 %v545
    %v2590 = vpop.f32.mrf.mxu0
    %v2591 = vadd.f32 %v2577, %v2590
    %v2592 = vpop.f32.mrf.mxu0
    %v2593 = vadd.f32 %v2579, %v2592
    %2594 = vdwg.mxu0
    %2595 = vmatpush.bf16.msra.mxu0 %v1816
    %2596 = vmatpush.bf16.msra.mxu0 %v1800
    %2597 = vmatpush.bf16.msra.mxu0 %v1784
    %2598 = vmatpush.bf16.msra.mxu0 %v1768
    %2599 = vmatpush.bf16.msra.mxu0 %v1752
    %2600 = vmatpush.bf16.msra.mxu0 %v1736
    %2601 = vmatpush.bf16.msra.mxu0 %v1720
    %2602 = vmatpush.bf16.msra.mxu0 %v1704
    %2603 = vmatmul.bf16.gmra.mxu0 %v543
    %v2604 = vpop.f32.mrf.mxu0
    %v2605 = vadd.f32 0.0, %v2604
    %v2606 = vpop.f32.mrf.mxu0
    %v2607 = vadd.f32 0.0, %v2606
    %2608 = vdwg.mxu0
    %2609 = vmatpush.bf16.msra.mxu0 %v1944
    %2610 = vmatpush.bf16.msra.mxu0 %v1928
    %2611 = vmatpush.bf16.msra.mxu0 %v1912
    %2612 = vmatpush.bf16.msra.mxu0 %v1896
    %2613 = vmatpush.bf16.msra.mxu0 %v1880
    %2614 = vmatpush.bf16.msra.mxu0 %v1864
    %2615 = vmatpush.bf16.msra.mxu0 %v1848
    %2616 = vmatpush.bf16.msra.mxu0 %v1832
    %2617 = vmatmul.bf16.gmra.mxu0 %v544
    %v2618 = vpop.f32.mrf.mxu0
    %v2619 = vadd.f32 %v2605, %v2618
    %v2620 = vpop.f32.mrf.mxu0
    %v2621 = vadd.f32 %v2607, %v2620
    %2622 = vdwg.mxu0
    %2623 = vmatpush.bf16.msra.mxu0 %v2072
    %2624 = vmatpush.bf16.msra.mxu0 %v2056
    %2625 = vmatpush.bf16.msra.mxu0 %v2040
    %2626 = vmatpush.bf16.msra.mxu0 %v2024
    %2627 = vmatpush.bf16.msra.mxu0 %v2008
    %2628 = vmatpush.bf16.msra.mxu0 %v1992
    %2629 = vmatpush.bf16.msra.mxu0 %v1976
    %2630 = vmatpush.bf16.msra.mxu0 %v1960
    %2631 = vmatmul.bf16.gmra.mxu0 %v545
    %v2632 = vpop.f32.mrf.mxu0
    %v2633 = vadd.f32 %v2619, %v2632
    %v2634 = vpop.f32.mrf.mxu0
    %v2635 = vadd.f32 %v2621, %v2634
    %2636 = vdwg.mxu0
    %2637 = vmatpush.bf16.msra.mxu0 %v1817
    %2638 = vmatpush.bf16.msra.mxu0 %v1801
    %2639 = vmatpush.bf16.msra.mxu0 %v1785
    %2640 = vmatpush.bf16.msra.mxu0 %v1769
    %2641 = vmatpush.bf16.msra.mxu0 %v1753
    %2642 = vmatpush.bf16.msra.mxu0 %v1737
    %2643 = vmatpush.bf16.msra.mxu0 %v1721
    %2644 = vmatpush.bf16.msra.mxu0 %v1705
    %2645 = vmatmul.bf16.gmra.mxu0 %v543
    %v2646 = vpop.f32.mrf.mxu0
    %v2647 = vadd.f32 0.0, %v2646
    %v2648 = vpop.f32.mrf.mxu0
    %v2649 = vadd.f32 0.0, %v2648
    %2650 = vdwg.mxu0
    %2651 = vmatpush.bf16.msra.mxu0 %v1945
    %2652 = vmatpush.bf16.msra.mxu0 %v1929
    %2653 = vmatpush.bf16.msra.mxu0 %v1913
    %2654 = vmatpush.bf16.msra.mxu0 %v1897
    %2655 = vmatpush.bf16.msra.mxu0 %v1881
    %2656 = vmatpush.bf16.msra.mxu0 %v1865
    %2657 = vmatpush.bf16.msra.mxu0 %v1849
    %2658 = vmatpush.bf16.msra.mxu0 %v1833
    %2659 = vmatmul.bf16.gmra.mxu0 %v544
    %v2660 = vpop.f32.mrf.mxu0
    %v2661 = vadd.f32 %v2647, %v2660
    %v2662 = vpop.f32.mrf.mxu0
    %v2663 = vadd.f32 %v2649, %v2662
    %2664 = vdwg.mxu0
    %2665 = vmatpush.bf16.msra.mxu0 %v2073
    %2666 = vmatpush.bf16.msra.mxu0 %v2057
    %2667 = vmatpush.bf16.msra.mxu0 %v2041
    %2668 = vmatpush.bf16.msra.mxu0 %v2025
    %2669 = vmatpush.bf16.msra.mxu0 %v2009
    %2670 = vmatpush.bf16.msra.mxu0 %v1993
    %2671 = vmatpush.bf16.msra.mxu0 %v1977
    %2672 = vmatpush.bf16.msra.mxu0 %v1961
    %2673 = vmatmul.bf16.gmra.mxu0 %v545
    %v2674 = vpop.f32.mrf.mxu0
    %v2675 = vadd.f32 %v2661, %v2674
    %v2676 = vpop.f32.mrf.mxu0
    %v2677 = vadd.f32 %v2663, %v2676
    %2678 = vdwg.mxu0
    %2679 = vmatpush.bf16.msra.mxu0 %v1818
    %2680 = vmatpush.bf16.msra.mxu0 %v1802
    %2681 = vmatpush.bf16.msra.mxu0 %v1786
    %2682 = vmatpush.bf16.msra.mxu0 %v1770
    %2683 = vmatpush.bf16.msra.mxu0 %v1754
    %2684 = vmatpush.bf16.msra.mxu0 %v1738
    %2685 = vmatpush.bf16.msra.mxu0 %v1722
    %2686 = vmatpush.bf16.msra.mxu0 %v1706
    %2687 = vmatmul.bf16.gmra.mxu0 %v543
    %v2688 = vpop.f32.mrf.mxu0
    %v2689 = vadd.f32 0.0, %v2688
    %v2690 = vpop.f32.mrf.mxu0
    %v2691 = vadd.f32 0.0, %v2690
    %2692 = vdwg.mxu0
    %2693 = vmatpush.bf16.msra.mxu0 %v1946
    %2694 = vmatpush.bf16.msra.mxu0 %v1930
    %2695 = vmatpush.bf16.msra.mxu0 %v1914
    %2696 = vmatpush.bf16.msra.mxu0 %v1898
    %2697 = vmatpush.bf16.msra.mxu0 %v1882
    %2698 = vmatpush.bf16.msra.mxu0 %v1866
    %2699 = vmatpush.bf16.msra.mxu0 %v1850
    %2700 = vmatpush.bf16.msra.mxu0 %v1834
    %2701 = vmatmul.bf16.gmra.mxu0 %v544
    %v2702 = vpop.f32.mrf.mxu0
    %v2703 = vadd.f32 %v2689, %v2702
    %v2704 = vpop.f32.mrf.mxu0
    %v2705 = vadd.f32 %v2691, %v2704
    %2706 = vdwg.mxu0
    %2707 = vmatpush.bf16.msra.mxu0 %v2074
    %2708 = vmatpush.bf16.msra.mxu0 %v2058
    %2709 = vmatpush.bf16.msra.mxu0 %v2042
    %2710 = vmatpush.bf16.msra.mxu0 %v2026
    %2711 = vmatpush.bf16.msra.mxu0 %v2010
    %2712 = vmatpush.bf16.msra.mxu0 %v1994
    %2713 = vmatpush.bf16.msra.mxu0 %v1978
    %2714 = vmatpush.bf16.msra.mxu0 %v1962
    %2715 = vmatmul.bf16.gmra.mxu0 %v545
    %v2716 = vpop.f32.mrf.mxu0
    %v2717 = vadd.f32 %v2703, %v2716
    %v2718 = vpop.f32.mrf.mxu0
    %v2719 = vadd.f32 %v2705, %v2718
    %2720 = vdwg.mxu0
    %2721 = vmatpush.bf16.msra.mxu0 %v1819
    %2722 = vmatpush.bf16.msra.mxu0 %v1803
    %2723 = vmatpush.bf16.msra.mxu0 %v1787
    %2724 = vmatpush.bf16.msra.mxu0 %v1771
    %2725 = vmatpush.bf16.msra.mxu0 %v1755
    %2726 = vmatpush.bf16.msra.mxu0 %v1739
    %2727 = vmatpush.bf16.msra.mxu0 %v1723
    %2728 = vmatpush.bf16.msra.mxu0 %v1707
    %2729 = vmatmul.bf16.gmra.mxu0 %v543
    %v2730 = vpop.f32.mrf.mxu0
    %v2731 = vadd.f32 0.0, %v2730
    %v2732 = vpop.f32.mrf.mxu0
    %v2733 = vadd.f32 0.0, %v2732
    %2734 = vdwg.mxu0
    %2735 = vmatpush.bf16.msra.mxu0 %v1947
    %2736 = vmatpush.bf16.msra.mxu0 %v1931
    %2737 = vmatpush.bf16.msra.mxu0 %v1915
    %2738 = vmatpush.bf16.msra.mxu0 %v1899
    %2739 = vmatpush.bf16.msra.mxu0 %v1883
    %2740 = vmatpush.bf16.msra.mxu0 %v1867
    %2741 = vmatpush.bf16.msra.mxu0 %v1851
    %2742 = vmatpush.bf16.msra.mxu0 %v1835
    %2743 = vmatmul.bf16.gmra.mxu0 %v544
    %v2744 = vpop.f32.mrf.mxu0
    %v2745 = vadd.f32 %v2731, %v2744
    %v2746 = vpop.f32.mrf.mxu0
    %v2747 = vadd.f32 %v2733, %v2746
    %2748 = vdwg.mxu0
    %2749 = vmatpush.bf16.msra.mxu0 %v2075
    %2750 = vmatpush.bf16.msra.mxu0 %v2059
    %2751 = vmatpush.bf16.msra.mxu0 %v2043
    %2752 = vmatpush.bf16.msra.mxu0 %v2027
    %2753 = vmatpush.bf16.msra.mxu0 %v2011
    %2754 = vmatpush.bf16.msra.mxu0 %v1995
    %2755 = vmatpush.bf16.msra.mxu0 %v1979
    %2756 = vmatpush.bf16.msra.mxu0 %v1963
    %2757 = vmatmul.bf16.gmra.mxu0 %v545
    %v2758 = vpop.f32.mrf.mxu0
    %v2759 = vadd.f32 %v2745, %v2758
    %v2760 = vpop.f32.mrf.mxu0
    %v2761 = vadd.f32 %v2747, %v2760
    %2762 = vdwg.mxu0
    %2763 = vmatpush.bf16.msra.mxu0 %v1820
    %2764 = vmatpush.bf16.msra.mxu0 %v1804
    %2765 = vmatpush.bf16.msra.mxu0 %v1788
    %2766 = vmatpush.bf16.msra.mxu0 %v1772
    %2767 = vmatpush.bf16.msra.mxu0 %v1756
    %2768 = vmatpush.bf16.msra.mxu0 %v1740
    %2769 = vmatpush.bf16.msra.mxu0 %v1724
    %2770 = vmatpush.bf16.msra.mxu0 %v1708
    %2771 = vmatmul.bf16.gmra.mxu0 %v543
    %v2772 = vpop.f32.mrf.mxu0
    %v2773 = vadd.f32 0.0, %v2772
    %v2774 = vpop.f32.mrf.mxu0
    %v2775 = vadd.f32 0.0, %v2774
    %2776 = vdwg.mxu0
    %2777 = vmatpush.bf16.msra.mxu0 %v1948
    %2778 = vmatpush.bf16.msra.mxu0 %v1932
    %2779 = vmatpush.bf16.msra.mxu0 %v1916
    %2780 = vmatpush.bf16.msra.mxu0 %v1900
    %2781 = vmatpush.bf16.msra.mxu0 %v1884
    %2782 = vmatpush.bf16.msra.mxu0 %v1868
    %2783 = vmatpush.bf16.msra.mxu0 %v1852
    %2784 = vmatpush.bf16.msra.mxu0 %v1836
    %2785 = vmatmul.bf16.gmra.mxu0 %v544
    %v2786 = vpop.f32.mrf.mxu0
    %v2787 = vadd.f32 %v2773, %v2786
    %v2788 = vpop.f32.mrf.mxu0
    %v2789 = vadd.f32 %v2775, %v2788
    %2790 = vdwg.mxu0
    %2791 = vmatpush.bf16.msra.mxu0 %v2076
    %2792 = vmatpush.bf16.msra.mxu0 %v2060
    %2793 = vmatpush.bf16.msra.mxu0 %v2044
    %2794 = vmatpush.bf16.msra.mxu0 %v2028
    %2795 = vmatpush.bf16.msra.mxu0 %v2012
    %2796 = vmatpush.bf16.msra.mxu0 %v1996
    %2797 = vmatpush.bf16.msra.mxu0 %v1980
    %2798 = vmatpush.bf16.msra.mxu0 %v1964
    %2799 = vmatmul.bf16.gmra.mxu0 %v545
    %v2800 = vpop.f32.mrf.mxu0
    %v2801 = vadd.f32 %v2787, %v2800
    %v2802 = vpop.f32.mrf.mxu0
    %v2803 = vadd.f32 %v2789, %v2802
    %2804 = vdwg.mxu0
    %2805 = vmatpush.bf16.msra.mxu0 %v1821
    %2806 = vmatpush.bf16.msra.mxu0 %v1805
    %2807 = vmatpush.bf16.msra.mxu0 %v1789
    %2808 = vmatpush.bf16.msra.mxu0 %v1773
    %2809 = vmatpush.bf16.msra.mxu0 %v1757
    %2810 = vmatpush.bf16.msra.mxu0 %v1741
    %2811 = vmatpush.bf16.msra.mxu0 %v1725
    %2812 = vmatpush.bf16.msra.mxu0 %v1709
    %2813 = vmatmul.bf16.gmra.mxu0 %v543
    %v2814 = vpop.f32.mrf.mxu0
    %v2815 = vadd.f32 0.0, %v2814
    %v2816 = vpop.f32.mrf.mxu0
    %v2817 = vadd.f32 0.0, %v2816
    %2818 = vdwg.mxu0
    %2819 = vmatpush.bf16.msra.mxu0 %v1949
    %2820 = vmatpush.bf16.msra.mxu0 %v1933
    %2821 = vmatpush.bf16.msra.mxu0 %v1917
    %2822 = vmatpush.bf16.msra.mxu0 %v1901
    %2823 = vmatpush.bf16.msra.mxu0 %v1885
    %2824 = vmatpush.bf16.msra.mxu0 %v1869
    %2825 = vmatpush.bf16.msra.mxu0 %v1853
    %2826 = vmatpush.bf16.msra.mxu0 %v1837
    %2827 = vmatmul.bf16.gmra.mxu0 %v544
    %v2828 = vpop.f32.mrf.mxu0
    %v2829 = vadd.f32 %v2815, %v2828
    %v2830 = vpop.f32.mrf.mxu0
    %v2831 = vadd.f32 %v2817, %v2830
    %2832 = vdwg.mxu0
    %2833 = vmatpush.bf16.msra.mxu0 %v2077
    %2834 = vmatpush.bf16.msra.mxu0 %v2061
    %2835 = vmatpush.bf16.msra.mxu0 %v2045
    %2836 = vmatpush.bf16.msra.mxu0 %v2029
    %2837 = vmatpush.bf16.msra.mxu0 %v2013
    %2838 = vmatpush.bf16.msra.mxu0 %v1997
    %2839 = vmatpush.bf16.msra.mxu0 %v1981
    %2840 = vmatpush.bf16.msra.mxu0 %v1965
    %2841 = vmatmul.bf16.gmra.mxu0 %v545
    %v2842 = vpop.f32.mrf.mxu0
    %v2843 = vadd.f32 %v2829, %v2842
    %v2844 = vpop.f32.mrf.mxu0
    %v2845 = vadd.f32 %v2831, %v2844
    %2846 = vdwg.mxu0
    %2847 = vmatpush.bf16.msra.mxu0 %v1822
    %2848 = vmatpush.bf16.msra.mxu0 %v1806
    %2849 = vmatpush.bf16.msra.mxu0 %v1790
    %2850 = vmatpush.bf16.msra.mxu0 %v1774
    %2851 = vmatpush.bf16.msra.mxu0 %v1758
    %2852 = vmatpush.bf16.msra.mxu0 %v1742
    %2853 = vmatpush.bf16.msra.mxu0 %v1726
    %2854 = vmatpush.bf16.msra.mxu0 %v1710
    %2855 = vmatmul.bf16.gmra.mxu0 %v543
    %v2856 = vpop.f32.mrf.mxu0
    %v2857 = vadd.f32 0.0, %v2856
    %v2858 = vpop.f32.mrf.mxu0
    %v2859 = vadd.f32 0.0, %v2858
    %2860 = vdwg.mxu0
    %2861 = vmatpush.bf16.msra.mxu0 %v1950
    %2862 = vmatpush.bf16.msra.mxu0 %v1934
    %2863 = vmatpush.bf16.msra.mxu0 %v1918
    %2864 = vmatpush.bf16.msra.mxu0 %v1902
    %2865 = vmatpush.bf16.msra.mxu0 %v1886
    %2866 = vmatpush.bf16.msra.mxu0 %v1870
    %2867 = vmatpush.bf16.msra.mxu0 %v1854
    %2868 = vmatpush.bf16.msra.mxu0 %v1838
    %2869 = vmatmul.bf16.gmra.mxu0 %v544
    %v2870 = vpop.f32.mrf.mxu0
    %v2871 = vadd.f32 %v2857, %v2870
    %v2872 = vpop.f32.mrf.mxu0
    %v2873 = vadd.f32 %v2859, %v2872
    %2874 = vdwg.mxu0
    %2875 = vmatpush.bf16.msra.mxu0 %v2078
    %2876 = vmatpush.bf16.msra.mxu0 %v2062
    %2877 = vmatpush.bf16.msra.mxu0 %v2046
    %2878 = vmatpush.bf16.msra.mxu0 %v2030
    %2879 = vmatpush.bf16.msra.mxu0 %v2014
    %2880 = vmatpush.bf16.msra.mxu0 %v1998
    %2881 = vmatpush.bf16.msra.mxu0 %v1982
    %2882 = vmatpush.bf16.msra.mxu0 %v1966
    %2883 = vmatmul.bf16.gmra.mxu0 %v545
    %v2884 = vpop.f32.mrf.mxu0
    %v2885 = vadd.f32 %v2871, %v2884
    %v2886 = vpop.f32.mrf.mxu0
    %v2887 = vadd.f32 %v2873, %v2886
    %2888 = vdwg.mxu0
    %2889 = vmatpush.bf16.msra.mxu0 %v1823
    %2890 = vmatpush.bf16.msra.mxu0 %v1807
    %2891 = vmatpush.bf16.msra.mxu0 %v1791
    %2892 = vmatpush.bf16.msra.mxu0 %v1775
    %2893 = vmatpush.bf16.msra.mxu0 %v1759
    %2894 = vmatpush.bf16.msra.mxu0 %v1743
    %2895 = vmatpush.bf16.msra.mxu0 %v1727
    %2896 = vmatpush.bf16.msra.mxu0 %v1711
    %2897 = vmatmul.bf16.gmra.mxu0 %v543
    %v2898 = vpop.f32.mrf.mxu0
    %v2899 = vadd.f32 0.0, %v2898
    %v2900 = vpop.f32.mrf.mxu0
    %v2901 = vadd.f32 0.0, %v2900
    %2902 = vdwg.mxu0
    %2903 = vmatpush.bf16.msra.mxu0 %v1951
    %2904 = vmatpush.bf16.msra.mxu0 %v1935
    %2905 = vmatpush.bf16.msra.mxu0 %v1919
    %2906 = vmatpush.bf16.msra.mxu0 %v1903
    %2907 = vmatpush.bf16.msra.mxu0 %v1887
    %2908 = vmatpush.bf16.msra.mxu0 %v1871
    %2909 = vmatpush.bf16.msra.mxu0 %v1855
    %2910 = vmatpush.bf16.msra.mxu0 %v1839
    %2911 = vmatmul.bf16.gmra.mxu0 %v544
    %v2912 = vpop.f32.mrf.mxu0
    %v2913 = vadd.f32 %v2899, %v2912
    %v2914 = vpop.f32.mrf.mxu0
    %v2915 = vadd.f32 %v2901, %v2914
    %2916 = vdwg.mxu0
    %2917 = vmatpush.bf16.msra.mxu0 %v2079
    %2918 = vmatpush.bf16.msra.mxu0 %v2063
    %2919 = vmatpush.bf16.msra.mxu0 %v2047
    %2920 = vmatpush.bf16.msra.mxu0 %v2031
    %2921 = vmatpush.bf16.msra.mxu0 %v2015
    %2922 = vmatpush.bf16.msra.mxu0 %v1999
    %2923 = vmatpush.bf16.msra.mxu0 %v1983
    %2924 = vmatpush.bf16.msra.mxu0 %v1967
    %2925 = vmatmul.bf16.gmra.mxu0 %v545
    %v2926 = vpop.f32.mrf.mxu0
    %v2927 = vadd.f32 %v2913, %v2926
    %v2928 = vpop.f32.mrf.mxu0
    %v2929 = vadd.f32 %v2915, %v2928
    %2930 = vdwg.mxu0
    %2931 = vmatpush.bf16.msra.mxu0 %v1824
    %2932 = vmatpush.bf16.msra.mxu0 %v1808
    %2933 = vmatpush.bf16.msra.mxu0 %v1792
    %2934 = vmatpush.bf16.msra.mxu0 %v1776
    %2935 = vmatpush.bf16.msra.mxu0 %v1760
    %2936 = vmatpush.bf16.msra.mxu0 %v1744
    %2937 = vmatpush.bf16.msra.mxu0 %v1728
    %2938 = vmatpush.bf16.msra.mxu0 %v1712
    %2939 = vmatmul.bf16.gmra.mxu0 %v543
    %v2940 = vpop.f32.mrf.mxu0
    %v2941 = vadd.f32 0.0, %v2940
    %v2942 = vpop.f32.mrf.mxu0
    %v2943 = vadd.f32 0.0, %v2942
    %2944 = vdwg.mxu0
    %2945 = vmatpush.bf16.msra.mxu0 %v1952
    %2946 = vmatpush.bf16.msra.mxu0 %v1936
    %2947 = vmatpush.bf16.msra.mxu0 %v1920
    %2948 = vmatpush.bf16.msra.mxu0 %v1904
    %2949 = vmatpush.bf16.msra.mxu0 %v1888
    %2950 = vmatpush.bf16.msra.mxu0 %v1872
    %2951 = vmatpush.bf16.msra.mxu0 %v1856
    %2952 = vmatpush.bf16.msra.mxu0 %v1840
    %2953 = vmatmul.bf16.gmra.mxu0 %v544
    %v2954 = vpop.f32.mrf.mxu0
    %v2955 = vadd.f32 %v2941, %v2954
    %v2956 = vpop.f32.mrf.mxu0
    %v2957 = vadd.f32 %v2943, %v2956
    %2958 = vdwg.mxu0
    %2959 = vmatpush.bf16.msra.mxu0 %v2080
    %2960 = vmatpush.bf16.msra.mxu0 %v2064
    %2961 = vmatpush.bf16.msra.mxu0 %v2048
    %2962 = vmatpush.bf16.msra.mxu0 %v2032
    %2963 = vmatpush.bf16.msra.mxu0 %v2016
    %2964 = vmatpush.bf16.msra.mxu0 %v2000
    %2965 = vmatpush.bf16.msra.mxu0 %v1984
    %2966 = vmatpush.bf16.msra.mxu0 %v1968
    %2967 = vmatmul.bf16.gmra.mxu0 %v545
    %v2968 = vpop.f32.mrf.mxu0
    %v2969 = vadd.f32 %v2955, %v2968
    %v2970 = vpop.f32.mrf.mxu0
    %v2971 = vadd.f32 %v2957, %v2970
    %2972 = vdwg.mxu0
    %2973 = vmatpush.bf16.msra.mxu0 %v1825
    %2974 = vmatpush.bf16.msra.mxu0 %v1809
    %2975 = vmatpush.bf16.msra.mxu0 %v1793
    %2976 = vmatpush.bf16.msra.mxu0 %v1777
    %2977 = vmatpush.bf16.msra.mxu0 %v1761
    %2978 = vmatpush.bf16.msra.mxu0 %v1745
    %2979 = vmatpush.bf16.msra.mxu0 %v1729
    %2980 = vmatpush.bf16.msra.mxu0 %v1713
    %2981 = vmatmul.bf16.gmra.mxu0 %v543
    %v2982 = vpop.f32.mrf.mxu0
    %v2983 = vadd.f32 0.0, %v2982
    %v2984 = vpop.f32.mrf.mxu0
    %v2985 = vadd.f32 0.0, %v2984
    %2986 = vdwg.mxu0
    %2987 = vmatpush.bf16.msra.mxu0 %v1953
    %2988 = vmatpush.bf16.msra.mxu0 %v1937
    %2989 = vmatpush.bf16.msra.mxu0 %v1921
    %2990 = vmatpush.bf16.msra.mxu0 %v1905
    %2991 = vmatpush.bf16.msra.mxu0 %v1889
    %2992 = vmatpush.bf16.msra.mxu0 %v1873
    %2993 = vmatpush.bf16.msra.mxu0 %v1857
    %2994 = vmatpush.bf16.msra.mxu0 %v1841
    %2995 = vmatmul.bf16.gmra.mxu0 %v544
    %v2996 = vpop.f32.mrf.mxu0
    %v2997 = vadd.f32 %v2983, %v2996
    %v2998 = vpop.f32.mrf.mxu0
    %v2999 = vadd.f32 %v2985, %v2998
    %3000 = vdwg.mxu0
    %3001 = vmatpush.bf16.msra.mxu0 %v2081
    %3002 = vmatpush.bf16.msra.mxu0 %v2065
    %3003 = vmatpush.bf16.msra.mxu0 %v2049
    %3004 = vmatpush.bf16.msra.mxu0 %v2033
    %3005 = vmatpush.bf16.msra.mxu0 %v2017
    %3006 = vmatpush.bf16.msra.mxu0 %v2001
    %3007 = vmatpush.bf16.msra.mxu0 %v1985
    %3008 = vmatpush.bf16.msra.mxu0 %v1969
    %3009 = vmatmul.bf16.gmra.mxu0 %v545
    %v3010 = vpop.f32.mrf.mxu0
    %v3011 = vadd.f32 %v2997, %v3010
    %v3012 = vpop.f32.mrf.mxu0
    %v3013 = vadd.f32 %v2999, %v3012
    %3014 = vdwg.mxu0
    %3015 = vmatpush.bf16.msra.mxu0 %v1826
    %3016 = vmatpush.bf16.msra.mxu0 %v1810
    %3017 = vmatpush.bf16.msra.mxu0 %v1794
    %3018 = vmatpush.bf16.msra.mxu0 %v1778
    %3019 = vmatpush.bf16.msra.mxu0 %v1762
    %3020 = vmatpush.bf16.msra.mxu0 %v1746
    %3021 = vmatpush.bf16.msra.mxu0 %v1730
    %3022 = vmatpush.bf16.msra.mxu0 %v1714
    %3023 = vmatmul.bf16.gmra.mxu0 %v543
    %v3024 = vpop.f32.mrf.mxu0
    %v3025 = vadd.f32 0.0, %v3024
    %v3026 = vpop.f32.mrf.mxu0
    %v3027 = vadd.f32 0.0, %v3026
    %3028 = vdwg.mxu0
    %3029 = vmatpush.bf16.msra.mxu0 %v1954
    %3030 = vmatpush.bf16.msra.mxu0 %v1938
    %3031 = vmatpush.bf16.msra.mxu0 %v1922
    %3032 = vmatpush.bf16.msra.mxu0 %v1906
    %3033 = vmatpush.bf16.msra.mxu0 %v1890
    %3034 = vmatpush.bf16.msra.mxu0 %v1874
    %3035 = vmatpush.bf16.msra.mxu0 %v1858
    %3036 = vmatpush.bf16.msra.mxu0 %v1842
    %3037 = vmatmul.bf16.gmra.mxu0 %v544
    %v3038 = vpop.f32.mrf.mxu0
    %v3039 = vadd.f32 %v3025, %v3038
    %v3040 = vpop.f32.mrf.mxu0
    %v3041 = vadd.f32 %v3027, %v3040
    %3042 = vdwg.mxu0
    %3043 = vmatpush.bf16.msra.mxu0 %v2082
    %3044 = vmatpush.bf16.msra.mxu0 %v2066
    %3045 = vmatpush.bf16.msra.mxu0 %v2050
    %3046 = vmatpush.bf16.msra.mxu0 %v2034
    %3047 = vmatpush.bf16.msra.mxu0 %v2018
    %3048 = vmatpush.bf16.msra.mxu0 %v2002
    %3049 = vmatpush.bf16.msra.mxu0 %v1986
    %3050 = vmatpush.bf16.msra.mxu0 %v1970
    %3051 = vmatmul.bf16.gmra.mxu0 %v545
    %v3052 = vpop.f32.mrf.mxu0
    %v3053 = vadd.f32 %v3039, %v3052
    %v3054 = vpop.f32.mrf.mxu0
    %v3055 = vadd.f32 %v3041, %v3054
    %3056 = vdwg.mxu0
    %3057 = vmatpush.bf16.msra.mxu0 %v1827
    %3058 = vmatpush.bf16.msra.mxu0 %v1811
    %3059 = vmatpush.bf16.msra.mxu0 %v1795
    %3060 = vmatpush.bf16.msra.mxu0 %v1779
    %3061 = vmatpush.bf16.msra.mxu0 %v1763
    %3062 = vmatpush.bf16.msra.mxu0 %v1747
    %3063 = vmatpush.bf16.msra.mxu0 %v1731
    %3064 = vmatpush.bf16.msra.mxu0 %v1715
    %3065 = vmatmul.bf16.gmra.mxu0 %v543
    %v3066 = vpop.f32.mrf.mxu0
    %v3067 = vadd.f32 0.0, %v3066
    %v3068 = vpop.f32.mrf.mxu0
    %v3069 = vadd.f32 0.0, %v3068
    %3070 = vdwg.mxu0
    %3071 = vmatpush.bf16.msra.mxu0 %v1955
    %3072 = vmatpush.bf16.msra.mxu0 %v1939
    %3073 = vmatpush.bf16.msra.mxu0 %v1923
    %3074 = vmatpush.bf16.msra.mxu0 %v1907
    %3075 = vmatpush.bf16.msra.mxu0 %v1891
    %3076 = vmatpush.bf16.msra.mxu0 %v1875
    %3077 = vmatpush.bf16.msra.mxu0 %v1859
    %3078 = vmatpush.bf16.msra.mxu0 %v1843
    %3079 = vmatmul.bf16.gmra.mxu0 %v544
    %v3080 = vpop.f32.mrf.mxu0
    %v3081 = vadd.f32 %v3067, %v3080
    %v3082 = vpop.f32.mrf.mxu0
    %v3083 = vadd.f32 %v3069, %v3082
    %3084 = vdwg.mxu0
    %3085 = vmatpush.bf16.msra.mxu0 %v2083
    %3086 = vmatpush.bf16.msra.mxu0 %v2067
    %3087 = vmatpush.bf16.msra.mxu0 %v2051
    %3088 = vmatpush.bf16.msra.mxu0 %v2035
    %3089 = vmatpush.bf16.msra.mxu0 %v2019
    %3090 = vmatpush.bf16.msra.mxu0 %v2003
    %3091 = vmatpush.bf16.msra.mxu0 %v1987
    %3092 = vmatpush.bf16.msra.mxu0 %v1971
    %3093 = vmatmul.bf16.gmra.mxu0 %v545
    %v3094 = vpop.f32.mrf.mxu0
    %v3095 = vadd.f32 %v3081, %v3094
    %v3096 = vpop.f32.mrf.mxu0
    %v3097 = vadd.f32 %v3083, %v3096
    %3098 = vdwg.mxu0
    %3099 = vmatpush.bf16.msra.mxu0 %v1828
    %3100 = vmatpush.bf16.msra.mxu0 %v1812
    %3101 = vmatpush.bf16.msra.mxu0 %v1796
    %3102 = vmatpush.bf16.msra.mxu0 %v1780
    %3103 = vmatpush.bf16.msra.mxu0 %v1764
    %3104 = vmatpush.bf16.msra.mxu0 %v1748
    %3105 = vmatpush.bf16.msra.mxu0 %v1732
    %3106 = vmatpush.bf16.msra.mxu0 %v1716
    %3107 = vmatmul.bf16.gmra.mxu0 %v543
    %v3108 = vpop.f32.mrf.mxu0
    %v3109 = vadd.f32 0.0, %v3108
    %v3110 = vpop.f32.mrf.mxu0
    %v3111 = vadd.f32 0.0, %v3110
    %3112 = vdwg.mxu0
    %3113 = vmatpush.bf16.msra.mxu0 %v1956
    %3114 = vmatpush.bf16.msra.mxu0 %v1940
    %3115 = vmatpush.bf16.msra.mxu0 %v1924
    %3116 = vmatpush.bf16.msra.mxu0 %v1908
    %3117 = vmatpush.bf16.msra.mxu0 %v1892
    %3118 = vmatpush.bf16.msra.mxu0 %v1876
    %3119 = vmatpush.bf16.msra.mxu0 %v1860
    %3120 = vmatpush.bf16.msra.mxu0 %v1844
    %3121 = vmatmul.bf16.gmra.mxu0 %v544
    %v3122 = vpop.f32.mrf.mxu0
    %v3123 = vadd.f32 %v3109, %v3122
    %v3124 = vpop.f32.mrf.mxu0
    %v3125 = vadd.f32 %v3111, %v3124
    %3126 = vdwg.mxu0
    %3127 = vmatpush.bf16.msra.mxu0 %v2084
    %3128 = vmatpush.bf16.msra.mxu0 %v2068
    %3129 = vmatpush.bf16.msra.mxu0 %v2052
    %3130 = vmatpush.bf16.msra.mxu0 %v2036
    %3131 = vmatpush.bf16.msra.mxu0 %v2020
    %3132 = vmatpush.bf16.msra.mxu0 %v2004
    %3133 = vmatpush.bf16.msra.mxu0 %v1988
    %3134 = vmatpush.bf16.msra.mxu0 %v1972
    %3135 = vmatmul.bf16.gmra.mxu0 %v545
    %v3136 = vpop.f32.mrf.mxu0
    %v3137 = vadd.f32 %v3123, %v3136
    %v3138 = vpop.f32.mrf.mxu0
    %v3139 = vadd.f32 %v3125, %v3138
    %3140 = vdwg.mxu0
    %v3141 = vmax.f32 %v2507, %v2675
    %v3142 = vmax.f32 %v2549, %v2717
    %v3143 = vmax.f32 %v2591, %v2759
    %v3144 = vmax.f32 %v2633, %v2801
    %v3145 = vmax.f32 %v2509, %v2677
    %v3146 = vmax.f32 %v2551, %v2719
    %v3147 = vmax.f32 %v2593, %v2761
    %v3148 = vmax.f32 %v2635, %v2803
    %v3149 = vmax.f32 %v2843, %v3011
    %v3150 = vmax.f32 %v2885, %v3053
    %v3151 = vmax.f32 %v2927, %v3095
    %v3152 = vmax.f32 %v2969, %v3137
    %v3153 = vmax.f32 %v2845, %v3013
    %v3154 = vmax.f32 %v2887, %v3055
    %v3155 = vmax.f32 %v2929, %v3097
    %v3156 = vmax.f32 %v2971, %v3139
    %v3157 = vmax.f32 %v3141, %v3149
    %v3158 = vmax.f32 %v3142, %v3150
    %v3159 = vmax.f32 %v3143, %v3151
    %v3160 = vmax.f32 %v3144, %v3152
    %v3161 = vmax.f32 %v3145, %v3153
    %v3162 = vmax.f32 %v3146, %v3154
    %v3163 = vmax.f32 %v3147, %v3155
    %v3164 = vmax.f32 %v3148, %v3156
    %v3165 = vld [vmem:[#allocation5] sm:$0xf]
    %v3167 = vperm.slane %v3165, 0
    %v3168 = vperm.slane %v3165, 1
    %v3169 = vperm.slane %v3165, 2
    %v3170 = vperm.slane %v3165, 3
    %v3175 = vadd.f32 %v3157, %v3167
    %v3176 = vadd.f32 %v3158, %v3168
    %v3177 = vadd.f32 %v3159, %v3169
    %v3178 = vadd.f32 %v3160, %v3170
    %v3179 = vadd.f32 %v3161, %v3167
    %v3180 = vadd.f32 %v3162, %v3168
    %v3181 = vadd.f32 %v3163, %v3169
    %v3182 = vadd.f32 %v3164, %v3170
    %v3183 = vmax.f32 %v3175, 0.0
    %v3184 = vmax.f32 %v3176, 0.0
    %v3185 = vmax.f32 %v3177, 0.0
    %v3186 = vmax.f32 %v3178, 0.0
    %v3187 = vmax.f32 %v3179, 0.0
    %v3188 = vmax.f32 %v3180, 0.0
    %v3189 = vmax.f32 %v3181, 0.0
    %v3190 = vmax.f32 %v3182, 0.0
    %v3191 = vpack.c.bf16 %v3187, %v3183
    %v3192 = vpack.c.bf16 %v3188, %v3184
    %v3193 = vpack.c.bf16 %v3189, %v3185
    %v3194 = vpack.c.bf16 %v3190, %v3186
    %v3195 = vld [vmem:[#allocation7] sm:$0xff]
    %v3196 = vld [vmem:[#allocation7 + $0x8] sm:$0xff]
    %v3197 = vld [vmem:[#allocation7 + $0x10] sm:$0xff]
    %v3198 = vld [vmem:[#allocation7 + $0x18] sm:$0xff]
    %v3199 = vld [vmem:[#allocation7 + $0x20] sm:$0xff]
    %v3200 = vld [vmem:[#allocation7 + $0x28] sm:$0xff]
    %v3201 = vld [vmem:[#allocation7 + $0x30] sm:$0xff]
    %v3202 = vld [vmem:[#allocation7 + $0x38] sm:$0xff]
    %v3203 = vld [vmem:[#allocation7 + $0x40] sm:$0xff]
    %v3204 = vld [vmem:[#allocation7 + $0x48] sm:$0xff]
    %v3205 = vld [vmem:[#allocation7 + $0x50] sm:$0xff]
    %v3206 = vld [vmem:[#allocation7 + $0x58] sm:$0xff]
    %v3207 = vld [vmem:[#allocation7 + $0x60] sm:$0xff]
    %v3208 = vld [vmem:[#allocation7 + $0x68] sm:$0xff]
    %v3209 = vld [vmem:[#allocation7 + $0x70] sm:$0xff]
    %v3210 = vld [vmem:[#allocation7 + $0x78] sm:$0xff]
    %v3211 = vld [vmem:[#allocation7 + $0x80] sm:$0xff]
    %v3212 = vld [vmem:[#allocation7 + $0x88] sm:$0xff]
    %v3213 = vld [vmem:[#allocation7 + $0x90] sm:$0xff]
    %v3214 = vld [vmem:[#allocation7 + $0x98] sm:$0xff]
    %v3215 = vld [vmem:[#allocation7 + $0xa0] sm:$0xff]
    %v3216 = vld [vmem:[#allocation7 + $0xa8] sm:$0xff]
    %v3217 = vld [vmem:[#allocation7 + $0xb0] sm:$0xff]
    %v3218 = vld [vmem:[#allocation7 + $0xb8] sm:$0xff]
    %v3219 = vld [vmem:[#allocation7 + $0xc0] sm:$0xff]
    %v3220 = vld [vmem:[#allocation7 + $0xc8] sm:$0xff]
    %v3221 = vld [vmem:[#allocation7 + $0xd0] sm:$0xff]
    %v3222 = vld [vmem:[#allocation7 + $0xd8] sm:$0xff]
    %v3223 = vld [vmem:[#allocation7 + $0xe0] sm:$0xff]
    %v3224 = vld [vmem:[#allocation7 + $0xe8] sm:$0xff]
    %v3225 = vld [vmem:[#allocation7 + $0xf0] sm:$0xff]
    %v3226 = vld [vmem:[#allocation7 + $0xf8] sm:$0xff]
    %v3227 = vld [vmem:[#allocation7 + $0x100] sm:$0xff]
    %v3228 = vld [vmem:[#allocation7 + $0x108] sm:$0xff]
    %v3229 = vld [vmem:[#allocation7 + $0x110] sm:$0xff]
    %v3230 = vld [vmem:[#allocation7 + $0x118] sm:$0xff]
    %v3231 = vld [vmem:[#allocation7 + $0x120] sm:$0xff]
    %v3232 = vld [vmem:[#allocation7 + $0x128] sm:$0xff]
    %v3233 = vld [vmem:[#allocation7 + $0x130] sm:$0xff]
    %v3234 = vld [vmem:[#allocation7 + $0x138] sm:$0xff]
    %v3235 = vld [vmem:[#allocation7 + $0x140] sm:$0xff]
    %v3236 = vld [vmem:[#allocation7 + $0x148] sm:$0xff]
    %v3237 = vld [vmem:[#allocation7 + $0x150] sm:$0xff]
    %v3238 = vld [vmem:[#allocation7 + $0x158] sm:$0xff]
    %v3239 = vld [vmem:[#allocation7 + $0x160] sm:$0xff]
    %v3240 = vld [vmem:[#allocation7 + $0x168] sm:$0xff]
    %v3241 = vld [vmem:[#allocation7 + $0x170] sm:$0xff]
    %v3242 = vld [vmem:[#allocation7 + $0x178] sm:$0xff]
    %v3243 = vld [vmem:[#allocation7 + $0x180] sm:$0xff]
    %v3244 = vld [vmem:[#allocation7 + $0x188] sm:$0xff]
    %v3245 = vld [vmem:[#allocation7 + $0x190] sm:$0xff]
    %v3246 = vld [vmem:[#allocation7 + $0x198] sm:$0xff]
    %v3247 = vld [vmem:[#allocation7 + $0x1a0] sm:$0xff]
    %v3248 = vld [vmem:[#allocation7 + $0x1a8] sm:$0xff]
    %v3249 = vld [vmem:[#allocation7 + $0x1b0] sm:$0xff]
    %v3250 = vld [vmem:[#allocation7 + $0x1b8] sm:$0xff]
    %v3251 = vld [vmem:[#allocation7 + $0x1c0] sm:$0xff]
    %v3252 = vld [vmem:[#allocation7 + $0x1c8] sm:$0xff]
    %v3253 = vld [vmem:[#allocation7 + $0x1d0] sm:$0xff]
    %v3254 = vld [vmem:[#allocation7 + $0x1d8] sm:$0xff]
    %v3255 = vld [vmem:[#allocation7 + $0x1e0] sm:$0xff]
    %v3256 = vld [vmem:[#allocation7 + $0x1e8] sm:$0xff]
    %v3257 = vld [vmem:[#allocation7 + $0x1f0] sm:$0xff]
    %v3258 = vld [vmem:[#allocation7 + $0x1f8] sm:$0xff]
    %v3259 = vld [vmem:[#allocation7 + $0x200] sm:$0xff]
    %v3260 = vld [vmem:[#allocation7 + $0x208] sm:$0xff]
    %v3261 = vld [vmem:[#allocation7 + $0x210] sm:$0xff]
    %v3262 = vld [vmem:[#allocation7 + $0x218] sm:$0xff]
    %v3263 = vld [vmem:[#allocation7 + $0x220] sm:$0xff]
    %v3264 = vld [vmem:[#allocation7 + $0x228] sm:$0xff]
    %v3265 = vld [vmem:[#allocation7 + $0x230] sm:$0xff]
    %v3266 = vld [vmem:[#allocation7 + $0x238] sm:$0xff]
    %v3267 = vld [vmem:[#allocation7 + $0x240] sm:$0xff]
    %v3268 = vld [vmem:[#allocation7 + $0x248] sm:$0xff]
    %v3269 = vld [vmem:[#allocation7 + $0x250] sm:$0xff]
    %v3270 = vld [vmem:[#allocation7 + $0x258] sm:$0xff]
    %v3271 = vld [vmem:[#allocation7 + $0x260] sm:$0xff]
    %v3272 = vld [vmem:[#allocation7 + $0x268] sm:$0xff]
    %v3273 = vld [vmem:[#allocation7 + $0x270] sm:$0xff]
    %v3274 = vld [vmem:[#allocation7 + $0x278] sm:$0xff]
    %v3275 = vld [vmem:[#allocation7 + $0x280] sm:$0xff]
    %v3276 = vld [vmem:[#allocation7 + $0x288] sm:$0xff]
    %v3277 = vld [vmem:[#allocation7 + $0x290] sm:$0xff]
    %v3278 = vld [vmem:[#allocation7 + $0x298] sm:$0xff]
    %v3279 = vld [vmem:[#allocation7 + $0x2a0] sm:$0xff]
    %v3280 = vld [vmem:[#allocation7 + $0x2a8] sm:$0xff]
    %v3281 = vld [vmem:[#allocation7 + $0x2b0] sm:$0xff]
    %v3282 = vld [vmem:[#allocation7 + $0x2b8] sm:$0xff]
    %v3283 = vld [vmem:[#allocation7 + $0x2c0] sm:$0xff]
    %v3284 = vld [vmem:[#allocation7 + $0x2c8] sm:$0xff]
    %v3285 = vld [vmem:[#allocation7 + $0x2d0] sm:$0xff]
    %v3286 = vld [vmem:[#allocation7 + $0x2d8] sm:$0xff]
    %v3287 = vld [vmem:[#allocation7 + $0x2e0] sm:$0xff]
    %v3288 = vld [vmem:[#allocation7 + $0x2e8] sm:$0xff]
    %v3289 = vld [vmem:[#allocation7 + $0x2f0] sm:$0xff]
    %v3290 = vld [vmem:[#allocation7 + $0x2f8] sm:$0xff]
    %v3291 = vld [vmem:[#allocation7 + $0x300] sm:$0xff]
    %v3292 = vld [vmem:[#allocation7 + $0x308] sm:$0xff]
    %v3293 = vld [vmem:[#allocation7 + $0x310] sm:$0xff]
    %v3294 = vld [vmem:[#allocation7 + $0x318] sm:$0xff]
    %v3295 = vld [vmem:[#allocation7 + $0x320] sm:$0xff]
    %v3296 = vld [vmem:[#allocation7 + $0x328] sm:$0xff]
    %v3297 = vld [vmem:[#allocation7 + $0x330] sm:$0xff]
    %v3298 = vld [vmem:[#allocation7 + $0x338] sm:$0xff]
    %v3299 = vld [vmem:[#allocation7 + $0x340] sm:$0xff]
    %v3300 = vld [vmem:[#allocation7 + $0x348] sm:$0xff]
    %v3301 = vld [vmem:[#allocation7 + $0x350] sm:$0xff]
    %v3302 = vld [vmem:[#allocation7 + $0x358] sm:$0xff]
    %v3303 = vld [vmem:[#allocation7 + $0x360] sm:$0xff]
    %v3304 = vld [vmem:[#allocation7 + $0x368] sm:$0xff]
    %v3305 = vld [vmem:[#allocation7 + $0x370] sm:$0xff]
    %v3306 = vld [vmem:[#allocation7 + $0x378] sm:$0xff]
    %v3307 = vld [vmem:[#allocation7 + $0x380] sm:$0xff]
    %v3308 = vld [vmem:[#allocation7 + $0x388] sm:$0xff]
    %v3309 = vld [vmem:[#allocation7 + $0x390] sm:$0xff]
    %v3310 = vld [vmem:[#allocation7 + $0x398] sm:$0xff]
    %v3311 = vld [vmem:[#allocation7 + $0x3a0] sm:$0xff]
    %v3312 = vld [vmem:[#allocation7 + $0x3a8] sm:$0xff]
    %v3313 = vld [vmem:[#allocation7 + $0x3b0] sm:$0xff]
    %v3314 = vld [vmem:[#allocation7 + $0x3b8] sm:$0xff]
    %v3315 = vld [vmem:[#allocation7 + $0x3c0] sm:$0xff]
    %v3316 = vld [vmem:[#allocation7 + $0x3c8] sm:$0xff]
    %v3317 = vld [vmem:[#allocation7 + $0x3d0] sm:$0xff]
    %v3318 = vld [vmem:[#allocation7 + $0x3d8] sm:$0xff]
    %v3319 = vld [vmem:[#allocation7 + $0x3e0] sm:$0xff]
    %v3320 = vld [vmem:[#allocation7 + $0x3e8] sm:$0xff]
    %v3321 = vld [vmem:[#allocation7 + $0x3f0] sm:$0xff]
    %v3322 = vld [vmem:[#allocation7 + $0x3f8] sm:$0xff]
    %v3323 = vld [vmem:[#allocation7 + $0x400] sm:$0xff]
    %v3324 = vld [vmem:[#allocation7 + $0x408] sm:$0xff]
    %v3325 = vld [vmem:[#allocation7 + $0x410] sm:$0xff]
    %v3326 = vld [vmem:[#allocation7 + $0x418] sm:$0xff]
    %v3327 = vld [vmem:[#allocation7 + $0x420] sm:$0xff]
    %v3328 = vld [vmem:[#allocation7 + $0x428] sm:$0xff]
    %v3329 = vld [vmem:[#allocation7 + $0x430] sm:$0xff]
    %v3330 = vld [vmem:[#allocation7 + $0x438] sm:$0xff]
    %v3331 = vld [vmem:[#allocation7 + $0x440] sm:$0xff]
    %v3332 = vld [vmem:[#allocation7 + $0x448] sm:$0xff]
    %v3333 = vld [vmem:[#allocation7 + $0x450] sm:$0xff]
    %v3334 = vld [vmem:[#allocation7 + $0x458] sm:$0xff]
    %v3335 = vld [vmem:[#allocation7 + $0x460] sm:$0xff]
    %v3336 = vld [vmem:[#allocation7 + $0x468] sm:$0xff]
    %v3337 = vld [vmem:[#allocation7 + $0x470] sm:$0xff]
    %v3338 = vld [vmem:[#allocation7 + $0x478] sm:$0xff]
    %v3339 = vld [vmem:[#allocation7 + $0x480] sm:$0xff]
    %v3340 = vld [vmem:[#allocation7 + $0x488] sm:$0xff]
    %v3341 = vld [vmem:[#allocation7 + $0x490] sm:$0xff]
    %v3342 = vld [vmem:[#allocation7 + $0x498] sm:$0xff]
    %v3343 = vld [vmem:[#allocation7 + $0x4a0] sm:$0xff]
    %v3344 = vld [vmem:[#allocation7 + $0x4a8] sm:$0xff]
    %v3345 = vld [vmem:[#allocation7 + $0x4b0] sm:$0xff]
    %v3346 = vld [vmem:[#allocation7 + $0x4b8] sm:$0xff]
    %v3347 = vld [vmem:[#allocation7 + $0x4c0] sm:$0xff]
    %v3348 = vld [vmem:[#allocation7 + $0x4c8] sm:$0xff]
    %v3349 = vld [vmem:[#allocation7 + $0x4d0] sm:$0xff]
    %v3350 = vld [vmem:[#allocation7 + $0x4d8] sm:$0xff]
    %v3351 = vld [vmem:[#allocation7 + $0x4e0] sm:$0xff]
    %v3352 = vld [vmem:[#allocation7 + $0x4e8] sm:$0xff]
    %v3353 = vld [vmem:[#allocation7 + $0x4f0] sm:$0xff]
    %v3354 = vld [vmem:[#allocation7 + $0x4f8] sm:$0xff]
    %v3355 = vld [vmem:[#allocation7 + $0x500] sm:$0xff]
    %v3356 = vld [vmem:[#allocation7 + $0x508] sm:$0xff]
    %v3357 = vld [vmem:[#allocation7 + $0x510] sm:$0xff]
    %v3358 = vld [vmem:[#allocation7 + $0x518] sm:$0xff]
    %v3359 = vld [vmem:[#allocation7 + $0x520] sm:$0xff]
    %v3360 = vld [vmem:[#allocation7 + $0x528] sm:$0xff]
    %v3361 = vld [vmem:[#allocation7 + $0x530] sm:$0xff]
    %v3362 = vld [vmem:[#allocation7 + $0x538] sm:$0xff]
    %v3363 = vld [vmem:[#allocation7 + $0x540] sm:$0xff]
    %v3364 = vld [vmem:[#allocation7 + $0x548] sm:$0xff]
    %v3365 = vld [vmem:[#allocation7 + $0x550] sm:$0xff]
    %v3366 = vld [vmem:[#allocation7 + $0x558] sm:$0xff]
    %v3367 = vld [vmem:[#allocation7 + $0x560] sm:$0xff]
    %v3368 = vld [vmem:[#allocation7 + $0x568] sm:$0xff]
    %v3369 = vld [vmem:[#allocation7 + $0x570] sm:$0xff]
    %v3370 = vld [vmem:[#allocation7 + $0x578] sm:$0xff]
    %v3371 = vld [vmem:[#allocation7 + $0x580] sm:$0xff]
    %v3372 = vld [vmem:[#allocation7 + $0x588] sm:$0xff]
    %v3373 = vld [vmem:[#allocation7 + $0x590] sm:$0xff]
    %v3374 = vld [vmem:[#allocation7 + $0x598] sm:$0xff]
    %v3375 = vld [vmem:[#allocation7 + $0x5a0] sm:$0xff]
    %v3376 = vld [vmem:[#allocation7 + $0x5a8] sm:$0xff]
    %v3377 = vld [vmem:[#allocation7 + $0x5b0] sm:$0xff]
    %v3378 = vld [vmem:[#allocation7 + $0x5b8] sm:$0xff]
    %v3379 = vld [vmem:[#allocation7 + $0x5c0] sm:$0xff]
    %v3380 = vld [vmem:[#allocation7 + $0x5c8] sm:$0xff]
    %v3381 = vld [vmem:[#allocation7 + $0x5d0] sm:$0xff]
    %v3382 = vld [vmem:[#allocation7 + $0x5d8] sm:$0xff]
    %v3383 = vld [vmem:[#allocation7 + $0x5e0] sm:$0xff]
    %v3384 = vld [vmem:[#allocation7 + $0x5e8] sm:$0xff]
    %v3385 = vld [vmem:[#allocation7 + $0x5f0] sm:$0xff]
    %v3386 = vld [vmem:[#allocation7 + $0x5f8] sm:$0xff]
    %v3387 = vld [vmem:[#allocation7 + $0x600] sm:$0xff]
    %v3388 = vld [vmem:[#allocation7 + $0x608] sm:$0xff]
    %v3389 = vld [vmem:[#allocation7 + $0x610] sm:$0xff]
    %v3390 = vld [vmem:[#allocation7 + $0x618] sm:$0xff]
    %v3391 = vld [vmem:[#allocation7 + $0x620] sm:$0xff]
    %v3392 = vld [vmem:[#allocation7 + $0x628] sm:$0xff]
    %v3393 = vld [vmem:[#allocation7 + $0x630] sm:$0xff]
    %v3394 = vld [vmem:[#allocation7 + $0x638] sm:$0xff]
    %v3395 = vld [vmem:[#allocation7 + $0x640] sm:$0xff]
    %v3396 = vld [vmem:[#allocation7 + $0x648] sm:$0xff]
    %v3397 = vld [vmem:[#allocation7 + $0x650] sm:$0xff]
    %v3398 = vld [vmem:[#allocation7 + $0x658] sm:$0xff]
    %v3399 = vld [vmem:[#allocation7 + $0x660] sm:$0xff]
    %v3400 = vld [vmem:[#allocation7 + $0x668] sm:$0xff]
    %v3401 = vld [vmem:[#allocation7 + $0x670] sm:$0xff]
    %v3402 = vld [vmem:[#allocation7 + $0x678] sm:$0xff]
    %v3403 = vld [vmem:[#allocation7 + $0x680] sm:$0xff]
    %v3404 = vld [vmem:[#allocation7 + $0x688] sm:$0xff]
    %v3405 = vld [vmem:[#allocation7 + $0x690] sm:$0xff]
    %v3406 = vld [vmem:[#allocation7 + $0x698] sm:$0xff]
    %v3407 = vld [vmem:[#allocation7 + $0x6a0] sm:$0xff]
    %v3408 = vld [vmem:[#allocation7 + $0x6a8] sm:$0xff]
    %v3409 = vld [vmem:[#allocation7 + $0x6b0] sm:$0xff]
    %v3410 = vld [vmem:[#allocation7 + $0x6b8] sm:$0xff]
    %v3411 = vld [vmem:[#allocation7 + $0x6c0] sm:$0xff]
    %v3412 = vld [vmem:[#allocation7 + $0x6c8] sm:$0xff]
    %v3413 = vld [vmem:[#allocation7 + $0x6d0] sm:$0xff]
    %v3414 = vld [vmem:[#allocation7 + $0x6d8] sm:$0xff]
    %v3415 = vld [vmem:[#allocation7 + $0x6e0] sm:$0xff]
    %v3416 = vld [vmem:[#allocation7 + $0x6e8] sm:$0xff]
    %v3417 = vld [vmem:[#allocation7 + $0x6f0] sm:$0xff]
    %v3418 = vld [vmem:[#allocation7 + $0x6f8] sm:$0xff]
    %v3419 = vld [vmem:[#allocation7 + $0x700] sm:$0xff]
    %v3420 = vld [vmem:[#allocation7 + $0x708] sm:$0xff]
    %v3421 = vld [vmem:[#allocation7 + $0x710] sm:$0xff]
    %v3422 = vld [vmem:[#allocation7 + $0x718] sm:$0xff]
    %v3423 = vld [vmem:[#allocation7 + $0x720] sm:$0xff]
    %v3424 = vld [vmem:[#allocation7 + $0x728] sm:$0xff]
    %v3425 = vld [vmem:[#allocation7 + $0x730] sm:$0xff]
    %v3426 = vld [vmem:[#allocation7 + $0x738] sm:$0xff]
    %v3427 = vld [vmem:[#allocation7 + $0x740] sm:$0xff]
    %v3428 = vld [vmem:[#allocation7 + $0x748] sm:$0xff]
    %v3429 = vld [vmem:[#allocation7 + $0x750] sm:$0xff]
    %v3430 = vld [vmem:[#allocation7 + $0x758] sm:$0xff]
    %v3431 = vld [vmem:[#allocation7 + $0x760] sm:$0xff]
    %v3432 = vld [vmem:[#allocation7 + $0x768] sm:$0xff]
    %v3433 = vld [vmem:[#allocation7 + $0x770] sm:$0xff]
    %v3434 = vld [vmem:[#allocation7 + $0x778] sm:$0xff]
    %v3435 = vld [vmem:[#allocation7 + $0x780] sm:$0xff]
    %v3436 = vld [vmem:[#allocation7 + $0x788] sm:$0xff]
    %v3437 = vld [vmem:[#allocation7 + $0x790] sm:$0xff]
    %v3438 = vld [vmem:[#allocation7 + $0x798] sm:$0xff]
    %v3439 = vld [vmem:[#allocation7 + $0x7a0] sm:$0xff]
    %v3440 = vld [vmem:[#allocation7 + $0x7a8] sm:$0xff]
    %v3441 = vld [vmem:[#allocation7 + $0x7b0] sm:$0xff]
    %v3442 = vld [vmem:[#allocation7 + $0x7b8] sm:$0xff]
    %v3443 = vld [vmem:[#allocation7 + $0x7c0] sm:$0xff]
    %v3444 = vld [vmem:[#allocation7 + $0x7c8] sm:$0xff]
    %v3445 = vld [vmem:[#allocation7 + $0x7d0] sm:$0xff]
    %v3446 = vld [vmem:[#allocation7 + $0x7d8] sm:$0xff]
    %v3447 = vld [vmem:[#allocation7 + $0x7e0] sm:$0xff]
    %v3448 = vld [vmem:[#allocation7 + $0x7e8] sm:$0xff]
    %v3449 = vld [vmem:[#allocation7 + $0x7f0] sm:$0xff]
    %v3450 = vld [vmem:[#allocation7 + $0x7f8] sm:$0xff]
    %v3707 = vunpack.c.l.b16 %v3195
    %v3708 = vunpack.c.h.b16 %v3195
    %v3709 = vunpack.c.l.b16 %v3196
    %v3710 = vunpack.c.h.b16 %v3196
    %v3711 = vunpack.c.l.b16 %v3197
    %v3712 = vunpack.c.h.b16 %v3197
    %v3713 = vunpack.c.l.b16 %v3198
    %v3714 = vunpack.c.h.b16 %v3198
    %v3715 = vunpack.c.l.b16 %v3199
    %v3716 = vunpack.c.h.b16 %v3199
    %v3717 = vunpack.c.l.b16 %v3200
    %v3718 = vunpack.c.h.b16 %v3200
    %v3719 = vunpack.c.l.b16 %v3201
    %v3720 = vunpack.c.h.b16 %v3201
    %v3721 = vunpack.c.l.b16 %v3202
    %v3722 = vunpack.c.h.b16 %v3202
    %v3723 = vunpack.c.l.b16 %v3203
    %v3724 = vunpack.c.h.b16 %v3203
    %v3725 = vunpack.c.l.b16 %v3204
    %v3726 = vunpack.c.h.b16 %v3204
    %v3727 = vunpack.c.l.b16 %v3205
    %v3728 = vunpack.c.h.b16 %v3205
    %v3729 = vunpack.c.l.b16 %v3206
    %v3730 = vunpack.c.h.b16 %v3206
    %v3731 = vunpack.c.l.b16 %v3207
    %v3732 = vunpack.c.h.b16 %v3207
    %v3733 = vunpack.c.l.b16 %v3208
    %v3734 = vunpack.c.h.b16 %v3208
    %v3735 = vunpack.c.l.b16 %v3209
    %v3736 = vunpack.c.h.b16 %v3209
    %v3737 = vunpack.c.l.b16 %v3210
    %v3738 = vunpack.c.h.b16 %v3210
    %v3739 = vunpack.c.l.b16 %v3211
    %v3740 = vunpack.c.h.b16 %v3211
    %v3741 = vunpack.c.l.b16 %v3212
    %v3742 = vunpack.c.h.b16 %v3212
    %v3743 = vunpack.c.l.b16 %v3213
    %v3744 = vunpack.c.h.b16 %v3213
    %v3745 = vunpack.c.l.b16 %v3214
    %v3746 = vunpack.c.h.b16 %v3214
    %v3747 = vunpack.c.l.b16 %v3215
    %v3748 = vunpack.c.h.b16 %v3215
    %v3749 = vunpack.c.l.b16 %v3216
    %v3750 = vunpack.c.h.b16 %v3216
    %v3751 = vunpack.c.l.b16 %v3217
    %v3752 = vunpack.c.h.b16 %v3217
    %v3753 = vunpack.c.l.b16 %v3218
    %v3754 = vunpack.c.h.b16 %v3218
    %v3755 = vunpack.c.l.b16 %v3219
    %v3756 = vunpack.c.h.b16 %v3219
    %v3757 = vunpack.c.l.b16 %v3220
    %v3758 = vunpack.c.h.b16 %v3220
    %v3759 = vunpack.c.l.b16 %v3221
    %v3760 = vunpack.c.h.b16 %v3221
    %v3761 = vunpack.c.l.b16 %v3222
    %v3762 = vunpack.c.h.b16 %v3222
    %v3763 = vunpack.c.l.b16 %v3223
    %v3764 = vunpack.c.h.b16 %v3223
    %v3765 = vunpack.c.l.b16 %v3224
    %v3766 = vunpack.c.h.b16 %v3224
    %v3767 = vunpack.c.l.b16 %v3225
    %v3768 = vunpack.c.h.b16 %v3225
    %v3769 = vunpack.c.l.b16 %v3226
    %v3770 = vunpack.c.h.b16 %v3226
    %v3771 = vunpack.c.l.b16 %v3227
    %v3772 = vunpack.c.h.b16 %v3227
    %v3773 = vunpack.c.l.b16 %v3228
    %v3774 = vunpack.c.h.b16 %v3228
    %v3775 = vunpack.c.l.b16 %v3229
    %v3776 = vunpack.c.h.b16 %v3229
    %v3777 = vunpack.c.l.b16 %v3230
    %v3778 = vunpack.c.h.b16 %v3230
    %v3779 = vunpack.c.l.b16 %v3231
    %v3780 = vunpack.c.h.b16 %v3231
    %v3781 = vunpack.c.l.b16 %v3232
    %v3782 = vunpack.c.h.b16 %v3232
    %v3783 = vunpack.c.l.b16 %v3233
    %v3784 = vunpack.c.h.b16 %v3233
    %v3785 = vunpack.c.l.b16 %v3234
    %v3786 = vunpack.c.h.b16 %v3234
    %v3787 = vunpack.c.l.b16 %v3235
    %v3788 = vunpack.c.h.b16 %v3235
    %v3789 = vunpack.c.l.b16 %v3236
    %v3790 = vunpack.c.h.b16 %v3236
    %v3791 = vunpack.c.l.b16 %v3237
    %v3792 = vunpack.c.h.b16 %v3237
    %v3793 = vunpack.c.l.b16 %v3238
    %v3794 = vunpack.c.h.b16 %v3238
    %v3795 = vunpack.c.l.b16 %v3239
    %v3796 = vunpack.c.h.b16 %v3239
    %v3797 = vunpack.c.l.b16 %v3240
    %v3798 = vunpack.c.h.b16 %v3240
    %v3799 = vunpack.c.l.b16 %v3241
    %v3800 = vunpack.c.h.b16 %v3241
    %v3801 = vunpack.c.l.b16 %v3242
    %v3802 = vunpack.c.h.b16 %v3242
    %v3803 = vunpack.c.l.b16 %v3243
    %v3804 = vunpack.c.h.b16 %v3243
    %v3805 = vunpack.c.l.b16 %v3244
    %v3806 = vunpack.c.h.b16 %v3244
    %v3807 = vunpack.c.l.b16 %v3245
    %v3808 = vunpack.c.h.b16 %v3245
    %v3809 = vunpack.c.l.b16 %v3246
    %v3810 = vunpack.c.h.b16 %v3246
    %v3811 = vunpack.c.l.b16 %v3247
    %v3812 = vunpack.c.h.b16 %v3247
    %v3813 = vunpack.c.l.b16 %v3248
    %v3814 = vunpack.c.h.b16 %v3248
    %v3815 = vunpack.c.l.b16 %v3249
    %v3816 = vunpack.c.h.b16 %v3249
    %v3817 = vunpack.c.l.b16 %v3250
    %v3818 = vunpack.c.h.b16 %v3250
    %v3819 = vunpack.c.l.b16 %v3251
    %v3820 = vunpack.c.h.b16 %v3251
    %v3821 = vunpack.c.l.b16 %v3252
    %v3822 = vunpack.c.h.b16 %v3252
    %v3823 = vunpack.c.l.b16 %v3253
    %v3824 = vunpack.c.h.b16 %v3253
    %v3825 = vunpack.c.l.b16 %v3254
    %v3826 = vunpack.c.h.b16 %v3254
    %v3827 = vunpack.c.l.b16 %v3255
    %v3828 = vunpack.c.h.b16 %v3255
    %v3829 = vunpack.c.l.b16 %v3256
    %v3830 = vunpack.c.h.b16 %v3256
    %v3831 = vunpack.c.l.b16 %v3257
    %v3832 = vunpack.c.h.b16 %v3257
    %v3833 = vunpack.c.l.b16 %v3258
    %v3834 = vunpack.c.h.b16 %v3258
    %v3835 = vunpack.c.l.b16 %v3259
    %v3836 = vunpack.c.h.b16 %v3259
    %v3837 = vunpack.c.l.b16 %v3260
    %v3838 = vunpack.c.h.b16 %v3260
    %v3839 = vunpack.c.l.b16 %v3261
    %v3840 = vunpack.c.h.b16 %v3261
    %v3841 = vunpack.c.l.b16 %v3262
    %v3842 = vunpack.c.h.b16 %v3262
    %v3843 = vunpack.c.l.b16 %v3263
    %v3844 = vunpack.c.h.b16 %v3263
    %v3845 = vunpack.c.l.b16 %v3264
    %v3846 = vunpack.c.h.b16 %v3264
    %v3847 = vunpack.c.l.b16 %v3265
    %v3848 = vunpack.c.h.b16 %v3265
    %v3849 = vunpack.c.l.b16 %v3266
    %v3850 = vunpack.c.h.b16 %v3266
    %v3851 = vunpack.c.l.b16 %v3267
    %v3852 = vunpack.c.h.b16 %v3267
    %v3853 = vunpack.c.l.b16 %v3268
    %v3854 = vunpack.c.h.b16 %v3268
    %v3855 = vunpack.c.l.b16 %v3269
    %v3856 = vunpack.c.h.b16 %v3269
    %v3857 = vunpack.c.l.b16 %v3270
    %v3858 = vunpack.c.h.b16 %v3270
    %v3859 = vunpack.c.l.b16 %v3271
    %v3860 = vunpack.c.h.b16 %v3271
    %v3861 = vunpack.c.l.b16 %v3272
    %v3862 = vunpack.c.h.b16 %v3272
    %v3863 = vunpack.c.l.b16 %v3273
    %v3864 = vunpack.c.h.b16 %v3273
    %v3865 = vunpack.c.l.b16 %v3274
    %v3866 = vunpack.c.h.b16 %v3274
    %v3867 = vunpack.c.l.b16 %v3275
    %v3868 = vunpack.c.h.b16 %v3275
    %v3869 = vunpack.c.l.b16 %v3276
    %v3870 = vunpack.c.h.b16 %v3276
    %v3871 = vunpack.c.l.b16 %v3277
    %v3872 = vunpack.c.h.b16 %v3277
    %v3873 = vunpack.c.l.b16 %v3278
    %v3874 = vunpack.c.h.b16 %v3278
    %v3875 = vunpack.c.l.b16 %v3279
    %v3876 = vunpack.c.h.b16 %v3279
    %v3877 = vunpack.c.l.b16 %v3280
    %v3878 = vunpack.c.h.b16 %v3280
    %v3879 = vunpack.c.l.b16 %v3281
    %v3880 = vunpack.c.h.b16 %v3281
    %v3881 = vunpack.c.l.b16 %v3282
    %v3882 = vunpack.c.h.b16 %v3282
    %v3883 = vunpack.c.l.b16 %v3283
    %v3884 = vunpack.c.h.b16 %v3283
    %v3885 = vunpack.c.l.b16 %v3284
    %v3886 = vunpack.c.h.b16 %v3284
    %v3887 = vunpack.c.l.b16 %v3285
    %v3888 = vunpack.c.h.b16 %v3285
    %v3889 = vunpack.c.l.b16 %v3286
    %v3890 = vunpack.c.h.b16 %v3286
    %v3891 = vunpack.c.l.b16 %v3287
    %v3892 = vunpack.c.h.b16 %v3287
    %v3893 = vunpack.c.l.b16 %v3288
    %v3894 = vunpack.c.h.b16 %v3288
    %v3895 = vunpack.c.l.b16 %v3289
    %v3896 = vunpack.c.h.b16 %v3289
    %v3897 = vunpack.c.l.b16 %v3290
    %v3898 = vunpack.c.h.b16 %v3290
    %v3899 = vunpack.c.l.b16 %v3291
    %v3900 = vunpack.c.h.b16 %v3291
    %v3901 = vunpack.c.l.b16 %v3292
    %v3902 = vunpack.c.h.b16 %v3292
    %v3903 = vunpack.c.l.b16 %v3293
    %v3904 = vunpack.c.h.b16 %v3293
    %v3905 = vunpack.c.l.b16 %v3294
    %v3906 = vunpack.c.h.b16 %v3294
    %v3907 = vunpack.c.l.b16 %v3295
    %v3908 = vunpack.c.h.b16 %v3295
    %v3909 = vunpack.c.l.b16 %v3296
    %v3910 = vunpack.c.h.b16 %v3296
    %v3911 = vunpack.c.l.b16 %v3297
    %v3912 = vunpack.c.h.b16 %v3297
    %v3913 = vunpack.c.l.b16 %v3298
    %v3914 = vunpack.c.h.b16 %v3298
    %v3915 = vunpack.c.l.b16 %v3299
    %v3916 = vunpack.c.h.b16 %v3299
    %v3917 = vunpack.c.l.b16 %v3300
    %v3918 = vunpack.c.h.b16 %v3300
    %v3919 = vunpack.c.l.b16 %v3301
    %v3920 = vunpack.c.h.b16 %v3301
    %v3921 = vunpack.c.l.b16 %v3302
    %v3922 = vunpack.c.h.b16 %v3302
    %v3923 = vunpack.c.l.b16 %v3303
    %v3924 = vunpack.c.h.b16 %v3303
    %v3925 = vunpack.c.l.b16 %v3304
    %v3926 = vunpack.c.h.b16 %v3304
    %v3927 = vunpack.c.l.b16 %v3305
    %v3928 = vunpack.c.h.b16 %v3305
    %v3929 = vunpack.c.l.b16 %v3306
    %v3930 = vunpack.c.h.b16 %v3306
    %v3931 = vunpack.c.l.b16 %v3307
    %v3932 = vunpack.c.h.b16 %v3307
    %v3933 = vunpack.c.l.b16 %v3308
    %v3934 = vunpack.c.h.b16 %v3308
    %v3935 = vunpack.c.l.b16 %v3309
    %v3936 = vunpack.c.h.b16 %v3309
    %v3937 = vunpack.c.l.b16 %v3310
    %v3938 = vunpack.c.h.b16 %v3310
    %v3939 = vunpack.c.l.b16 %v3311
    %v3940 = vunpack.c.h.b16 %v3311
    %v3941 = vunpack.c.l.b16 %v3312
    %v3942 = vunpack.c.h.b16 %v3312
    %v3943 = vunpack.c.l.b16 %v3313
    %v3944 = vunpack.c.h.b16 %v3313
    %v3945 = vunpack.c.l.b16 %v3314
    %v3946 = vunpack.c.h.b16 %v3314
    %v3947 = vunpack.c.l.b16 %v3315
    %v3948 = vunpack.c.h.b16 %v3315
    %v3949 = vunpack.c.l.b16 %v3316
    %v3950 = vunpack.c.h.b16 %v3316
    %v3951 = vunpack.c.l.b16 %v3317
    %v3952 = vunpack.c.h.b16 %v3317
    %v3953 = vunpack.c.l.b16 %v3318
    %v3954 = vunpack.c.h.b16 %v3318
    %v3955 = vunpack.c.l.b16 %v3319
    %v3956 = vunpack.c.h.b16 %v3319
    %v3957 = vunpack.c.l.b16 %v3320
    %v3958 = vunpack.c.h.b16 %v3320
    %v3959 = vunpack.c.l.b16 %v3321
    %v3960 = vunpack.c.h.b16 %v3321
    %v3961 = vunpack.c.l.b16 %v3322
    %v3962 = vunpack.c.h.b16 %v3322
    %v3963 = vunpack.c.l.b16 %v3323
    %v3964 = vunpack.c.h.b16 %v3323
    %v3965 = vunpack.c.l.b16 %v3324
    %v3966 = vunpack.c.h.b16 %v3324
    %v3967 = vunpack.c.l.b16 %v3325
    %v3968 = vunpack.c.h.b16 %v3325
    %v3969 = vunpack.c.l.b16 %v3326
    %v3970 = vunpack.c.h.b16 %v3326
    %v3971 = vunpack.c.l.b16 %v3327
    %v3972 = vunpack.c.h.b16 %v3327
    %v3973 = vunpack.c.l.b16 %v3328
    %v3974 = vunpack.c.h.b16 %v3328
    %v3975 = vunpack.c.l.b16 %v3329
    %v3976 = vunpack.c.h.b16 %v3329
    %v3977 = vunpack.c.l.b16 %v3330
    %v3978 = vunpack.c.h.b16 %v3330
    %v3979 = vunpack.c.l.b16 %v3331
    %v3980 = vunpack.c.h.b16 %v3331
    %v3981 = vunpack.c.l.b16 %v3332
    %v3982 = vunpack.c.h.b16 %v3332
    %v3983 = vunpack.c.l.b16 %v3333
    %v3984 = vunpack.c.h.b16 %v3333
    %v3985 = vunpack.c.l.b16 %v3334
    %v3986 = vunpack.c.h.b16 %v3334
    %v3987 = vunpack.c.l.b16 %v3335
    %v3988 = vunpack.c.h.b16 %v3335
    %v3989 = vunpack.c.l.b16 %v3336
    %v3990 = vunpack.c.h.b16 %v3336
    %v3991 = vunpack.c.l.b16 %v3337
    %v3992 = vunpack.c.h.b16 %v3337
    %v3993 = vunpack.c.l.b16 %v3338
    %v3994 = vunpack.c.h.b16 %v3338
    %v3995 = vunpack.c.l.b16 %v3339
    %v3996 = vunpack.c.h.b16 %v3339
    %v3997 = vunpack.c.l.b16 %v3340
    %v3998 = vunpack.c.h.b16 %v3340
    %v3999 = vunpack.c.l.b16 %v3341
    %v4000 = vunpack.c.h.b16 %v3341
    %v4001 = vunpack.c.l.b16 %v3342
    %v4002 = vunpack.c.h.b16 %v3342
    %v4003 = vunpack.c.l.b16 %v3343
    %v4004 = vunpack.c.h.b16 %v3343
    %v4005 = vunpack.c.l.b16 %v3344
    %v4006 = vunpack.c.h.b16 %v3344
    %v4007 = vunpack.c.l.b16 %v3345
    %v4008 = vunpack.c.h.b16 %v3345
    %v4009 = vunpack.c.l.b16 %v3346
    %v4010 = vunpack.c.h.b16 %v3346
    %v4011 = vunpack.c.l.b16 %v3347
    %v4012 = vunpack.c.h.b16 %v3347
    %v4013 = vunpack.c.l.b16 %v3348
    %v4014 = vunpack.c.h.b16 %v3348
    %v4015 = vunpack.c.l.b16 %v3349
    %v4016 = vunpack.c.h.b16 %v3349
    %v4017 = vunpack.c.l.b16 %v3350
    %v4018 = vunpack.c.h.b16 %v3350
    %v4019 = vunpack.c.l.b16 %v3351
    %v4020 = vunpack.c.h.b16 %v3351
    %v4021 = vunpack.c.l.b16 %v3352
    %v4022 = vunpack.c.h.b16 %v3352
    %v4023 = vunpack.c.l.b16 %v3353
    %v4024 = vunpack.c.h.b16 %v3353
    %v4025 = vunpack.c.l.b16 %v3354
    %v4026 = vunpack.c.h.b16 %v3354
    %v4027 = vunpack.c.l.b16 %v3355
    %v4028 = vunpack.c.h.b16 %v3355
    %v4029 = vunpack.c.l.b16 %v3356
    %v4030 = vunpack.c.h.b16 %v3356
    %v4031 = vunpack.c.l.b16 %v3357
    %v4032 = vunpack.c.h.b16 %v3357
    %v4033 = vunpack.c.l.b16 %v3358
    %v4034 = vunpack.c.h.b16 %v3358
    %v4035 = vunpack.c.l.b16 %v3359
    %v4036 = vunpack.c.h.b16 %v3359
    %v4037 = vunpack.c.l.b16 %v3360
    %v4038 = vunpack.c.h.b16 %v3360
    %v4039 = vunpack.c.l.b16 %v3361
    %v4040 = vunpack.c.h.b16 %v3361
    %v4041 = vunpack.c.l.b16 %v3362
    %v4042 = vunpack.c.h.b16 %v3362
    %v4043 = vunpack.c.l.b16 %v3363
    %v4044 = vunpack.c.h.b16 %v3363
    %v4045 = vunpack.c.l.b16 %v3364
    %v4046 = vunpack.c.h.b16 %v3364
    %v4047 = vunpack.c.l.b16 %v3365
    %v4048 = vunpack.c.h.b16 %v3365
    %v4049 = vunpack.c.l.b16 %v3366
    %v4050 = vunpack.c.h.b16 %v3366
    %v4051 = vunpack.c.l.b16 %v3367
    %v4052 = vunpack.c.h.b16 %v3367
    %v4053 = vunpack.c.l.b16 %v3368
    %v4054 = vunpack.c.h.b16 %v3368
    %v4055 = vunpack.c.l.b16 %v3369
    %v4056 = vunpack.c.h.b16 %v3369
    %v4057 = vunpack.c.l.b16 %v3370
    %v4058 = vunpack.c.h.b16 %v3370
    %v4059 = vunpack.c.l.b16 %v3371
    %v4060 = vunpack.c.h.b16 %v3371
    %v4061 = vunpack.c.l.b16 %v3372
    %v4062 = vunpack.c.h.b16 %v3372
    %v4063 = vunpack.c.l.b16 %v3373
    %v4064 = vunpack.c.h.b16 %v3373
    %v4065 = vunpack.c.l.b16 %v3374
    %v4066 = vunpack.c.h.b16 %v3374
    %v4067 = vunpack.c.l.b16 %v3375
    %v4068 = vunpack.c.h.b16 %v3375
    %v4069 = vunpack.c.l.b16 %v3376
    %v4070 = vunpack.c.h.b16 %v3376
    %v4071 = vunpack.c.l.b16 %v3377
    %v4072 = vunpack.c.h.b16 %v3377
    %v4073 = vunpack.c.l.b16 %v3378
    %v4074 = vunpack.c.h.b16 %v3378
    %v4075 = vunpack.c.l.b16 %v3379
    %v4076 = vunpack.c.h.b16 %v3379
    %v4077 = vunpack.c.l.b16 %v3380
    %v4078 = vunpack.c.h.b16 %v3380
    %v4079 = vunpack.c.l.b16 %v3381
    %v4080 = vunpack.c.h.b16 %v3381
    %v4081 = vunpack.c.l.b16 %v3382
    %v4082 = vunpack.c.h.b16 %v3382
    %v4083 = vunpack.c.l.b16 %v3383
    %v4084 = vunpack.c.h.b16 %v3383
    %v4085 = vunpack.c.l.b16 %v3384
    %v4086 = vunpack.c.h.b16 %v3384
    %v4087 = vunpack.c.l.b16 %v3385
    %v4088 = vunpack.c.h.b16 %v3385
    %v4089 = vunpack.c.l.b16 %v3386
    %v4090 = vunpack.c.h.b16 %v3386
    %v4091 = vunpack.c.l.b16 %v3387
    %v4092 = vunpack.c.h.b16 %v3387
    %v4093 = vunpack.c.l.b16 %v3388
    %v4094 = vunpack.c.h.b16 %v3388
    %v4095 = vunpack.c.l.b16 %v3389
    %v4096 = vunpack.c.h.b16 %v3389
    %v4097 = vunpack.c.l.b16 %v3390
    %v4098 = vunpack.c.h.b16 %v3390
    %v4099 = vunpack.c.l.b16 %v3391
    %v4100 = vunpack.c.h.b16 %v3391
    %v4101 = vunpack.c.l.b16 %v3392
    %v4102 = vunpack.c.h.b16 %v3392
    %v4103 = vunpack.c.l.b16 %v3393
    %v4104 = vunpack.c.h.b16 %v3393
    %v4105 = vunpack.c.l.b16 %v3394
    %v4106 = vunpack.c.h.b16 %v3394
    %v4107 = vunpack.c.l.b16 %v3395
    %v4108 = vunpack.c.h.b16 %v3395
    %v4109 = vunpack.c.l.b16 %v3396
    %v4110 = vunpack.c.h.b16 %v3396
    %v4111 = vunpack.c.l.b16 %v3397
    %v4112 = vunpack.c.h.b16 %v3397
    %v4113 = vunpack.c.l.b16 %v3398
    %v4114 = vunpack.c.h.b16 %v3398
    %v4115 = vunpack.c.l.b16 %v3399
    %v4116 = vunpack.c.h.b16 %v3399
    %v4117 = vunpack.c.l.b16 %v3400
    %v4118 = vunpack.c.h.b16 %v3400
    %v4119 = vunpack.c.l.b16 %v3401
    %v4120 = vunpack.c.h.b16 %v3401
    %v4121 = vunpack.c.l.b16 %v3402
    %v4122 = vunpack.c.h.b16 %v3402
    %v4123 = vunpack.c.l.b16 %v3403
    %v4124 = vunpack.c.h.b16 %v3403
    %v4125 = vunpack.c.l.b16 %v3404
    %v4126 = vunpack.c.h.b16 %v3404
    %v4127 = vunpack.c.l.b16 %v3405
    %v4128 = vunpack.c.h.b16 %v3405
    %v4129 = vunpack.c.l.b16 %v3406
    %v4130 = vunpack.c.h.b16 %v3406
    %v4131 = vunpack.c.l.b16 %v3407
    %v4132 = vunpack.c.h.b16 %v3407
    %v4133 = vunpack.c.l.b16 %v3408
    %v4134 = vunpack.c.h.b16 %v3408
    %v4135 = vunpack.c.l.b16 %v3409
    %v4136 = vunpack.c.h.b16 %v3409
    %v4137 = vunpack.c.l.b16 %v3410
    %v4138 = vunpack.c.h.b16 %v3410
    %v4139 = vunpack.c.l.b16 %v3411
    %v4140 = vunpack.c.h.b16 %v3411
    %v4141 = vunpack.c.l.b16 %v3412
    %v4142 = vunpack.c.h.b16 %v3412
    %v4143 = vunpack.c.l.b16 %v3413
    %v4144 = vunpack.c.h.b16 %v3413
    %v4145 = vunpack.c.l.b16 %v3414
    %v4146 = vunpack.c.h.b16 %v3414
    %v4147 = vunpack.c.l.b16 %v3415
    %v4148 = vunpack.c.h.b16 %v3415
    %v4149 = vunpack.c.l.b16 %v3416
    %v4150 = vunpack.c.h.b16 %v3416
    %v4151 = vunpack.c.l.b16 %v3417
    %v4152 = vunpack.c.h.b16 %v3417
    %v4153 = vunpack.c.l.b16 %v3418
    %v4154 = vunpack.c.h.b16 %v3418
    %v4155 = vunpack.c.l.b16 %v3419
    %v4156 = vunpack.c.h.b16 %v3419
    %v4157 = vunpack.c.l.b16 %v3420
    %v4158 = vunpack.c.h.b16 %v3420
    %v4159 = vunpack.c.l.b16 %v3421
    %v4160 = vunpack.c.h.b16 %v3421
    %v4161 = vunpack.c.l.b16 %v3422
    %v4162 = vunpack.c.h.b16 %v3422
    %v4163 = vunpack.c.l.b16 %v3423
    %v4164 = vunpack.c.h.b16 %v3423
    %v4165 = vunpack.c.l.b16 %v3424
    %v4166 = vunpack.c.h.b16 %v3424
    %v4167 = vunpack.c.l.b16 %v3425
    %v4168 = vunpack.c.h.b16 %v3425
    %v4169 = vunpack.c.l.b16 %v3426
    %v4170 = vunpack.c.h.b16 %v3426
    %v4171 = vunpack.c.l.b16 %v3427
    %v4172 = vunpack.c.h.b16 %v3427
    %v4173 = vunpack.c.l.b16 %v3428
    %v4174 = vunpack.c.h.b16 %v3428
    %v4175 = vunpack.c.l.b16 %v3429
    %v4176 = vunpack.c.h.b16 %v3429
    %v4177 = vunpack.c.l.b16 %v3430
    %v4178 = vunpack.c.h.b16 %v3430
    %v4179 = vunpack.c.l.b16 %v3431
    %v4180 = vunpack.c.h.b16 %v3431
    %v4181 = vunpack.c.l.b16 %v3432
    %v4182 = vunpack.c.h.b16 %v3432
    %v4183 = vunpack.c.l.b16 %v3433
    %v4184 = vunpack.c.h.b16 %v3433
    %v4185 = vunpack.c.l.b16 %v3434
    %v4186 = vunpack.c.h.b16 %v3434
    %v4187 = vunpack.c.l.b16 %v3435
    %v4188 = vunpack.c.h.b16 %v3435
    %v4189 = vunpack.c.l.b16 %v3436
    %v4190 = vunpack.c.h.b16 %v3436
    %v4191 = vunpack.c.l.b16 %v3437
    %v4192 = vunpack.c.h.b16 %v3437
    %v4193 = vunpack.c.l.b16 %v3438
    %v4194 = vunpack.c.h.b16 %v3438
    %v4195 = vunpack.c.l.b16 %v3439
    %v4196 = vunpack.c.h.b16 %v3439
    %v4197 = vunpack.c.l.b16 %v3440
    %v4198 = vunpack.c.h.b16 %v3440
    %v4199 = vunpack.c.l.b16 %v3441
    %v4200 = vunpack.c.h.b16 %v3441
    %v4201 = vunpack.c.l.b16 %v3442
    %v4202 = vunpack.c.h.b16 %v3442
    %v4203 = vunpack.c.l.b16 %v3443
    %v4204 = vunpack.c.h.b16 %v3443
    %v4205 = vunpack.c.l.b16 %v3444
    %v4206 = vunpack.c.h.b16 %v3444
    %v4207 = vunpack.c.l.b16 %v3445
    %v4208 = vunpack.c.h.b16 %v3445
    %v4209 = vunpack.c.l.b16 %v3446
    %v4210 = vunpack.c.h.b16 %v3446
    %v4211 = vunpack.c.l.b16 %v3447
    %v4212 = vunpack.c.h.b16 %v3447
    %v4213 = vunpack.c.l.b16 %v3448
    %v4214 = vunpack.c.h.b16 %v3448
    %v4215 = vunpack.c.l.b16 %v3449
    %v4216 = vunpack.c.h.b16 %v3449
    %v4217 = vunpack.c.l.b16 %v3450
    %v4218 = vunpack.c.h.b16 %v3450
    %v4219 = vpack.c.b16 %v3715, %v3707
    %v4220 = vpack.c.b16 %v3716, %v3708
    %v4221 = vpack.c.b16 %v3717, %v3709
    %v4222 = vpack.c.b16 %v3718, %v3710
    %v4223 = vpack.c.b16 %v3719, %v3711
    %v4224 = vpack.c.b16 %v3720, %v3712
    %v4225 = vpack.c.b16 %v3721, %v3713
    %v4226 = vpack.c.b16 %v3722, %v3714
    %v4227 = vpack.c.b16 %v3731, %v3723
    %v4228 = vpack.c.b16 %v3732, %v3724
    %v4229 = vpack.c.b16 %v3733, %v3725
    %v4230 = vpack.c.b16 %v3734, %v3726
    %v4231 = vpack.c.b16 %v3735, %v3727
    %v4232 = vpack.c.b16 %v3736, %v3728
    %v4233 = vpack.c.b16 %v3737, %v3729
    %v4234 = vpack.c.b16 %v3738, %v3730
    %v4235 = vpack.c.b16 %v3747, %v3739
    %v4236 = vpack.c.b16 %v3748, %v3740
    %v4237 = vpack.c.b16 %v3749, %v3741
    %v4238 = vpack.c.b16 %v3750, %v3742
    %v4239 = vpack.c.b16 %v3751, %v3743
    %v4240 = vpack.c.b16 %v3752, %v3744
    %v4241 = vpack.c.b16 %v3753, %v3745
    %v4242 = vpack.c.b16 %v3754, %v3746
    %v4243 = vpack.c.b16 %v3763, %v3755
    %v4244 = vpack.c.b16 %v3764, %v3756
    %v4245 = vpack.c.b16 %v3765, %v3757
    %v4246 = vpack.c.b16 %v3766, %v3758
    %v4247 = vpack.c.b16 %v3767, %v3759
    %v4248 = vpack.c.b16 %v3768, %v3760
    %v4249 = vpack.c.b16 %v3769, %v3761
    %v4250 = vpack.c.b16 %v3770, %v3762
    %v4251 = vpack.c.b16 %v3779, %v3771
    %v4252 = vpack.c.b16 %v3780, %v3772
    %v4253 = vpack.c.b16 %v3781, %v3773
    %v4254 = vpack.c.b16 %v3782, %v3774
    %v4255 = vpack.c.b16 %v3783, %v3775
    %v4256 = vpack.c.b16 %v3784, %v3776
    %v4257 = vpack.c.b16 %v3785, %v3777
    %v4258 = vpack.c.b16 %v3786, %v3778
    %v4259 = vpack.c.b16 %v3795, %v3787
    %v4260 = vpack.c.b16 %v3796, %v3788
    %v4261 = vpack.c.b16 %v3797, %v3789
    %v4262 = vpack.c.b16 %v3798, %v3790
    %v4263 = vpack.c.b16 %v3799, %v3791
    %v4264 = vpack.c.b16 %v3800, %v3792
    %v4265 = vpack.c.b16 %v3801, %v3793
    %v4266 = vpack.c.b16 %v3802, %v3794
    %v4267 = vpack.c.b16 %v3811, %v3803
    %v4268 = vpack.c.b16 %v3812, %v3804
    %v4269 = vpack.c.b16 %v3813, %v3805
    %v4270 = vpack.c.b16 %v3814, %v3806
    %v4271 = vpack.c.b16 %v3815, %v3807
    %v4272 = vpack.c.b16 %v3816, %v3808
    %v4273 = vpack.c.b16 %v3817, %v3809
    %v4274 = vpack.c.b16 %v3818, %v3810
    %v4275 = vpack.c.b16 %v3827, %v3819
    %v4276 = vpack.c.b16 %v3828, %v3820
    %v4277 = vpack.c.b16 %v3829, %v3821
    %v4278 = vpack.c.b16 %v3830, %v3822
    %v4279 = vpack.c.b16 %v3831, %v3823
    %v4280 = vpack.c.b16 %v3832, %v3824
    %v4281 = vpack.c.b16 %v3833, %v3825
    %v4282 = vpack.c.b16 %v3834, %v3826
    %v4283 = vpack.c.b16 %v3843, %v3835
    %v4284 = vpack.c.b16 %v3844, %v3836
    %v4285 = vpack.c.b16 %v3845, %v3837
    %v4286 = vpack.c.b16 %v3846, %v3838
    %v4287 = vpack.c.b16 %v3847, %v3839
    %v4288 = vpack.c.b16 %v3848, %v3840
    %v4289 = vpack.c.b16 %v3849, %v3841
    %v4290 = vpack.c.b16 %v3850, %v3842
    %v4291 = vpack.c.b16 %v3859, %v3851
    %v4292 = vpack.c.b16 %v3860, %v3852
    %v4293 = vpack.c.b16 %v3861, %v3853
    %v4294 = vpack.c.b16 %v3862, %v3854
    %v4295 = vpack.c.b16 %v3863, %v3855
    %v4296 = vpack.c.b16 %v3864, %v3856
    %v4297 = vpack.c.b16 %v3865, %v3857
    %v4298 = vpack.c.b16 %v3866, %v3858
    %v4299 = vpack.c.b16 %v3875, %v3867
    %v4300 = vpack.c.b16 %v3876, %v3868
    %v4301 = vpack.c.b16 %v3877, %v3869
    %v4302 = vpack.c.b16 %v3878, %v3870
    %v4303 = vpack.c.b16 %v3879, %v3871
    %v4304 = vpack.c.b16 %v3880, %v3872
    %v4305 = vpack.c.b16 %v3881, %v3873
    %v4306 = vpack.c.b16 %v3882, %v3874
    %v4307 = vpack.c.b16 %v3891, %v3883
    %v4308 = vpack.c.b16 %v3892, %v3884
    %v4309 = vpack.c.b16 %v3893, %v3885
    %v4310 = vpack.c.b16 %v3894, %v3886
    %v4311 = vpack.c.b16 %v3895, %v3887
    %v4312 = vpack.c.b16 %v3896, %v3888
    %v4313 = vpack.c.b16 %v3897, %v3889
    %v4314 = vpack.c.b16 %v3898, %v3890
    %v4315 = vpack.c.b16 %v3907, %v3899
    %v4316 = vpack.c.b16 %v3908, %v3900
    %v4317 = vpack.c.b16 %v3909, %v3901
    %v4318 = vpack.c.b16 %v3910, %v3902
    %v4319 = vpack.c.b16 %v3911, %v3903
    %v4320 = vpack.c.b16 %v3912, %v3904
    %v4321 = vpack.c.b16 %v3913, %v3905
    %v4322 = vpack.c.b16 %v3914, %v3906
    %v4323 = vpack.c.b16 %v3923, %v3915
    %v4324 = vpack.c.b16 %v3924, %v3916
    %v4325 = vpack.c.b16 %v3925, %v3917
    %v4326 = vpack.c.b16 %v3926, %v3918
    %v4327 = vpack.c.b16 %v3927, %v3919
    %v4328 = vpack.c.b16 %v3928, %v3920
    %v4329 = vpack.c.b16 %v3929, %v3921
    %v4330 = vpack.c.b16 %v3930, %v3922
    %v4331 = vpack.c.b16 %v3939, %v3931
    %v4332 = vpack.c.b16 %v3940, %v3932
    %v4333 = vpack.c.b16 %v3941, %v3933
    %v4334 = vpack.c.b16 %v3942, %v3934
    %v4335 = vpack.c.b16 %v3943, %v3935
    %v4336 = vpack.c.b16 %v3944, %v3936
    %v4337 = vpack.c.b16 %v3945, %v3937
    %v4338 = vpack.c.b16 %v3946, %v3938
    %v4339 = vpack.c.b16 %v3955, %v3947
    %v4340 = vpack.c.b16 %v3956, %v3948
    %v4341 = vpack.c.b16 %v3957, %v3949
    %v4342 = vpack.c.b16 %v3958, %v3950
    %v4343 = vpack.c.b16 %v3959, %v3951
    %v4344 = vpack.c.b16 %v3960, %v3952
    %v4345 = vpack.c.b16 %v3961, %v3953
    %v4346 = vpack.c.b16 %v3962, %v3954
    %v4347 = vpack.c.b16 %v3971, %v3963
    %v4348 = vpack.c.b16 %v3972, %v3964
    %v4349 = vpack.c.b16 %v3973, %v3965
    %v4350 = vpack.c.b16 %v3974, %v3966
    %v4351 = vpack.c.b16 %v3975, %v3967
    %v4352 = vpack.c.b16 %v3976, %v3968
    %v4353 = vpack.c.b16 %v3977, %v3969
    %v4354 = vpack.c.b16 %v3978, %v3970
    %v4355 = vpack.c.b16 %v3987, %v3979
    %v4356 = vpack.c.b16 %v3988, %v3980
    %v4357 = vpack.c.b16 %v3989, %v3981
    %v4358 = vpack.c.b16 %v3990, %v3982
    %v4359 = vpack.c.b16 %v3991, %v3983
    %v4360 = vpack.c.b16 %v3992, %v3984
    %v4361 = vpack.c.b16 %v3993, %v3985
    %v4362 = vpack.c.b16 %v3994, %v3986
    %v4363 = vpack.c.b16 %v4003, %v3995
    %v4364 = vpack.c.b16 %v4004, %v3996
    %v4365 = vpack.c.b16 %v4005, %v3997
    %v4366 = vpack.c.b16 %v4006, %v3998
    %v4367 = vpack.c.b16 %v4007, %v3999
    %v4368 = vpack.c.b16 %v4008, %v4000
    %v4369 = vpack.c.b16 %v4009, %v4001
    %v4370 = vpack.c.b16 %v4010, %v4002
    %v4371 = vpack.c.b16 %v4019, %v4011
    %v4372 = vpack.c.b16 %v4020, %v4012
    %v4373 = vpack.c.b16 %v4021, %v4013
    %v4374 = vpack.c.b16 %v4022, %v4014
    %v4375 = vpack.c.b16 %v4023, %v4015
    %v4376 = vpack.c.b16 %v4024, %v4016
    %v4377 = vpack.c.b16 %v4025, %v4017
    %v4378 = vpack.c.b16 %v4026, %v4018
    %v4379 = vpack.c.b16 %v4035, %v4027
    %v4380 = vpack.c.b16 %v4036, %v4028
    %v4381 = vpack.c.b16 %v4037, %v4029
    %v4382 = vpack.c.b16 %v4038, %v4030
    %v4383 = vpack.c.b16 %v4039, %v4031
    %v4384 = vpack.c.b16 %v4040, %v4032
    %v4385 = vpack.c.b16 %v4041, %v4033
    %v4386 = vpack.c.b16 %v4042, %v4034
    %v4387 = vpack.c.b16 %v4051, %v4043
    %v4388 = vpack.c.b16 %v4052, %v4044
    %v4389 = vpack.c.b16 %v4053, %v4045
    %v4390 = vpack.c.b16 %v4054, %v4046
    %v4391 = vpack.c.b16 %v4055, %v4047
    %v4392 = vpack.c.b16 %v4056, %v4048
    %v4393 = vpack.c.b16 %v4057, %v4049
    %v4394 = vpack.c.b16 %v4058, %v4050
    %v4395 = vpack.c.b16 %v4067, %v4059
    %v4396 = vpack.c.b16 %v4068, %v4060
    %v4397 = vpack.c.b16 %v4069, %v4061
    %v4398 = vpack.c.b16 %v4070, %v4062
    %v4399 = vpack.c.b16 %v4071, %v4063
    %v4400 = vpack.c.b16 %v4072, %v4064
    %v4401 = vpack.c.b16 %v4073, %v4065
    %v4402 = vpack.c.b16 %v4074, %v4066
    %v4403 = vpack.c.b16 %v4083, %v4075
    %v4404 = vpack.c.b16 %v4084, %v4076
    %v4405 = vpack.c.b16 %v4085, %v4077
    %v4406 = vpack.c.b16 %v4086, %v4078
    %v4407 = vpack.c.b16 %v4087, %v4079
    %v4408 = vpack.c.b16 %v4088, %v4080
    %v4409 = vpack.c.b16 %v4089, %v4081
    %v4410 = vpack.c.b16 %v4090, %v4082
    %v4411 = vpack.c.b16 %v4099, %v4091
    %v4412 = vpack.c.b16 %v4100, %v4092
    %v4413 = vpack.c.b16 %v4101, %v4093
    %v4414 = vpack.c.b16 %v4102, %v4094
    %v4415 = vpack.c.b16 %v4103, %v4095
    %v4416 = vpack.c.b16 %v4104, %v4096
    %v4417 = vpack.c.b16 %v4105, %v4097
    %v4418 = vpack.c.b16 %v4106, %v4098
    %v4419 = vpack.c.b16 %v4115, %v4107
    %v4420 = vpack.c.b16 %v4116, %v4108
    %v4421 = vpack.c.b16 %v4117, %v4109
    %v4422 = vpack.c.b16 %v4118, %v4110
    %v4423 = vpack.c.b16 %v4119, %v4111
    %v4424 = vpack.c.b16 %v4120, %v4112
    %v4425 = vpack.c.b16 %v4121, %v4113
    %v4426 = vpack.c.b16 %v4122, %v4114
    %v4427 = vpack.c.b16 %v4131, %v4123
    %v4428 = vpack.c.b16 %v4132, %v4124
    %v4429 = vpack.c.b16 %v4133, %v4125
    %v4430 = vpack.c.b16 %v4134, %v4126
    %v4431 = vpack.c.b16 %v4135, %v4127
    %v4432 = vpack.c.b16 %v4136, %v4128
    %v4433 = vpack.c.b16 %v4137, %v4129
    %v4434 = vpack.c.b16 %v4138, %v4130
    %v4435 = vpack.c.b16 %v4147, %v4139
    %v4436 = vpack.c.b16 %v4148, %v4140
    %v4437 = vpack.c.b16 %v4149, %v4141
    %v4438 = vpack.c.b16 %v4150, %v4142
    %v4439 = vpack.c.b16 %v4151, %v4143
    %v4440 = vpack.c.b16 %v4152, %v4144
    %v4441 = vpack.c.b16 %v4153, %v4145
    %v4442 = vpack.c.b16 %v4154, %v4146
    %v4443 = vpack.c.b16 %v4163, %v4155
    %v4444 = vpack.c.b16 %v4164, %v4156
    %v4445 = vpack.c.b16 %v4165, %v4157
    %v4446 = vpack.c.b16 %v4166, %v4158
    %v4447 = vpack.c.b16 %v4167, %v4159
    %v4448 = vpack.c.b16 %v4168, %v4160
    %v4449 = vpack.c.b16 %v4169, %v4161
    %v4450 = vpack.c.b16 %v4170, %v4162
    %v4451 = vpack.c.b16 %v4179, %v4171
    %v4452 = vpack.c.b16 %v4180, %v4172
    %v4453 = vpack.c.b16 %v4181, %v4173
    %v4454 = vpack.c.b16 %v4182, %v4174
    %v4455 = vpack.c.b16 %v4183, %v4175
    %v4456 = vpack.c.b16 %v4184, %v4176
    %v4457 = vpack.c.b16 %v4185, %v4177
    %v4458 = vpack.c.b16 %v4186, %v4178
    %v4459 = vpack.c.b16 %v4195, %v4187
    %v4460 = vpack.c.b16 %v4196, %v4188
    %v4461 = vpack.c.b16 %v4197, %v4189
    %v4462 = vpack.c.b16 %v4198, %v4190
    %v4463 = vpack.c.b16 %v4199, %v4191
    %v4464 = vpack.c.b16 %v4200, %v4192
    %v4465 = vpack.c.b16 %v4201, %v4193
    %v4466 = vpack.c.b16 %v4202, %v4194
    %v4467 = vpack.c.b16 %v4211, %v4203
    %v4468 = vpack.c.b16 %v4212, %v4204
    %v4469 = vpack.c.b16 %v4213, %v4205
    %v4470 = vpack.c.b16 %v4214, %v4206
    %v4471 = vpack.c.b16 %v4215, %v4207
    %v4472 = vpack.c.b16 %v4216, %v4208
    %v4473 = vpack.c.b16 %v4217, %v4209
    %v4474 = vpack.c.b16 %v4218, %v4210
    %4731 = vmatpush.bf16.msra.mxu0 %v4275
    %4732 = vmatpush.bf16.msra.mxu0 %v4267
    %4733 = vmatpush.bf16.msra.mxu0 %v4259
    %4734 = vmatpush.bf16.msra.mxu0 %v4251
    %4735 = vmatpush.bf16.msra.mxu0 %v4243
    %4736 = vmatpush.bf16.msra.mxu0 %v4235
    %4737 = vmatpush.bf16.msra.mxu0 %v4227
    %4738 = vmatpush.bf16.msra.mxu0 %v4219
    %4739 = vmatmul.bf16.gmra.mxu0 %v3191
    %v4740 = vpop.f32.mrf.mxu0
    %v4741 = vadd.f32 0.0, %v4740
    %v4742 = vpop.f32.mrf.mxu0
    %v4743 = vadd.f32 0.0, %v4742
    %4744 = vdwg.mxu0
    %4745 = vmatpush.bf16.msra.mxu0 %v4339
    %4746 = vmatpush.bf16.msra.mxu0 %v4331
    %4747 = vmatpush.bf16.msra.mxu0 %v4323
    %4748 = vmatpush.bf16.msra.mxu0 %v4315
    %4749 = vmatpush.bf16.msra.mxu0 %v4307
    %4750 = vmatpush.bf16.msra.mxu0 %v4299
    %4751 = vmatpush.bf16.msra.mxu0 %v4291
    %4752 = vmatpush.bf16.msra.mxu0 %v4283
    %4753 = vmatmul.bf16.gmra.mxu0 %v3192
    %v4754 = vpop.f32.mrf.mxu0
    %v4755 = vadd.f32 %v4741, %v4754
    %v4756 = vpop.f32.mrf.mxu0
    %v4757 = vadd.f32 %v4743, %v4756
    %4758 = vdwg.mxu0
    %4759 = vmatpush.bf16.msra.mxu0 %v4403
    %4760 = vmatpush.bf16.msra.mxu0 %v4395
    %4761 = vmatpush.bf16.msra.mxu0 %v4387
    %4762 = vmatpush.bf16.msra.mxu0 %v4379
    %4763 = vmatpush.bf16.msra.mxu0 %v4371
    %4764 = vmatpush.bf16.msra.mxu0 %v4363
    %4765 = vmatpush.bf16.msra.mxu0 %v4355
    %4766 = vmatpush.bf16.msra.mxu0 %v4347
    %4767 = vmatmul.bf16.gmra.mxu0 %v3193
    %v4768 = vpop.f32.mrf.mxu0
    %v4769 = vadd.f32 %v4755, %v4768
    %v4770 = vpop.f32.mrf.mxu0
    %v4771 = vadd.f32 %v4757, %v4770
    %4772 = vdwg.mxu0
    %4773 = vmatpush.bf16.msra.mxu0 %v4467
    %4774 = vmatpush.bf16.msra.mxu0 %v4459
    %4775 = vmatpush.bf16.msra.mxu0 %v4451
    %4776 = vmatpush.bf16.msra.mxu0 %v4443
    %4777 = vmatpush.bf16.msra.mxu0 %v4435
    %4778 = vmatpush.bf16.msra.mxu0 %v4427
    %4779 = vmatpush.bf16.msra.mxu0 %v4419
    %4780 = vmatpush.bf16.msra.mxu0 %v4411
    %4781 = vmatmul.bf16.gmra.mxu0 %v3194
    %v4782 = vpop.f32.mrf.mxu0
    %v4783 = vadd.f32 %v4769, %v4782
    %v4784 = vpop.f32.mrf.mxu0
    %v4785 = vadd.f32 %v4771, %v4784
    %4786 = vdwg.mxu0
    %4787 = vmatpush.bf16.msra.mxu0 %v4276
    %4788 = vmatpush.bf16.msra.mxu0 %v4268
    %4789 = vmatpush.bf16.msra.mxu0 %v4260
    %4790 = vmatpush.bf16.msra.mxu0 %v4252
    %4791 = vmatpush.bf16.msra.mxu0 %v4244
    %4792 = vmatpush.bf16.msra.mxu0 %v4236
    %4793 = vmatpush.bf16.msra.mxu0 %v4228
    %4794 = vmatpush.bf16.msra.mxu0 %v4220
    %4795 = vmatmul.bf16.gmra.mxu0 %v3191
    %v4796 = vpop.f32.mrf.mxu0
    %v4797 = vadd.f32 0.0, %v4796
    %v4798 = vpop.f32.mrf.mxu0
    %v4799 = vadd.f32 0.0, %v4798
    %4800 = vdwg.mxu0
    %4801 = vmatpush.bf16.msra.mxu0 %v4340
    %4802 = vmatpush.bf16.msra.mxu0 %v4332
    %4803 = vmatpush.bf16.msra.mxu0 %v4324
    %4804 = vmatpush.bf16.msra.mxu0 %v4316
    %4805 = vmatpush.bf16.msra.mxu0 %v4308
    %4806 = vmatpush.bf16.msra.mxu0 %v4300
    %4807 = vmatpush.bf16.msra.mxu0 %v4292
    %4808 = vmatpush.bf16.msra.mxu0 %v4284
    %4809 = vmatmul.bf16.gmra.mxu0 %v3192
    %v4810 = vpop.f32.mrf.mxu0
    %v4811 = vadd.f32 %v4797, %v4810
    %v4812 = vpop.f32.mrf.mxu0
    %v4813 = vadd.f32 %v4799, %v4812
    %4814 = vdwg.mxu0
    %4815 = vmatpush.bf16.msra.mxu0 %v4404
    %4816 = vmatpush.bf16.msra.mxu0 %v4396
    %4817 = vmatpush.bf16.msra.mxu0 %v4388
    %4818 = vmatpush.bf16.msra.mxu0 %v4380
    %4819 = vmatpush.bf16.msra.mxu0 %v4372
    %4820 = vmatpush.bf16.msra.mxu0 %v4364
    %4821 = vmatpush.bf16.msra.mxu0 %v4356
    %4822 = vmatpush.bf16.msra.mxu0 %v4348
    %4823 = vmatmul.bf16.gmra.mxu0 %v3193
    %v4824 = vpop.f32.mrf.mxu0
    %v4825 = vadd.f32 %v4811, %v4824
    %v4826 = vpop.f32.mrf.mxu0
    %v4827 = vadd.f32 %v4813, %v4826
    %4828 = vdwg.mxu0
    %4829 = vmatpush.bf16.msra.mxu0 %v4468
    %4830 = vmatpush.bf16.msra.mxu0 %v4460
    %4831 = vmatpush.bf16.msra.mxu0 %v4452
    %4832 = vmatpush.bf16.msra.mxu0 %v4444
    %4833 = vmatpush.bf16.msra.mxu0 %v4436
    %4834 = vmatpush.bf16.msra.mxu0 %v4428
    %4835 = vmatpush.bf16.msra.mxu0 %v4420
    %4836 = vmatpush.bf16.msra.mxu0 %v4412
    %4837 = vmatmul.bf16.gmra.mxu0 %v3194
    %v4838 = vpop.f32.mrf.mxu0
    %v4839 = vadd.f32 %v4825, %v4838
    %v4840 = vpop.f32.mrf.mxu0
    %v4841 = vadd.f32 %v4827, %v4840
    %4842 = vdwg.mxu0
    %4843 = vmatpush.bf16.msra.mxu0 %v4277
    %4844 = vmatpush.bf16.msra.mxu0 %v4269
    %4845 = vmatpush.bf16.msra.mxu0 %v4261
    %4846 = vmatpush.bf16.msra.mxu0 %v4253
    %4847 = vmatpush.bf16.msra.mxu0 %v4245
    %4848 = vmatpush.bf16.msra.mxu0 %v4237
    %4849 = vmatpush.bf16.msra.mxu0 %v4229
    %4850 = vmatpush.bf16.msra.mxu0 %v4221
    %4851 = vmatmul.bf16.gmra.mxu0 %v3191
    %v4852 = vpop.f32.mrf.mxu0
    %v4853 = vadd.f32 0.0, %v4852
    %v4854 = vpop.f32.mrf.mxu0
    %v4855 = vadd.f32 0.0, %v4854
    %4856 = vdwg.mxu0
    %4857 = vmatpush.bf16.msra.mxu0 %v4341
    %4858 = vmatpush.bf16.msra.mxu0 %v4333
    %4859 = vmatpush.bf16.msra.mxu0 %v4325
    %4860 = vmatpush.bf16.msra.mxu0 %v4317
    %4861 = vmatpush.bf16.msra.mxu0 %v4309
    %4862 = vmatpush.bf16.msra.mxu0 %v4301
    %4863 = vmatpush.bf16.msra.mxu0 %v4293
    %4864 = vmatpush.bf16.msra.mxu0 %v4285
    %4865 = vmatmul.bf16.gmra.mxu0 %v3192
    %v4866 = vpop.f32.mrf.mxu0
    %v4867 = vadd.f32 %v4853, %v4866
    %v4868 = vpop.f32.mrf.mxu0
    %v4869 = vadd.f32 %v4855, %v4868
    %4870 = vdwg.mxu0
    %4871 = vmatpush.bf16.msra.mxu0 %v4405
    %4872 = vmatpush.bf16.msra.mxu0 %v4397
    %4873 = vmatpush.bf16.msra.mxu0 %v4389
    %4874 = vmatpush.bf16.msra.mxu0 %v4381
    %4875 = vmatpush.bf16.msra.mxu0 %v4373
    %4876 = vmatpush.bf16.msra.mxu0 %v4365
    %4877 = vmatpush.bf16.msra.mxu0 %v4357
    %4878 = vmatpush.bf16.msra.mxu0 %v4349
    %4879 = vmatmul.bf16.gmra.mxu0 %v3193
    %v4880 = vpop.f32.mrf.mxu0
    %v4881 = vadd.f32 %v4867, %v4880
    %v4882 = vpop.f32.mrf.mxu0
    %v4883 = vadd.f32 %v4869, %v4882
    %4884 = vdwg.mxu0
    %4885 = vmatpush.bf16.msra.mxu0 %v4469
    %4886 = vmatpush.bf16.msra.mxu0 %v4461
    %4887 = vmatpush.bf16.msra.mxu0 %v4453
    %4888 = vmatpush.bf16.msra.mxu0 %v4445
    %4889 = vmatpush.bf16.msra.mxu0 %v4437
    %4890 = vmatpush.bf16.msra.mxu0 %v4429
    %4891 = vmatpush.bf16.msra.mxu0 %v4421
    %4892 = vmatpush.bf16.msra.mxu0 %v4413
    %4893 = vmatmul.bf16.gmra.mxu0 %v3194
    %v4894 = vpop.f32.mrf.mxu0
    %v4895 = vadd.f32 %v4881, %v4894
    %v4896 = vpop.f32.mrf.mxu0
    %v4897 = vadd.f32 %v4883, %v4896
    %4898 = vdwg.mxu0
    %4899 = vmatpush.bf16.msra.mxu0 %v4278
    %4900 = vmatpush.bf16.msra.mxu0 %v4270
    %4901 = vmatpush.bf16.msra.mxu0 %v4262
    %4902 = vmatpush.bf16.msra.mxu0 %v4254
    %4903 = vmatpush.bf16.msra.mxu0 %v4246
    %4904 = vmatpush.bf16.msra.mxu0 %v4238
    %4905 = vmatpush.bf16.msra.mxu0 %v4230
    %4906 = vmatpush.bf16.msra.mxu0 %v4222
    %4907 = vmatmul.bf16.gmra.mxu0 %v3191
    %v4908 = vpop.f32.mrf.mxu0
    %v4909 = vadd.f32 0.0, %v4908
    %v4910 = vpop.f32.mrf.mxu0
    %v4911 = vadd.f32 0.0, %v4910
    %4912 = vdwg.mxu0
    %4913 = vmatpush.bf16.msra.mxu0 %v4342
    %4914 = vmatpush.bf16.msra.mxu0 %v4334
    %4915 = vmatpush.bf16.msra.mxu0 %v4326
    %4916 = vmatpush.bf16.msra.mxu0 %v4318
    %4917 = vmatpush.bf16.msra.mxu0 %v4310
    %4918 = vmatpush.bf16.msra.mxu0 %v4302
    %4919 = vmatpush.bf16.msra.mxu0 %v4294
    %4920 = vmatpush.bf16.msra.mxu0 %v4286
    %4921 = vmatmul.bf16.gmra.mxu0 %v3192
    %v4922 = vpop.f32.mrf.mxu0
    %v4923 = vadd.f32 %v4909, %v4922
    %v4924 = vpop.f32.mrf.mxu0
    %v4925 = vadd.f32 %v4911, %v4924
    %4926 = vdwg.mxu0
    %4927 = vmatpush.bf16.msra.mxu0 %v4406
    %4928 = vmatpush.bf16.msra.mxu0 %v4398
    %4929 = vmatpush.bf16.msra.mxu0 %v4390
    %4930 = vmatpush.bf16.msra.mxu0 %v4382
    %4931 = vmatpush.bf16.msra.mxu0 %v4374
    %4932 = vmatpush.bf16.msra.mxu0 %v4366
    %4933 = vmatpush.bf16.msra.mxu0 %v4358
    %4934 = vmatpush.bf16.msra.mxu0 %v4350
    %4935 = vmatmul.bf16.gmra.mxu0 %v3193
    %v4936 = vpop.f32.mrf.mxu0
    %v4937 = vadd.f32 %v4923, %v4936
    %v4938 = vpop.f32.mrf.mxu0
    %v4939 = vadd.f32 %v4925, %v4938
    %4940 = vdwg.mxu0
    %4941 = vmatpush.bf16.msra.mxu0 %v4470
    %4942 = vmatpush.bf16.msra.mxu0 %v4462
    %4943 = vmatpush.bf16.msra.mxu0 %v4454
    %4944 = vmatpush.bf16.msra.mxu0 %v4446
    %4945 = vmatpush.bf16.msra.mxu0 %v4438
    %4946 = vmatpush.bf16.msra.mxu0 %v4430
    %4947 = vmatpush.bf16.msra.mxu0 %v4422
    %4948 = vmatpush.bf16.msra.mxu0 %v4414
    %4949 = vmatmul.bf16.gmra.mxu0 %v3194
    %v4950 = vpop.f32.mrf.mxu0
    %v4951 = vadd.f32 %v4937, %v4950
    %v4952 = vpop.f32.mrf.mxu0
    %v4953 = vadd.f32 %v4939, %v4952
    %4954 = vdwg.mxu0
    %4955 = vmatpush.bf16.msra.mxu0 %v4279
    %4956 = vmatpush.bf16.msra.mxu0 %v4271
    %4957 = vmatpush.bf16.msra.mxu0 %v4263
    %4958 = vmatpush.bf16.msra.mxu0 %v4255
    %4959 = vmatpush.bf16.msra.mxu0 %v4247
    %4960 = vmatpush.bf16.msra.mxu0 %v4239
    %4961 = vmatpush.bf16.msra.mxu0 %v4231
    %4962 = vmatpush.bf16.msra.mxu0 %v4223
    %4963 = vmatmul.bf16.gmra.mxu0 %v3191
    %v4964 = vpop.f32.mrf.mxu0
    %v4965 = vadd.f32 0.0, %v4964
    %v4966 = vpop.f32.mrf.mxu0
    %v4967 = vadd.f32 0.0, %v4966
    %4968 = vdwg.mxu0
    %4969 = vmatpush.bf16.msra.mxu0 %v4343
    %4970 = vmatpush.bf16.msra.mxu0 %v4335
    %4971 = vmatpush.bf16.msra.mxu0 %v4327
    %4972 = vmatpush.bf16.msra.mxu0 %v4319
    %4973 = vmatpush.bf16.msra.mxu0 %v4311
    %4974 = vmatpush.bf16.msra.mxu0 %v4303
    %4975 = vmatpush.bf16.msra.mxu0 %v4295
    %4976 = vmatpush.bf16.msra.mxu0 %v4287
    %4977 = vmatmul.bf16.gmra.mxu0 %v3192
    %v4978 = vpop.f32.mrf.mxu0
    %v4979 = vadd.f32 %v4965, %v4978
    %v4980 = vpop.f32.mrf.mxu0
    %v4981 = vadd.f32 %v4967, %v4980
    %4982 = vdwg.mxu0
    %4983 = vmatpush.bf16.msra.mxu0 %v4407
    %4984 = vmatpush.bf16.msra.mxu0 %v4399
    %4985 = vmatpush.bf16.msra.mxu0 %v4391
    %4986 = vmatpush.bf16.msra.mxu0 %v4383
    %4987 = vmatpush.bf16.msra.mxu0 %v4375
    %4988 = vmatpush.bf16.msra.mxu0 %v4367
    %4989 = vmatpush.bf16.msra.mxu0 %v4359
    %4990 = vmatpush.bf16.msra.mxu0 %v4351
    %4991 = vmatmul.bf16.gmra.mxu0 %v3193
    %v4992 = vpop.f32.mrf.mxu0
    %v4993 = vadd.f32 %v4979, %v4992
    %v4994 = vpop.f32.mrf.mxu0
    %v4995 = vadd.f32 %v4981, %v4994
    %4996 = vdwg.mxu0
    %4997 = vmatpush.bf16.msra.mxu0 %v4471
    %4998 = vmatpush.bf16.msra.mxu0 %v4463
    %4999 = vmatpush.bf16.msra.mxu0 %v4455
    %5000 = vmatpush.bf16.msra.mxu0 %v4447
    %5001 = vmatpush.bf16.msra.mxu0 %v4439
    %5002 = vmatpush.bf16.msra.mxu0 %v4431
    %5003 = vmatpush.bf16.msra.mxu0 %v4423
    %5004 = vmatpush.bf16.msra.mxu0 %v4415
    %5005 = vmatmul.bf16.gmra.mxu0 %v3194
    %v5006 = vpop.f32.mrf.mxu0
    %v5007 = vadd.f32 %v4993, %v5006
    %v5008 = vpop.f32.mrf.mxu0
    %v5009 = vadd.f32 %v4995, %v5008
    %5010 = vdwg.mxu0
    %5011 = vmatpush.bf16.msra.mxu0 %v4280
    %5012 = vmatpush.bf16.msra.mxu0 %v4272
    %5013 = vmatpush.bf16.msra.mxu0 %v4264
    %5014 = vmatpush.bf16.msra.mxu0 %v4256
    %5015 = vmatpush.bf16.msra.mxu0 %v4248
    %5016 = vmatpush.bf16.msra.mxu0 %v4240
    %5017 = vmatpush.bf16.msra.mxu0 %v4232
    %5018 = vmatpush.bf16.msra.mxu0 %v4224
    %5019 = vmatmul.bf16.gmra.mxu0 %v3191
    %v5020 = vpop.f32.mrf.mxu0
    %v5021 = vadd.f32 0.0, %v5020
    %v5022 = vpop.f32.mrf.mxu0
    %v5023 = vadd.f32 0.0, %v5022
    %5024 = vdwg.mxu0
    %5025 = vmatpush.bf16.msra.mxu0 %v4344
    %5026 = vmatpush.bf16.msra.mxu0 %v4336
    %5027 = vmatpush.bf16.msra.mxu0 %v4328
    %5028 = vmatpush.bf16.msra.mxu0 %v4320
    %5029 = vmatpush.bf16.msra.mxu0 %v4312
    %5030 = vmatpush.bf16.msra.mxu0 %v4304
    %5031 = vmatpush.bf16.msra.mxu0 %v4296
    %5032 = vmatpush.bf16.msra.mxu0 %v4288
    %5033 = vmatmul.bf16.gmra.mxu0 %v3192
    %v5034 = vpop.f32.mrf.mxu0
    %v5035 = vadd.f32 %v5021, %v5034
    %v5036 = vpop.f32.mrf.mxu0
    %v5037 = vadd.f32 %v5023, %v5036
    %5038 = vdwg.mxu0
    %5039 = vmatpush.bf16.msra.mxu0 %v4408
    %5040 = vmatpush.bf16.msra.mxu0 %v4400
    %5041 = vmatpush.bf16.msra.mxu0 %v4392
    %5042 = vmatpush.bf16.msra.mxu0 %v4384
    %5043 = vmatpush.bf16.msra.mxu0 %v4376
    %5044 = vmatpush.bf16.msra.mxu0 %v4368
    %5045 = vmatpush.bf16.msra.mxu0 %v4360
    %5046 = vmatpush.bf16.msra.mxu0 %v4352
    %5047 = vmatmul.bf16.gmra.mxu0 %v3193
    %v5048 = vpop.f32.mrf.mxu0
    %v5049 = vadd.f32 %v5035, %v5048
    %v5050 = vpop.f32.mrf.mxu0
    %v5051 = vadd.f32 %v5037, %v5050
    %5052 = vdwg.mxu0
    %5053 = vmatpush.bf16.msra.mxu0 %v4472
    %5054 = vmatpush.bf16.msra.mxu0 %v4464
    %5055 = vmatpush.bf16.msra.mxu0 %v4456
    %5056 = vmatpush.bf16.msra.mxu0 %v4448
    %5057 = vmatpush.bf16.msra.mxu0 %v4440
    %5058 = vmatpush.bf16.msra.mxu0 %v4432
    %5059 = vmatpush.bf16.msra.mxu0 %v4424
    %5060 = vmatpush.bf16.msra.mxu0 %v4416
    %5061 = vmatmul.bf16.gmra.mxu0 %v3194
    %v5062 = vpop.f32.mrf.mxu0
    %v5063 = vadd.f32 %v5049, %v5062
    %v5064 = vpop.f32.mrf.mxu0
    %v5065 = vadd.f32 %v5051, %v5064
    %5066 = vdwg.mxu0
    %5067 = vmatpush.bf16.msra.mxu0 %v4281
    %5068 = vmatpush.bf16.msra.mxu0 %v4273
    %5069 = vmatpush.bf16.msra.mxu0 %v4265
    %5070 = vmatpush.bf16.msra.mxu0 %v4257
    %5071 = vmatpush.bf16.msra.mxu0 %v4249
    %5072 = vmatpush.bf16.msra.mxu0 %v4241
    %5073 = vmatpush.bf16.msra.mxu0 %v4233
    %5074 = vmatpush.bf16.msra.mxu0 %v4225
    %5075 = vmatmul.bf16.gmra.mxu0 %v3191
    %v5076 = vpop.f32.mrf.mxu0
    %v5077 = vadd.f32 0.0, %v5076
    %v5078 = vpop.f32.mrf.mxu0
    %v5079 = vadd.f32 0.0, %v5078
    %5080 = vdwg.mxu0
    %5081 = vmatpush.bf16.msra.mxu0 %v4345
    %5082 = vmatpush.bf16.msra.mxu0 %v4337
    %5083 = vmatpush.bf16.msra.mxu0 %v4329
    %5084 = vmatpush.bf16.msra.mxu0 %v4321
    %5085 = vmatpush.bf16.msra.mxu0 %v4313
    %5086 = vmatpush.bf16.msra.mxu0 %v4305
    %5087 = vmatpush.bf16.msra.mxu0 %v4297
    %5088 = vmatpush.bf16.msra.mxu0 %v4289
    %5089 = vmatmul.bf16.gmra.mxu0 %v3192
    %v5090 = vpop.f32.mrf.mxu0
    %v5091 = vadd.f32 %v5077, %v5090
    %v5092 = vpop.f32.mrf.mxu0
    %v5093 = vadd.f32 %v5079, %v5092
    %5094 = vdwg.mxu0
    %5095 = vmatpush.bf16.msra.mxu0 %v4409
    %5096 = vmatpush.bf16.msra.mxu0 %v4401
    %5097 = vmatpush.bf16.msra.mxu0 %v4393
    %5098 = vmatpush.bf16.msra.mxu0 %v4385
    %5099 = vmatpush.bf16.msra.mxu0 %v4377
    %5100 = vmatpush.bf16.msra.mxu0 %v4369
    %5101 = vmatpush.bf16.msra.mxu0 %v4361
    %5102 = vmatpush.bf16.msra.mxu0 %v4353
    %5103 = vmatmul.bf16.gmra.mxu0 %v3193
    %v5104 = vpop.f32.mrf.mxu0
    %v5105 = vadd.f32 %v5091, %v5104
    %v5106 = vpop.f32.mrf.mxu0
    %v5107 = vadd.f32 %v5093, %v5106
    %5108 = vdwg.mxu0
    %5109 = vmatpush.bf16.msra.mxu0 %v4473
    %5110 = vmatpush.bf16.msra.mxu0 %v4465
    %5111 = vmatpush.bf16.msra.mxu0 %v4457
    %5112 = vmatpush.bf16.msra.mxu0 %v4449
    %5113 = vmatpush.bf16.msra.mxu0 %v4441
    %5114 = vmatpush.bf16.msra.mxu0 %v4433
    %5115 = vmatpush.bf16.msra.mxu0 %v4425
    %5116 = vmatpush.bf16.msra.mxu0 %v4417
    %5117 = vmatmul.bf16.gmra.mxu0 %v3194
    %v5118 = vpop.f32.mrf.mxu0
    %v5119 = vadd.f32 %v5105, %v5118
    %v5120 = vpop.f32.mrf.mxu0
    %v5121 = vadd.f32 %v5107, %v5120
    %5122 = vdwg.mxu0
    %5123 = vmatpush.bf16.msra.mxu0 %v4282
    %5124 = vmatpush.bf16.msra.mxu0 %v4274
    %5125 = vmatpush.bf16.msra.mxu0 %v4266
    %5126 = vmatpush.bf16.msra.mxu0 %v4258
    %5127 = vmatpush.bf16.msra.mxu0 %v4250
    %5128 = vmatpush.bf16.msra.mxu0 %v4242
    %5129 = vmatpush.bf16.msra.mxu0 %v4234
    %5130 = vmatpush.bf16.msra.mxu0 %v4226
    %5131 = vmatmul.bf16.gmra.mxu0 %v3191
    %v5132 = vpop.f32.mrf.mxu0
    %v5133 = vadd.f32 0.0, %v5132
    %v5134 = vpop.f32.mrf.mxu0
    %v5135 = vadd.f32 0.0, %v5134
    %5136 = vdwg.mxu0
    %5137 = vmatpush.bf16.msra.mxu0 %v4346
    %5138 = vmatpush.bf16.msra.mxu0 %v4338
    %5139 = vmatpush.bf16.msra.mxu0 %v4330
    %5140 = vmatpush.bf16.msra.mxu0 %v4322
    %5141 = vmatpush.bf16.msra.mxu0 %v4314
    %5142 = vmatpush.bf16.msra.mxu0 %v4306
    %5143 = vmatpush.bf16.msra.mxu0 %v4298
    %5144 = vmatpush.bf16.msra.mxu0 %v4290
    %5145 = vmatmul.bf16.gmra.mxu0 %v3192
    %v5146 = vpop.f32.mrf.mxu0
    %v5147 = vadd.f32 %v5133, %v5146
    %v5148 = vpop.f32.mrf.mxu0
    %v5149 = vadd.f32 %v5135, %v5148
    %5150 = vdwg.mxu0
    %5151 = vmatpush.bf16.msra.mxu0 %v4410
    %5152 = vmatpush.bf16.msra.mxu0 %v4402
    %5153 = vmatpush.bf16.msra.mxu0 %v4394
    %5154 = vmatpush.bf16.msra.mxu0 %v4386
    %5155 = vmatpush.bf16.msra.mxu0 %v4378
    %5156 = vmatpush.bf16.msra.mxu0 %v4370
    %5157 = vmatpush.bf16.msra.mxu0 %v4362
    %5158 = vmatpush.bf16.msra.mxu0 %v4354
    %5159 = vmatmul.bf16.gmra.mxu0 %v3193
    %v5160 = vpop.f32.mrf.mxu0
    %v5161 = vadd.f32 %v5147, %v5160
    %v5162 = vpop.f32.mrf.mxu0
    %v5163 = vadd.f32 %v5149, %v5162
    %5164 = vdwg.mxu0
    %5165 = vmatpush.bf16.msra.mxu0 %v4474
    %5166 = vmatpush.bf16.msra.mxu0 %v4466
    %5167 = vmatpush.bf16.msra.mxu0 %v4458
    %5168 = vmatpush.bf16.msra.mxu0 %v4450
    %5169 = vmatpush.bf16.msra.mxu0 %v4442
    %5170 = vmatpush.bf16.msra.mxu0 %v4434
    %5171 = vmatpush.bf16.msra.mxu0 %v4426
    %5172 = vmatpush.bf16.msra.mxu0 %v4418
    %5173 = vmatmul.bf16.gmra.mxu0 %v3194
    %v5174 = vpop.f32.mrf.mxu0
    %v5175 = vadd.f32 %v5161, %v5174
    %v5176 = vpop.f32.mrf.mxu0
    %v5177 = vadd.f32 %v5163, %v5176
    %5178 = vdwg.mxu0
    %v5179 = vmax.f32 %v4783, %v4895
    %v5180 = vmax.f32 %v4839, %v4951
    %v5181 = vmax.f32 %v4785, %v4897
    %v5182 = vmax.f32 %v4841, %v4953
    %v5183 = vmax.f32 %v5007, %v5119
    %v5184 = vmax.f32 %v5063, %v5175
    %v5185 = vmax.f32 %v5009, %v5121
    %v5186 = vmax.f32 %v5065, %v5177
    %v5187 = vmax.f32 %v5179, %v5183
    %v5188 = vmax.f32 %v5180, %v5184
    %v5189 = vmax.f32 %v5181, %v5185
    %v5190 = vmax.f32 %v5182, %v5186
    %v5191 = vld [vmem:[#allocation8] sm:$0x3]
    %v5193 = vperm.slane %v5191, 0
    %v5194 = vperm.slane %v5191, 1
    %v5197 = vadd.f32 %v5187, %v5193
    %v5198 = vadd.f32 %v5188, %v5194
    %v5199 = vadd.f32 %v5189, %v5193
    %v5200 = vadd.f32 %v5190, %v5194
    %v5201 = vmax.f32 %v5197, 0.0
    %v5202 = vmax.f32 %v5198, 0.0
    %v5203 = vmax.f32 %v5199, 0.0
    %v5204 = vmax.f32 %v5200, 0.0
    %v5205 = vpack.c.bf16 %v5202, %v5201
    %v5206 = vpack.c.bf16 %v5204, %v5203
    %v5207 = vld [vmem:[%s1] sm:$0xf]
    %v5208 = vld [vmem:[%s1 + $0x4] sm:$0xf]
    %v5211 = vunpack.c.l.b16 %v5205
    %v5212 = vunpack.c.h.b16 %v5205
    %v5213 = vunpack.c.l.b16 %v5206
    %v5214 = vunpack.c.h.b16 %v5206
    %v5215 = vpack.c.b16 %v5213, %v5211
    %v5216 = vpack.c.b16 %v5214, %v5212
    %v5221 = vunpack.c.l.b16 %v5207
    %v5222 = vunpack.c.l.b16 %v5208
    %v5223 = vpack.c.b16 %v5222, %v5221
    %v5224 = vld [vmem:[#allocation10] sm:$0xff]
    %v5225 = vld [vmem:[#allocation10 + $0x8] sm:$0xff]
    %v5226 = vld [vmem:[#allocation10 + $0x10] sm:$0xff]
    %v5227 = vld [vmem:[#allocation10 + $0x18] sm:$0xff]
    %v5228 = vld [vmem:[#allocation10 + $0x20] sm:$0xff]
    %v5229 = vld [vmem:[#allocation10 + $0x28] sm:$0xff]
    %v5230 = vld [vmem:[#allocation10 + $0x30] sm:$0xff]
    %v5231 = vld [vmem:[#allocation10 + $0x38] sm:$0xff]
    %v5232 = vld [vmem:[#allocation10 + $0x40] sm:$0xff]
    %v5233 = vld [vmem:[#allocation10 + $0x48] sm:$0xff]
    %v5234 = vld [vmem:[#allocation10 + $0x50] sm:$0xff]
    %v5235 = vld [vmem:[#allocation10 + $0x58] sm:$0xff]
    %v5236 = vld [vmem:[#allocation10 + $0x60] sm:$0xff]
    %v5237 = vld [vmem:[#allocation10 + $0x68] sm:$0xff]
    %v5238 = vld [vmem:[#allocation10 + $0x70] sm:$0xff]
    %v5239 = vld [vmem:[#allocation10 + $0x78] sm:$0xff]
    %v5240 = vld [vmem:[#allocation10 + $0x80] sm:$0xff]
    %v5241 = vld [vmem:[#allocation10 + $0x88] sm:$0xff]
    %v5242 = vld [vmem:[#allocation10 + $0x90] sm:$0xff]
    %v5243 = vld [vmem:[#allocation10 + $0x98] sm:$0xff]
    %v5244 = vld [vmem:[#allocation10 + $0xa0] sm:$0xff]
    %v5245 = vld [vmem:[#allocation10 + $0xa8] sm:$0xff]
    %v5246 = vld [vmem:[#allocation10 + $0xb0] sm:$0xff]
    %v5247 = vld [vmem:[#allocation10 + $0xb8] sm:$0xff]
    %v5248 = vld [vmem:[#allocation10 + $0xc0] sm:$0xff]
    %v5249 = vld [vmem:[#allocation10 + $0xc8] sm:$0xff]
    %v5250 = vld [vmem:[#allocation10 + $0xd0] sm:$0xff]
    %v5251 = vld [vmem:[#allocation10 + $0xd8] sm:$0xff]
    %v5252 = vld [vmem:[#allocation10 + $0xe0] sm:$0xff]
    %v5253 = vld [vmem:[#allocation10 + $0xe8] sm:$0xff]
    %v5254 = vld [vmem:[#allocation10 + $0xf0] sm:$0xff]
    %v5255 = vld [vmem:[#allocation10 + $0xf8] sm:$0xff]
    %v5256 = vld [vmem:[#allocation10 + $0x100] sm:$0xff]
    %v5257 = vld [vmem:[#allocation11] sm:$0x3]
    %v5259 = vperm.slane %v5257, 0
    %v5260 = vperm.slane %v5257, 1
    %v5296 = vunpack.c.l.b16 %v5224
    %v5297 = vunpack.c.h.b16 %v5224
    %v5298 = vunpack.c.l.b16 %v5225
    %v5299 = vunpack.c.h.b16 %v5225
    %v5300 = vunpack.c.l.b16 %v5226
    %v5301 = vunpack.c.h.b16 %v5226
    %v5302 = vunpack.c.l.b16 %v5227
    %v5303 = vunpack.c.h.b16 %v5227
    %v5304 = vunpack.c.l.b16 %v5228
    %v5305 = vunpack.c.h.b16 %v5228
    %v5306 = vunpack.c.l.b16 %v5229
    %v5307 = vunpack.c.h.b16 %v5229
    %v5308 = vunpack.c.l.b16 %v5230
    %v5309 = vunpack.c.h.b16 %v5230
    %v5310 = vunpack.c.l.b16 %v5231
    %v5311 = vunpack.c.h.b16 %v5231
    %v5312 = vunpack.c.l.b16 %v5232
    %v5313 = vunpack.c.h.b16 %v5232
    %v5314 = vunpack.c.l.b16 %v5233
    %v5315 = vunpack.c.h.b16 %v5233
    %v5316 = vunpack.c.l.b16 %v5234
    %v5317 = vunpack.c.h.b16 %v5234
    %v5318 = vunpack.c.l.b16 %v5235
    %v5319 = vunpack.c.h.b16 %v5235
    %v5320 = vunpack.c.l.b16 %v5236
    %v5321 = vunpack.c.h.b16 %v5236
    %v5322 = vunpack.c.l.b16 %v5237
    %v5323 = vunpack.c.h.b16 %v5237
    %v5324 = vunpack.c.l.b16 %v5238
    %v5325 = vunpack.c.h.b16 %v5238
    %v5326 = vunpack.c.l.b16 %v5239
    %v5327 = vunpack.c.h.b16 %v5239
    %v5328 = vunpack.c.l.b16 %v5240
    %v5329 = vunpack.c.h.b16 %v5240
    %v5330 = vunpack.c.l.b16 %v5241
    %v5331 = vunpack.c.h.b16 %v5241
    %v5332 = vunpack.c.l.b16 %v5242
    %v5333 = vunpack.c.h.b16 %v5242
    %v5334 = vunpack.c.l.b16 %v5243
    %v5335 = vunpack.c.h.b16 %v5243
    %v5336 = vunpack.c.l.b16 %v5244
    %v5337 = vunpack.c.h.b16 %v5244
    %v5338 = vunpack.c.l.b16 %v5245
    %v5339 = vunpack.c.h.b16 %v5245
    %v5340 = vunpack.c.l.b16 %v5246
    %v5341 = vunpack.c.h.b16 %v5246
    %v5342 = vunpack.c.l.b16 %v5247
    %v5343 = vunpack.c.h.b16 %v5247
    %v5344 = vunpack.c.l.b16 %v5248
    %v5345 = vunpack.c.h.b16 %v5248
    %v5346 = vunpack.c.l.b16 %v5249
    %v5347 = vunpack.c.h.b16 %v5249
    %v5348 = vunpack.c.l.b16 %v5250
    %v5349 = vunpack.c.h.b16 %v5250
    %v5350 = vunpack.c.l.b16 %v5251
    %v5351 = vunpack.c.h.b16 %v5251
    %v5352 = vunpack.c.l.b16 %v5252
    %v5353 = vunpack.c.h.b16 %v5252
    %v5354 = vunpack.c.l.b16 %v5253
    %v5355 = vunpack.c.h.b16 %v5253
    %v5356 = vunpack.c.l.b16 %v5254
    %v5357 = vunpack.c.h.b16 %v5254
    %v5358 = vunpack.c.l.b16 %v5255
    %v5359 = vunpack.c.h.b16 %v5255
    %v5360 = vunpack.c.l.b16 %v5256
    %v5361 = vunpack.c.h.b16 %v5256
    %v5362 = vpack.c.b16 %v5298, %v5296
    %v5363 = vpack.c.b16 %v5299, %v5297
    %v5364 = vpack.c.b16 %v5302, %v5300
    %v5365 = vpack.c.b16 %v5303, %v5301
    %v5366 = vpack.c.b16 %v5306, %v5304
    %v5367 = vpack.c.b16 %v5307, %v5305
    %v5368 = vpack.c.b16 %v5310, %v5308
    %v5369 = vpack.c.b16 %v5311, %v5309
    %v5370 = vpack.c.b16 %v5314, %v5312
    %v5371 = vpack.c.b16 %v5315, %v5313
    %v5372 = vpack.c.b16 %v5318, %v5316
    %v5373 = vpack.c.b16 %v5319, %v5317
    %v5374 = vpack.c.b16 %v5322, %v5320
    %v5375 = vpack.c.b16 %v5323, %v5321
    %v5376 = vpack.c.b16 %v5326, %v5324
    %v5377 = vpack.c.b16 %v5327, %v5325
    %v5378 = vpack.c.b16 %v5330, %v5328
    %v5379 = vpack.c.b16 %v5331, %v5329
    %v5380 = vpack.c.b16 %v5334, %v5332
    %v5381 = vpack.c.b16 %v5335, %v5333
    %v5382 = vpack.c.b16 %v5338, %v5336
    %v5383 = vpack.c.b16 %v5339, %v5337
    %v5384 = vpack.c.b16 %v5342, %v5340
    %v5385 = vpack.c.b16 %v5343, %v5341
    %v5386 = vpack.c.b16 %v5346, %v5344
    %v5387 = vpack.c.b16 %v5347, %v5345
    %v5388 = vpack.c.b16 %v5350, %v5348
    %v5389 = vpack.c.b16 %v5351, %v5349
    %v5390 = vpack.c.b16 %v5354, %v5352
    %v5391 = vpack.c.b16 %v5355, %v5353
    %v5392 = vpack.c.b16 %v5358, %v5356
    %v5393 = vpack.c.b16 %v5359, %v5357
    %v5394 = vpack.c.b16 %v5360, %v5360
    %v5395 = vpack.c.b16 %v5361, %v5361
    %vm5428 = vcmask 64512
    %v5430 = vsel %vm5428, %v5223, 0
    %vm5432 = vcmask 1043456
    %v5434 = vsel %vm5432, %v5394, 0
    %v5437 = vsel %vm5432, %v5395, 0
    %5439 = vmatpush.bf16.msra.mxu0 %v5376
    %5440 = vmatpush.bf16.msra.mxu0 %v5374
    %5441 = vmatpush.bf16.msra.mxu0 %v5372
    %5442 = vmatpush.bf16.msra.mxu0 %v5370
    %5443 = vmatpush.bf16.msra.mxu0 %v5368
    %5444 = vmatpush.bf16.msra.mxu0 %v5366
    %5445 = vmatpush.bf16.msra.mxu0 %v5364
    %5446 = vmatpush.bf16.msra.mxu0 %v5362
    %5447 = vmatmul.bf16.gmra.mxu0 %v5215
    %v5448 = vpop.f32.mrf.mxu0
    %v5449 = vadd.f32 %v5259, %v5448
    %v5450 = vpop.f32.mrf.mxu0
    %v5451 = vadd.f32 %v5259, %v5450
    %5452 = vdwg.mxu0
    %5453 = vmatpush.bf16.msra.mxu0 %v5392
    %5454 = vmatpush.bf16.msra.mxu0 %v5390
    %5455 = vmatpush.bf16.msra.mxu0 %v5388
    %5456 = vmatpush.bf16.msra.mxu0 %v5386
    %5457 = vmatpush.bf16.msra.mxu0 %v5384
    %5458 = vmatpush.bf16.msra.mxu0 %v5382
    %5459 = vmatpush.bf16.msra.mxu0 %v5380
    %5460 = vmatpush.bf16.msra.mxu0 %v5378
    %5461 = vmatmul.bf16.gmra.mxu0 %v5216
    %v5462 = vpop.f32.mrf.mxu0
    %v5463 = vadd.f32 %v5449, %v5462
    %v5464 = vpop.f32.mrf.mxu0
    %v5465 = vadd.f32 %v5451, %v5464
    %5466 = vdwg.mxu0
    %5467 = vmatpush.bf16.msra.mxu0 0
    %5468 = vmatpush.bf16.msra.mxu0 0
    %5469 = vmatpush.bf16.msra.mxu0 0
    %5470 = vmatpush.bf16.msra.mxu0 0
    %5471 = vmatpush.bf16.msra.mxu0 0
    %5472 = vmatpush.bf16.msra.mxu0 0
    %5473 = vmatpush.bf16.msra.mxu0 0
    %5474 = vmatpush.bf16.msra.mxu0 %v5434
    %5475 = vmatmul.bf16.gmra.mxu0 %v5430
    %v5476 = vpop.f32.mrf.mxu0
    %v5477 = vadd.f32 %v5463, %v5476
    %v5478 = vpop.f32.mrf.mxu0
    %v5479 = vadd.f32 %v5465, %v5478
    %5480 = vdwg.mxu0
    %5481 = vmatpush.bf16.msra.mxu0 %v5377
    %5482 = vmatpush.bf16.msra.mxu0 %v5375
    %5483 = vmatpush.bf16.msra.mxu0 %v5373
    %5484 = vmatpush.bf16.msra.mxu0 %v5371
    %5485 = vmatpush.bf16.msra.mxu0 %v5369
    %5486 = vmatpush.bf16.msra.mxu0 %v5367
    %5487 = vmatpush.bf16.msra.mxu0 %v5365
    %5488 = vmatpush.bf16.msra.mxu0 %v5363
    %5489 = vmatmul.bf16.gmra.mxu0 %v5215
    %v5490 = vpop.f32.mrf.mxu0
    %v5491 = vadd.f32 %v5260, %v5490
    %v5492 = vpop.f32.mrf.mxu0
    %v5493 = vadd.f32 %v5260, %v5492
    %5494 = vdwg.mxu0
    %5495 = vmatpush.bf16.msra.mxu0 %v5393
    %5496 = vmatpush.bf16.msra.mxu0 %v5391
    %5497 = vmatpush.bf16.msra.mxu0 %v5389
    %5498 = vmatpush.bf16.msra.mxu0 %v5387
    %5499 = vmatpush.bf16.msra.mxu0 %v5385
    %5500 = vmatpush.bf16.msra.mxu0 %v5383
    %5501 = vmatpush.bf16.msra.mxu0 %v5381
    %5502 = vmatpush.bf16.msra.mxu0 %v5379
    %5503 = vmatmul.bf16.gmra.mxu0 %v5216
    %v5504 = vpop.f32.mrf.mxu0
    %v5505 = vadd.f32 %v5491, %v5504
    %v5506 = vpop.f32.mrf.mxu0
    %v5507 = vadd.f32 %v5493, %v5506
    %5508 = vdwg.mxu0
    %5509 = vmatpush.bf16.msra.mxu0 0
    %5510 = vmatpush.bf16.msra.mxu0 0
    %5511 = vmatpush.bf16.msra.mxu0 0
    %5512 = vmatpush.bf16.msra.mxu0 0
    %5513 = vmatpush.bf16.msra.mxu0 0
    %5514 = vmatpush.bf16.msra.mxu0 0
    %5515 = vmatpush.bf16.msra.mxu0 0
    %5516 = vmatpush.bf16.msra.mxu0 %v5437
    %5517 = vmatmul.bf16.gmra.mxu0 %v5430
    %v5518 = vpop.f32.mrf.mxu0
    %v5519 = vadd.f32 %v5505, %v5518
    %v5520 = vpop.f32.mrf.mxu0
    %v5521 = vadd.f32 %v5507, %v5520
    %5522 = vdwg.mxu0
    %v5523 = vmax.f32 %v5477, 0.0
    %v5524 = vmax.f32 %v5519, 0.0
    %v5525 = vmax.f32 %v5479, 0.0
    %v5526 = vmax.f32 %v5521, 0.0
    %v5527 = vpack.c.bf16 %v5525, %v5523
    %v5528 = vpack.c.bf16 %v5526, %v5524
    %v5529 = vld [vmem:[%s8] sm:$0xf]
    %v5530 = vld [vmem:[%s8 + $0x4] sm:$0xf]
    %v5531 = vld [vmem:[%s8 + $0x8] sm:$0xf]
    %v5532 = vld [vmem:[%s8 + $0xc] sm:$0xf]
    %v5533 = vld [vmem:[%s8 + $0x10] sm:$0xf]
    %v5534 = vld [vmem:[%s8 + $0x14] sm:$0xf]
    %v5535 = vld [vmem:[%s8 + $0x18] sm:$0xf]
    %v5536 = vld [vmem:[%s8 + $0x1c] sm:$0xf]
    %v5537 = vld [vmem:[%s8 + $0x20] sm:$0xf]
    %v5538 = vld [vmem:[%s8 + $0x24] sm:$0xf]
    %v5539 = vld [vmem:[%s8 + $0x28] sm:$0xf]
    %v5540 = vld [vmem:[%s8 + $0x2c] sm:$0xf]
    %v5541 = vld [vmem:[%s8 + $0x30] sm:$0xf]
    %v5542 = vld [vmem:[%s8 + $0x34] sm:$0xf]
    %v5543 = vld [vmem:[%s8 + $0x38] sm:$0xf]
    %v5544 = vld [vmem:[%s8 + $0x3c] sm:$0xf]
    %v5545 = vld [vmem:[%s8 + $0x40] sm:$0xf]
    %v5546 = vld [vmem:[%s8 + $0x44] sm:$0xf]
    %v5547 = vld [vmem:[%s8 + $0x48] sm:$0xf]
    %v5548 = vld [vmem:[%s8 + $0x4c] sm:$0xf]
    %v5549 = vld [vmem:[%s8 + $0x50] sm:$0xf]
    %v5550 = vld [vmem:[%s8 + $0x54] sm:$0xf]
    %v5551 = vld [vmem:[%s8 + $0x58] sm:$0xf]
    %v5552 = vld [vmem:[%s8 + $0x5c] sm:$0xf]
    %v5553 = vld [vmem:[%s8 + $0x60] sm:$0xf]
    %v5554 = vld [vmem:[%s8 + $0x64] sm:$0xf]
    %v5555 = vld [vmem:[%s8 + $0x68] sm:$0xf]
    %v5556 = vld [vmem:[%s8 + $0x6c] sm:$0xf]
    %v5557 = vld [vmem:[%s8 + $0x70] sm:$0xf]
    %v5558 = vld [vmem:[%s8 + $0x74] sm:$0xf]
    %v5559 = vld [vmem:[%s8 + $0x78] sm:$0xf]
    %v5560 = vld [vmem:[%s8 + $0x7c] sm:$0xf]
    %v5561 = vld [vmem:[#allocation13] sm:$0x1]
    %v5563 = vperm.slane %v5561, 0
    %v5597 = vunpack.c.l.b16 %v5529
    %v5598 = vunpack.c.l.b16 %v5530
    %v5599 = vunpack.c.l.b16 %v5531
    %v5600 = vunpack.c.l.b16 %v5532
    %v5601 = vunpack.c.l.b16 %v5533
    %v5602 = vunpack.c.l.b16 %v5534
    %v5603 = vunpack.c.l.b16 %v5535
    %v5604 = vunpack.c.l.b16 %v5536
    %v5605 = vunpack.c.l.b16 %v5537
    %v5606 = vunpack.c.l.b16 %v5538
    %v5607 = vunpack.c.l.b16 %v5539
    %v5608 = vunpack.c.l.b16 %v5540
    %v5609 = vunpack.c.l.b16 %v5541
    %v5610 = vunpack.c.l.b16 %v5542
    %v5611 = vunpack.c.l.b16 %v5543
    %v5612 = vunpack.c.l.b16 %v5544
    %v5613 = vunpack.c.l.b16 %v5545
    %v5614 = vunpack.c.l.b16 %v5546
    %v5615 = vunpack.c.l.b16 %v5547
    %v5616 = vunpack.c.l.b16 %v5548
    %v5617 = vunpack.c.l.b16 %v5549
    %v5618 = vunpack.c.l.b16 %v5550
    %v5619 = vunpack.c.l.b16 %v5551
    %v5620 = vunpack.c.l.b16 %v5552
    %v5621 = vunpack.c.l.b16 %v5553
    %v5622 = vunpack.c.l.b16 %v5554
    %v5623 = vunpack.c.l.b16 %v5555
    %v5624 = vunpack.c.l.b16 %v5556
    %v5625 = vunpack.c.l.b16 %v5557
    %v5626 = vunpack.c.l.b16 %v5558
    %v5627 = vunpack.c.l.b16 %v5559
    %v5628 = vunpack.c.l.b16 %v5560
    %v5629 = vpack.c.b16 %v5598, %v5597
    %v5630 = vpack.c.b16 %v5600, %v5599
    %v5631 = vpack.c.b16 %v5602, %v5601
    %v5632 = vpack.c.b16 %v5604, %v5603
    %v5633 = vpack.c.b16 %v5606, %v5605
    %v5634 = vpack.c.b16 %v5608, %v5607
    %v5635 = vpack.c.b16 %v5610, %v5609
    %v5636 = vpack.c.b16 %v5612, %v5611
    %v5637 = vpack.c.b16 %v5614, %v5613
    %v5638 = vpack.c.b16 %v5616, %v5615
    %v5639 = vpack.c.b16 %v5618, %v5617
    %v5640 = vpack.c.b16 %v5620, %v5619
    %v5641 = vpack.c.b16 %v5622, %v5621
    %v5642 = vpack.c.b16 %v5624, %v5623
    %v5643 = vpack.c.b16 %v5626, %v5625
    %v5644 = vpack.c.b16 %v5628, %v5627
    %5661 = vmatpush.bf16.msra.mxu0 %v5636
    %5662 = vmatpush.bf16.msra.mxu0 %v5635
    %5663 = vmatpush.bf16.msra.mxu0 %v5634
    %5664 = vmatpush.bf16.msra.mxu0 %v5633
    %5665 = vmatpush.bf16.msra.mxu0 %v5632
    %5666 = vmatpush.bf16.msra.mxu0 %v5631
    %5667 = vmatpush.bf16.msra.mxu0 %v5630
    %5668 = vmatpush.bf16.msra.mxu0 %v5629
    %5669 = vmatmul.bf16.gmra.mxu0 %v5527
    %v5670 = vpop.f32.mrf.mxu0
    %v5671 = vadd.f32 %v5563, %v5670
    %v5672 = vpop.f32.mrf.mxu0
    %v5673 = vadd.f32 %v5563, %v5672
    %5674 = vdwg.mxu0
    %5675 = vmatpush.bf16.msra.mxu0 %v5644
    %5676 = vmatpush.bf16.msra.mxu0 %v5643
    %5677 = vmatpush.bf16.msra.mxu0 %v5642
    %5678 = vmatpush.bf16.msra.mxu0 %v5641
    %5679 = vmatpush.bf16.msra.mxu0 %v5640
    %5680 = vmatpush.bf16.msra.mxu0 %v5639
    %5681 = vmatpush.bf16.msra.mxu0 %v5638
    %5682 = vmatpush.bf16.msra.mxu0 %v5637
    %5683 = vmatmul.bf16.gmra.mxu0 %v5528
    %v5684 = vpop.f32.mrf.mxu0
    %v5685 = vadd.f32 %v5671, %v5684
    %v5686 = vpop.f32.mrf.mxu0
    %v5687 = vadd.f32 %v5673, %v5686
    %5688 = vdwg.mxu0
    %v5689 = vmax.f32 %v5685, 0.0
    %v5690 = vmax.f32 %v5687, 0.0
    %v5691 = vld [vmem:[%s10] sm:$0xff]
    %v5692 = vld [vmem:[%s10 + $0x8] sm:$0xff]
    %v5693 = vld [vmem:[#allocation2] sm:$0x1]
    %v5695 = vperm.slane %v5693, 0
    %vm5697 = vcmask 130048
    %v5699 = vsel %vm5697, %v5689, 0
    %v5702 = vsel %vm5697, %v5690, 0
    %5704 = vmatpush.msra.mxu0 0.0
    %5705 = vmatpush.msra.mxu0 0.0
    %5706 = vmatpush.msra.mxu0 0.0
    %5707 = vmatpush.msra.mxu0 0.0
    %5708 = vmatpush.msra.mxu0 0.0
    %5709 = vmatpush.msra.mxu0 0.0
    %5710 = vmatpush.msra.mxu0 0.0
    %5711 = vmatpush.msra.mxu0 0.0
    %5712 = vmatpush.msra.mxu0 0.0
    %5713 = vmatpush.msra.mxu0 0.0
    %5714 = vmatpush.msra.mxu0 0.0
    %5715 = vmatpush.msra.mxu0 0.0
    %5716 = vmatpush.msra.mxu0 0.0
    %5717 = vmatpush.msra.mxu0 0.0
    %5718 = vmatpush.msra.mxu0 %v5692
    %5719 = vmatpush.msra.mxu0 %v5691
    %5720 = vmatmul.f32.gmra.mxu0 %v5699
    %v5721 = vpop.f32.mrf.mxu0
    %v5722 = vadd.f32 %v5695, %v5721
    %5723 = vmatmul.f32.gmra.mxu0 %v5702
    %v5724 = vpop.f32.mrf.mxu0
    %v5725 = vadd.f32 %v5695, %v5724
    %5726 = vdwg.mxu0
    %v5727 = vsub.f32 0.0, %v5722
    %v5728 = vsub.f32 0.0, %v5725
    %v5729 = vmul.f32 %v5727, 1.442695
    %v5730 = vpow.pop %v5729
    %v5731 = vmul.f32 %v5728, 1.442695
    %v5732 = vpow.pop %v5731
    %v5733 = vadd.f32 %v5730, 1.0
    %v5734 = vadd.f32 %v5732, 1.0
    %v5735 = vrcp.pop %v5733
    %v5736 = vmul.f32 %v5733, %v5735
    %v5737 = vsub.f32 1.0, %v5736
    %v5738 = vmul.f32 %v5735, %v5737
    %v5739 = vadd.f32 %v5735, %v5738
    %vm5740 = vweird.f32 %v5733
    %vm5741 = vweird.f32 %v5735
    %vm5742 = vmor %vm5740, %vm5741
    %v5743 = vsel %vm5742, %v5735, %v5739
    %v5744 = vand.u32 2147483647, %v5733
    %vm5745 = vcmp.eq.f32.partialorder %v5744, 8.507059e+37
    %v5746 = vand.u32 %v5733, 2147483648
    %v5747 = vor.u32 1.1754944e-38, %v5746
    %v5748 = vsel %vm5745, %v5747, %v5743
    %v5749 = vmul.f32 1.0, %v5748
    %v5750 = vrcp.pop %v5734
    %v5751 = vmul.f32 %v5734, %v5750
    %v5752 = vsub.f32 1.0, %v5751
    %v5753 = vmul.f32 %v5750, %v5752
    %v5754 = vadd.f32 %v5750, %v5753
    %vm5755 = vweird.f32 %v5734
    %vm5756 = vweird.f32 %v5750
    %vm5757 = vmor %vm5755, %vm5756
    %v5758 = vsel %vm5757, %v5750, %v5754
    %v5759 = vand.u32 2147483647, %v5734
    %vm5760 = vcmp.eq.f32.partialorder %v5759, 8.507059e+37
    %v5761 = vand.u32 %v5734, 2147483648
    %v5762 = vor.u32 1.1754944e-38, %v5761
    %v5763 = vsel %vm5760, %v5762, %v5758
    %v5764 = vmul.f32 1.0, %v5763
    %vm5765 = vcmask 7168
    %5766 = vst.msk [vmem:[%s12] sm:$0xff] %vm5765, %v5749
    %5767 = vst.msk [vmem:[%s12 + $0x8] sm:$0xff] %vm5765, %v5764
    // Predicated region
    $region78: #{chess_evaluator_forward.1} parent=1 // pred_check
      _
    $region79: #{chess_evaluator_forward.1} parent=1 // pred_check_branch
      %5769 = sbr.rel (0) target = $region81
    $region80: #{chess_evaluator_forward.1} parent=1 // pred_region
      _
    $region81: #{chess_evaluator_forward.1} parent=1 // pred_fallthru
      _
    // Predicated region
    $region82: #{chess_evaluator_forward.1} parent=1 // pred_check
      _
    $region83: #{chess_evaluator_forward.1} parent=1 // pred_check_branch
      %5771 = sbr.rel (0) target = $region85
    $region84: #{chess_evaluator_forward.1} parent=1 // pred_region
      _
    $region85: #{chess_evaluator_forward.1} parent=1 // pred_fallthru
      _
    %5772 = vsyncpa [#allocation4], 1
    %5773 = vsyncpa [#allocation6], 1
    %5774 = vsyncpa [#allocation9], 1
    %5775 = vsyncpa [#allocation12], 1

</llo_original>
